<compile_context>
chip_gen: v7x
topology: tpu7x:2x2x1
jax: 0.10.0
libtpu: 0.0.40
codegen_flags: <defaults>
</compile_context>

<pallas_src>
import math

import jax
import jax.numpy as jnp
from jax import lax
from jax.experimental import pallas as pl
from jax.experimental.pallas import tpu as pltpu


# ----------------------------------------------------------------------------
# Wrapper-side packing helpers (done once, outside the kernel)
# ----------------------------------------------------------------------------
def _pack_dual_weight(w_f_t, w_b_t, H):
    """(K, 4H) fwd + (K, 4H) bwd -> (2K, 8H) block-diagonal, gate-interleaved.

    Column blocks (each H wide): [i_f | i_b | f_f | f_b | g_f | g_b | o_f | o_b].
    Rows 0:K multiply the forward operand, rows K:2K the backward operand; the
    off-diagonal blocks are exact zeros, so junk in the "inactive" lanes of the
    LHS can never leak into the active gates.
    """
    Kf, Kb = w_f_t.shape[0], w_b_t.shape[0]
    wf = w_f_t.reshape(Kf, 4, H)
    wb = w_b_t.reshape(Kb, 4, H)
    top = jnp.stack([wf, jnp.zeros_like(wf)], axis=2).reshape(Kf, 8 * H)
    bot = jnp.stack([jnp.zeros_like(wb), wb], axis=2).reshape(Kb, 8 * H)
    return jnp.concatenate([top, bot], axis=0)


def _pack_dual_bias(b_f, b_b, H, B):
    """(1,4H)+(1,4H) -> (2B, 8H): rows 0:B fwd bias on even H-blocks, rows B:2B
    bwd bias on odd H-blocks, zeros elsewhere."""
    bf = jnp.stack([b_f.reshape(4, H), jnp.zeros((4, H), b_f.dtype)],
                   axis=1).reshape(1, 8 * H)
    bb = jnp.stack([jnp.zeros((4, H), b_b.dtype), b_b.reshape(4, H)],
                   axis=1).reshape(1, 8 * H)
    return jnp.concatenate([jnp.broadcast_to(bf, (B, 8 * H)),
                            jnp.broadcast_to(bb, (B, 8 * H))], axis=0)


def _build_dual_input(x2d, T, B, Bp, D):
    """Layer-0 dual input, (T*Bp, 2D).

    Time block t: rows 0:B   = [x[t]      | 0] (forward chain),
                  rows B:2B  = [0 | x[T-1-t]  ] (backward chain, reversed time),
                  rows 2B:Bp = 0 (sublane padding to an (8,128)-aligned block).
    """
    xt = x2d.reshape(T, B, D)
    xr = xt[::-1]
    zeros = jnp.zeros_like(xt)
    fwd = jnp.concatenate([xt, zeros], axis=-1)
    bwd = jnp.concatenate([zeros, xr], axis=-1)
    pad = jnp.zeros((T, Bp - 2 * B, 2 * D), x2d.dtype)
    return jnp.concatenate([fwd, bwd, pad], axis=1).reshape(T * Bp, 2 * D)


# ----------------------------------------------------------------------------
# Fused Pallas kernel (built per static (num_layers, T, B, Bp, H))
# ----------------------------------------------------------------------------
def _make_fused_bilstm_kernel(num_layers, T, B, Bp, H):
    n_dual = num_layers - 1                      # non-last layers (fused chain)
    n_in = 1 + 3 * n_dual + 5 + 2

    def kernel(*refs):
        f32 = jnp.float32
        TWO_H = 2 * H

        x_dual_ref = refs[0]
        dual_refs = [refs[1 + 3 * l: 1 + 3 * (l + 1)] for l in range(n_dual)]
        base = 1 + 3 * n_dual
        wihL_f_ref, bL_f_ref, whhL_f_ref, wihL_b_ref, bL_b_ref = refs[base:base + 5]
        aff_w_ref, aff_b_ref = refs[base + 5:base + 7]
        out_ref = refs[n_in]
        scratch = refs[n_in + 1:]
        out_nat = scratch[:n_dual]               # (T*Bp, 2H) per non-last layer
        xd_mid = scratch[n_dual:]                # (T*Bp, 4H) per middle layer

        # Constant lane masks, hoisted once.  sigmoid(x) = 0.5*tanh(x/2) + 0.5.
        lane8 = lax.broadcasted_iota(jnp.int32, (2 * B, 8 * H), 1)
        pre8 = jnp.where((lane8 >= 4 * H) & (lane8 < 6 * H), 1.0, 0.5).astype(f32)
        lane4 = lax.broadcasted_iota(jnp.int32, (B, 4 * H), 1)
        pre4 = jnp.where((lane4 >= 2 * H) & (lane4 < 3 * H), 1.0, 0.5).astype(f32)

        def dual_cell(gates, c):
            # gates: (2B, 8H), columns [i_f|i_b|f_f|f_b|g_f|g_b|o_f|o_b].
            # rows 0:B carry the forward direction (even H-blocks), rows B:2B the
            # backward direction (odd H-blocks); the off quadrants are don't-care
            # (they stay exactly 0 and are killed by zero weight blocks anyway).
            # c: (2B, 2H) diag state.  ONE tanh pass over the fused 256-lane gates.
            th = jnp.tanh(gates * pre8)
            i_g = 0.5 * th[:, 0 * TWO_H:1 * TWO_H] + 0.5
            f_g = 0.5 * th[:, 1 * TWO_H:2 * TWO_H] + 0.5
            g_g = th[:, 2 * TWO_H:3 * TWO_H]
            o_g = 0.5 * th[:, 3 * TWO_H:4 * TWO_H] + 0.5
            c_new = f_g * c + i_g * g_g
            return o_g * jnp.tanh(c_new), c_new

        def cell(gates, c):
            # Plain single-direction cell, gates (B, 4H) = [i|f|g|o].
            th = jnp.tanh(gates * pre4)
            i_g = 0.5 * th[:, 0 * H:1 * H] + 0.5
            f_g = 0.5 * th[:, 1 * H:2 * H] + 0.5
            g_g = th[:, 2 * H:3 * H]
            o_g = 0.5 * th[:, 3 * H:4 * H] + 0.5
            c_new = f_g * c + i_g * g_g
            return o_g * jnp.tanh(c_new), c_new

        # ================= non-last layers: fused fwd+bwd interleaved chain =====
        for l in range(n_dual):
            wih_d_ref, bias_d_ref, whh_d_ref = dual_refs[l]

            if l == 0:
                xd = x_dual_ref[...]                       # (T*Bp, 2*D), wrapper-built
            else:
                # Middle layer: build the dual-layout input from the previous
                # layer's outputs (off the recurrence critical path).
                xd_ref = xd_mid[l - 1]
                xd_ref[...] = jnp.zeros((T * Bp, 4 * H), f32)
                prev_ref = out_nat[l - 1]
                for t in range(T):
                    xd_ref[t * Bp:t * Bp + B, 0:TWO_H] = (
                        prev_ref[t * Bp:t * Bp + B, :])
                    xd_ref[t * Bp + B:t * Bp + 2 * B, TWO_H:2 * TWO_H] = (
                        prev_ref[(T - 1 - t) * Bp:(T - 1 - t) * Bp + B, :])
                xd = xd_ref[...]

            # Hoisted, time-parallel dual input projection: ONE MXU matmul/layer.
            gx = jnp.dot(xd, wih_d_ref[...], preferred_element_type=f32)  # (T*Bp, 8H)
            bias_d = bias_d_ref[...]                                      # (2B, 8H)
            whh_d = whh_d_ref[...]                                        # (2H, 8H) hoisted

            h = jnp.zeros((2 * B, TWO_H), f32)     # block-diag state [h_f|0 ; 0|h_b]
            c = jnp.zeros((2 * B, TWO_H), f32)
            nat = out_nat[l]
            for t in range(T):
                # fwd step t and bwd step T-1-t fused into one block-diag MXU op.
                g = gx[t * Bp:t * Bp + 2 * B, :] + bias_d + jnp.dot(
                    h, whh_d, preferred_element_type=f32)
                h, c = dual_cell(g, c)
                # Stores land on (8,128)-aligned row blocks; off the h->h path.
                nat[t * Bp:t * Bp + B, 0:H] = h[0:B, 0:H]                 # out_f[t]
                nat[(T - 1 - t) * Bp:(T - 1 - t) * Bp + B, H:TWO_H] = (
                    h[B:2 * B, H:TWO_H])                                  # out_b[T-1-t]

        # ================= last layer: fwd recurrence + one bwd step ============
        prev = out_nat[num_layers - 2][...]              # (T*Bp, 2H)
        wih_f = wihL_f_ref[...]
        whh_f = whhL_f_ref[...]                          # hoisted out of time loop
        gx_f = jnp.dot(prev, wih_f, preferred_element_type=f32) + bL_f_ref[...]

        h = jnp.zeros((B, H), f32)
        c = jnp.zeros((B, H), f32)
        for t in range(T):
            g = gx_f[t * Bp:t * Bp + B, :] + jnp.dot(
                h, whh_f, preferred_element_type=f32)
            h, c = cell(g, c)
        h_f_last = h

        # Backward h[-1] = ONE bwd cell step from zero state on input at t = T-1
        # (valid ONLY because h0 = c0 = 0, so the W_hh_b term vanishes).
        x_last = prev[(T - 1) * Bp:(T - 1) * Bp + B, :]
        g_b = jnp.dot(x_last, wihL_b_ref[...],
                      preferred_element_type=f32) + bL_b_ref[...]
        h_b_last, _ = cell(g_b, jnp.zeros((B, H), f32))

        # Fused final affine: single (B, 2H) @ (2H, C) MXU pass.
        h_cat = jnp.concatenate([h_f_last, h_b_last], axis=1)
        out_ref[...] = jnp.dot(h_cat, aff_w_ref[...],
                               preferred_element_type=f32) + aff_b_ref[...]

    return kernel


# ----------------------------------------------------------------------------
# Wrapper
# ----------------------------------------------------------------------------
def lstm_model_forward(x, params, num_layers, hidden_dim, num_classes):
    """Replicates LSTM.forward(input) for phase='train' (returns logits)."""
    if num_layers < 2:
        raise NotImplementedError("TODO(synk): num_layers == 1 path not wired up")
    B, T, D = x.shape
    H = hidden_dim
    Bp = max(8, ((2 * B + 7) // 8) * 8)     # sublane-aligned per-timestep row block

    # PyTorch does input.view(T, B, -1): a raw reinterpretation of the (B, T, D)
    # buffer.  Row-major flattening gives the identical (T*B, D) matrix.
    x2d = x.reshape(T * B, D)
    x_dual = _build_dual_input(x2d, T, B, Bp, D)

    args = [x_dual]
    for l in range(num_layers - 1):
        wih_f, whh_f, b_f = params[f"l{l}_fwd"]
        wih_b, whh_b, b_b = params[f"l{l}_bwd"]
        args.append(_pack_dual_weight(wih_f, wih_b, H))    # (2*Din, 8H)
        args.append(_pack_dual_bias(b_f, b_b, H, B))       # (2B, 8H)
        args.append(_pack_dual_weight(whh_f, whh_b, H))    # (2H, 8H)
    lw_f, lwh_f, lb_f = params[f"l{num_layers - 1}_fwd"]
    lw_b, _lwh_b, lb_b = params[f"l{num_layers - 1}_bwd"]  # Whh_b unused (h0 = 0)
    args.extend([lw_f, lb_f, lwh_f, lw_b, lb_b])
    args.extend([params["affine_w"], params["affine_b"]])

    in_specs = [pl.BlockSpec(a.shape, lambda: (0, 0)) for a in args]

    # Intermediate layer outputs stay on-chip in VMEM scratch.
    scratch_shapes = [pltpu.VMEM((T * Bp, 2 * H), jnp.float32)
                      for _ in range(num_layers - 1)]
    scratch_shapes += [pltpu.VMEM((T * Bp, 4 * H), jnp.float32)
                       for _ in range(num_layers - 2)]

    kernel = _make_fused_bilstm_kernel(num_layers, T, B, Bp, H)
    return pl.pallas_call(
        kernel,
        out_shape=jax.ShapeDtypeStruct((B, num_classes), jnp.float32),
        in_specs=in_specs,
        out_specs=pl.BlockSpec((B, num_classes), lambda: (0, 0)),
        scratch_shapes=scratch_shapes,
    )(*args)


# ----------------------------------------------------------------------------
# Deterministic parameter init (PyTorch nn.LSTM default: U(-1/sqrt(H), 1/sqrt(H)))
# ----------------------------------------------------------------------------
def init_params(key, input_dim, hidden_dim, num_layers, num_classes):
    params = {}
    k = 1.0 / math.sqrt(hidden_dim)
    for l in range(num_layers):
        din = input_dim if l == 0 else 2 * hidden_dim
        for direction in ("fwd", "bwd"):
            key, k1, k2, k3, k4 = jax.random.split(key, 5)
            w_ih = jax.random.uniform(k1, (4 * hidden_dim, din), jnp.float32, -k, k)
            w_hh = jax.random.uniform(k2, (4 * hidden_dim, hidden_dim), jnp.float32, -k, k)
            b_ih = jax.random.uniform(k3, (4 * hidden_dim,), jnp.float32, -k, k)
            b_hh = jax.random.uniform(k4, (4 * hidden_dim,), jnp.float32, -k, k)
            params[f"l{l}_{direction}"] = (
                w_ih.T,                       # (din, 4H)
                w_hh.T,                       # (H, 4H)
                (b_ih + b_hh)[None, :],       # (1, 4H)
            )
    key, k1, k2 = jax.random.split(key, 3)
    ka = 1.0 / math.sqrt(2 * hidden_dim)
    aff_w = jax.random.uniform(k1, (num_classes, 2 * hidden_dim), jnp.float32, -ka, ka)
    aff_b = jax.random.uniform(k2, (num_classes,), jnp.float32, -ka, ka)
    params["affine_w"] = aff_w.T          # (2H, C)
    params["affine_b"] = aff_b[None, :]   # (1, C)
    return params


# ----------------------------------------------------------------------------
# Pure-JAX reference (for correctness check)
# ----------------------------------------------------------------------------
def _lstm_layer_ref(x, w_ih_t, w_hh_t, b):
    T, B, _ = x.shape
    H = w_hh_t.shape[0]

    def step(carry, x_t):
        h, c = carry
        gates = x_t @ w_ih_t + h @ w_hh_t + b
        i_g = jax.nn.sigmoid(gates[:, 0 * H:1 * H])
        f_g = jax.nn.sigmoid(gates[:, 1 * H:2 * H])
        g_g = jnp.tanh(gates[:, 2 * H:3 * H])
        o_g = jax.nn.sigmoid(gates[:, 3 * H:4 * H])
        c = f_g * c + i_g * g_g
        h = o_g * jnp.tanh(c)
        return (h, c), h

    init = (jnp.zeros((B, H), jnp.float32), jnp.zeros((B, H), jnp.float32))
    _, hs = lax.scan(step, init, x)
    return hs


def _model_ref(x, params, num_layers):
    B, T, D = x.shape
    h = x.reshape(T, B, D)
    for l in range(num_layers):
        out_f = _lstm_layer_ref(h, *params[f"l{l}_fwd"])
        out_b = _lstm_layer_ref(h[::-1], *params[f"l{l}_bwd"])[::-1]
        h = jnp.concatenate([out_f, out_b], axis=-1)
    return h[-1] @ params["affine_w"] + params["affine_b"]


# ----------------------------------------------------------------------------
if __name__ == "__main__":
    # Module hyperparameters (dropout=0.0, lossfun ~ CrossEntropyLoss, phase='train')
    input_dim = 16
    hidden_dim = 32
    num_layers = 2
    num_classes = 5
    batch = 2
    seq = 8

    key = jax.random.PRNGKey(0)
    key, pkey, xkey = jax.random.split(key, 3)
    params = init_params(pkey, input_dim, hidden_dim, num_layers, num_classes)
    x = jax.random.normal(xkey, (batch, seq, input_dim), jnp.float32)

    logits = lstm_model_forward(x, params, num_layers, hidden_dim, num_classes)
    logits = jax.block_until_ready(logits)
    assert logits.shape == (batch, num_classes), logits.shape

    ref = jax.block_until_ready(_model_ref(x, params, num_layers))
    assert jnp.allclose(logits, ref, atol=1e-3, rtol=1e-3), (logits, ref)

    print("KERNEL_OK")
</pallas_src>

<mosaic_0001>
module attributes {stable_mosaic.version = 11 : i64} {
  func.func @kernel(%arg0: memref<64x32xf32, #tpu.memory_space<vmem>>, %arg1: memref<32x256xf32, #tpu.memory_space<vmem>>, %arg2: memref<4x256xf32, #tpu.memory_space<vmem>>, %arg3: memref<64x256xf32, #tpu.memory_space<vmem>>, %arg4: memref<64x128xf32, #tpu.memory_space<vmem>>, %arg5: memref<1x128xf32, #tpu.memory_space<vmem>>, %arg6: memref<32x128xf32, #tpu.memory_space<vmem>>, %arg7: memref<64x128xf32, #tpu.memory_space<vmem>>, %arg8: memref<1x128xf32, #tpu.memory_space<vmem>>, %arg9: memref<64x5xf32, #tpu.memory_space<vmem>>, %arg10: memref<1x5xf32, #tpu.memory_space<vmem>>, %arg11: memref<2x5xf32, #tpu.memory_space<vmem>>, %arg12: memref<64x64xf32, #tpu.memory_space<vmem>>) attributes {dimension_semantics = [], scalar_prefetch = 0 : i64, scratch_operands = 1 : i64, tpu.core_type = #tpu.core_type<tc>} {
    %0 = tpu.iota {dimensions = array<i32: 1>} : vector<4x256xi32>
    %c128_i32 = arith.constant 128 : i32
    %1 = vector.broadcast %c128_i32 : i32 to vector<4x256xi32>
    %2 = arith.cmpi sge, %0, %1 : vector<4x256xi32>
    %c192_i32 = arith.constant 192 : i32
    %3 = vector.broadcast %c192_i32 : i32 to vector<4x256xi32>
    %4 = arith.cmpi slt, %0, %3 : vector<4x256xi32>
    %5 = arith.andi %2, %4 : vector<4x256xi1>
    %cst = arith.constant 1.000000e+00 : f32
    %cst_0 = arith.constant 5.000000e-01 : f32
    %6 = vector.broadcast %cst : f32 to vector<4x256xf32>
    %7 = vector.broadcast %cst_0 : f32 to vector<4x256xf32>
    %8 = arith.select %5, %6, %7 : vector<4x256xi1>, vector<4x256xf32>
    %9 = tpu.iota {dimensions = array<i32: 1>} : vector<2x128xi32>
    %c64_i32 = arith.constant 64 : i32
    %10 = vector.broadcast %c64_i32 : i32 to vector<2x128xi32>
    %11 = arith.cmpi sge, %9, %10 : vector<2x128xi32>
    %c96_i32 = arith.constant 96 : i32
    %12 = vector.broadcast %c96_i32 : i32 to vector<2x128xi32>
    %13 = arith.cmpi slt, %9, %12 : vector<2x128xi32>
    %14 = arith.andi %11, %13 : vector<2x128xi1>
    %cst_1 = arith.constant 1.000000e+00 : f32
    %cst_2 = arith.constant 5.000000e-01 : f32
    %15 = vector.broadcast %cst_1 : f32 to vector<2x128xf32>
    %16 = vector.broadcast %cst_2 : f32 to vector<2x128xf32>
    %17 = arith.select %14, %15, %16 : vector<2x128xi1>, vector<2x128xf32>
    %c0 = arith.constant 0 : index
    %c0_3 = arith.constant 0 : index
    %18 = vector.load %arg0[%c0, %c0_3] : memref<64x32xf32, #tpu.memory_space<vmem>>, vector<64x32xf32>
    %c0_4 = arith.constant 0 : index
    %c0_5 = arith.constant 0 : index
    %19 = vector.load %arg1[%c0_4, %c0_5] : memref<32x256xf32, #tpu.memory_space<vmem>>, vector<32x256xf32>
    %cst_6 = arith.constant dense<0.000000e+00> : vector<64x256xf32>
    %20 = tpu.matmul %18, %19, %cst_6 {dimension_numbers = #tpu.dot_dimension_numbers<[1], [0], [0], [1], [0, 0, 1, 1], [], []>} : vector<64x32xf32>, vector<32x256xf32>, vector<64x256xf32> -> vector<64x256xf32>
    %c0_7 = arith.constant 0 : index
    %c0_8 = arith.constant 0 : index
    %21 = vector.load %arg2[%c0_7, %c0_8] : memref<4x256xf32, #tpu.memory_space<vmem>>, vector<4x256xf32>
    %c0_9 = arith.constant 0 : index
    %c0_10 = arith.constant 0 : index
    %22 = vector.load %arg3[%c0_9, %c0_10] : memref<64x256xf32, #tpu.memory_space<vmem>>, vector<64x256xf32>
    %cst_11 = arith.constant 0.000000e+00 : f32
    %23 = vector.broadcast %cst_11 : f32 to vector<4x64xf32>
    %cst_12 = arith.constant 0.000000e+00 : f32
    %24 = vector.broadcast %cst_12 : f32 to vector<4x64xf32>
    %25 = vector.extract_strided_slice %20 {offsets = [0, 0], sizes = [4, 256], strides = [1, 1]} : vector<64x256xf32> to vector<4x256xf32>
    %26 = arith.addf %25, %21 : vector<4x256xf32>
    %cst_13 = arith.constant dense<0.000000e+00> : vector<4x256xf32>
    %27 = tpu.matmul %23, %22, %cst_13 {dimension_numbers = #tpu.dot_dimension_numbers<[1], [0], [0], [1], [0, 0, 1, 1], [], []>} : vector<4x64xf32>, vector<64x256xf32>, vector<4x256xf32> -> vector<4x256xf32>
    %28 = arith.addf %26, %27 : vector<4x256xf32>
    %29 = arith.mulf %28, %8 : vector<4x256xf32>
    %30 = math.tanh %29 : vector<4x256xf32>
    %31 = vector.extract_strided_slice %30 {offsets = [0, 0], sizes = [4, 64], strides = [1, 1]} : vector<4x256xf32> to vector<4x64xf32>
    %cst_14 = arith.constant 5.000000e-01 : f32
    %32 = vector.broadcast %cst_14 : f32 to vector<4x64xf32>
    %33 = arith.mulf %32, %31 : vector<4x64xf32>
    %cst_15 = arith.constant 5.000000e-01 : f32
    %34 = vector.broadcast %cst_15 : f32 to vector<4x64xf32>
    %35 = arith.addf %33, %34 : vector<4x64xf32>
    %36 = vector.extract_strided_slice %30 {offsets = [0, 64], sizes = [4, 64], strides = [1, 1]} : vector<4x256xf32> to vector<4x64xf32>
    %cst_16 = arith.constant 5.000000e-01 : f32
    %37 = vector.broadcast %cst_16 : f32 to vector<4x64xf32>
    %38 = arith.mulf %37, %36 : vector<4x64xf32>
    %cst_17 = arith.constant 5.000000e-01 : f32
    %39 = vector.broadcast %cst_17 : f32 to vector<4x64xf32>
    %40 = arith.addf %38, %39 : vector<4x64xf32>
    %41 = vector.extract_strided_slice %30 {offsets = [0, 128], sizes = [4, 64], strides = [1, 1]} : vector<4x256xf32> to vector<4x64xf32>
    %42 = vector.extract_strided_slice %30 {offsets = [0, 192], sizes = [4, 64], strides = [1, 1]} : vector<4x256xf32> to vector<4x64xf32>
    %cst_18 = arith.constant 5.000000e-01 : f32
    %43 = vector.broadcast %cst_18 : f32 to vector<4x64xf32>
    %44 = arith.mulf %43, %42 : vector<4x64xf32>
    %cst_19 = arith.constant 5.000000e-01 : f32
    %45 = vector.broadcast %cst_19 : f32 to vector<4x64xf32>
    %46 = arith.addf %44, %45 : vector<4x64xf32>
    %47 = arith.mulf %40, %24 : vector<4x64xf32>
    %48 = arith.mulf %35, %41 : vector<4x64xf32>
    %49 = arith.addf %47, %48 : vector<4x64xf32>
    %50 = math.tanh %49 : vector<4x64xf32>
    %51 = arith.mulf %46, %50 : vector<4x64xf32>
    %52 = vector.extract_strided_slice %51 {offsets = [0, 0], sizes = [2, 32], strides = [1, 1]} : vector<4x64xf32> to vector<2x32xf32>
    %c0_20 = arith.constant 0 : index
    %c0_21 = arith.constant 0 : index
    %53 = vector.load %arg12[%c0_20, %c0_21] : memref<64x64xf32, #tpu.memory_space<vmem>>, vector<2x32xf32>
    tpu.vector_store %arg12[%c0_20, %c0_21], %52 {strides = array<i32>} : memref<64x64xf32, #tpu.memory_space<vmem>>, vector<2x32xf32>,
    %54 = vector.extract_strided_slice %51 {offsets = [2, 32], sizes = [2, 32], strides = [1, 1]} : vector<4x64xf32> to vector<2x32xf32>
    %c56 = arith.constant 56 : index
    %c32 = arith.constant 32 : index
    %55 = vector.load %arg12[%c56, %c32] : memref<64x64xf32, #tpu.memory_space<vmem>>, vector<2x32xf32>
    tpu.vector_store %arg12[%c56, %c32], %54 {strides = array<i32>} : memref<64x64xf32, #tpu.memory_space<vmem>>, vector<2x32xf32>,
    %56 = vector.extract_strided_slice %20 {offsets = [8, 0], sizes = [4, 256], strides = [1, 1]} : vector<64x256xf32> to vector<4x256xf32>
    %57 = arith.addf %56, %21 : vector<4x256xf32>
    %cst_22 = arith.constant dense<0.000000e+00> : vector<4x256xf32>
    %58 = tpu.matmul %51, %22, %cst_22 {dimension_numbers = #tpu.dot_dimension_numbers<[1], [0], [0], [1], [0, 0, 1, 1], [], []>} : vector<4x64xf32>, vector<64x256xf32>, vector<4x256xf32> -> vector<4x256xf32>
    %59 = arith.addf %57, %58 : vector<4x256xf32>
    %60 = arith.mulf %59, %8 : vector<4x256xf32>
    %61 = math.tanh %60 : vector<4x256xf32>
    %62 = vector.extract_strided_slice %61 {offsets = [0, 0], sizes = [4, 64], strides = [1, 1]} : vector<4x256xf32> to vector<4x64xf32>
    %cst_23 = arith.constant 5.000000e-01 : f32
    %63 = vector.broadcast %cst_23 : f32 to vector<4x64xf32>
    %64 = arith.mulf %63, %62 : vector<4x64xf32>
    %cst_24 = arith.constant 5.000000e-01 : f32
    %65 = vector.broadcast %cst_24 : f32 to vector<4x64xf32>
    %66 = arith.addf %64, %65 : vector<4x64xf32>
    %67 = vector.extract_strided_slice %61 {offsets = [0, 64], sizes = [4, 64], strides = [1, 1]} : vector<4x256xf32> to vector<4x64xf32>
    %cst_25 = arith.constant 5.000000e-01 : f32
    %68 = vector.broadcast %cst_25 : f32 to vector<4x64xf32>
    %69 = arith.mulf %68, %67 : vector<4x64xf32>
    %cst_26 = arith.constant 5.000000e-01 : f32
    %70 = vector.broadcast %cst_26 : f32 to vector<4x64xf32>
    %71 = arith.addf %69, %70 : vector<4x64xf32>
    %72 = vector.extract_strided_slice %61 {offsets = [0, 128], sizes = [4, 64], strides = [1, 1]} : vector<4x256xf32> to vector<4x64xf32>
    %73 = vector.extract_strided_slice %61 {offsets = [0, 192], sizes = [4, 64], strides = [1, 1]} : vector<4x256xf32> to vector<4x64xf32>
    %cst_27 = arith.constant 5.000000e-01 : f32
    %74 = vector.broadcast %cst_27 : f32 to vector<4x64xf32>
    %75 = arith.mulf %74, %73 : vector<4x64xf32>
    %cst_28 = arith.constant 5.000000e-01 : f32
    %76 = vector.broadcast %cst_28 : f32 to vector<4x64xf32>
    %77 = arith.addf %75, %76 : vector<4x64xf32>
    %78 = arith.mulf %71, %49 : vector<4x64xf32>
    %79 = arith.mulf %66, %72 : vector<4x64xf32>
    %80 = arith.addf %78, %79 : vector<4x64xf32>
    %81 = math.tanh %80 : vector<4x64xf32>
    %82 = arith.mulf %77, %81 : vector<4x64xf32>
    %83 = vector.extract_strided_slice %82 {offsets = [0, 0], sizes = [2, 32], strides = [1, 1]} : vector<4x64xf32> to vector<2x32xf32>
    %c8 = arith.constant 8 : index
    %c0_29 = arith.constant 0 : index
    %84 = vector.load %arg12[%c8, %c0_29] : memref<64x64xf32, #tpu.memory_space<vmem>>, vector<2x32xf32>
    tpu.vector_store %arg12[%c8, %c0_29], %83 {strides = array<i32>} : memref<64x64xf32, #tpu.memory_space<vmem>>, vector<2x32xf32>,
    %85 = vector.extract_strided_slice %82 {offsets = [2, 32], sizes = [2, 32], strides = [1, 1]} : vector<4x64xf32> to vector<2x32xf32>
    %c48 = arith.constant 48 : index
    %c32_30 = arith.constant 32 : index
    %86 = vector.load %arg12[%c48, %c32_30] : memref<64x64xf32, #tpu.memory_space<vmem>>, vector<2x32xf32>
    tpu.vector_store %arg12[%c48, %c32_30], %85 {strides = array<i32>} : memref<64x64xf32, #tpu.memory_space<vmem>>, vector<2x32xf32>,
    %87 = vector.extract_strided_slice %20 {offsets = [16, 0], sizes = [4, 256], strides = [1, 1]} : vector<64x256xf32> to vector<4x256xf32>
    %88 = arith.addf %87, %21 : vector<4x256xf32>
    %cst_31 = arith.constant dense<0.000000e+00> : vector<4x256xf32>
    %89 = tpu.matmul %82, %22, %cst_31 {dimension_numbers = #tpu.dot_dimension_numbers<[1], [0], [0], [1], [0, 0, 1, 1], [], []>} : vector<4x64xf32>, vector<64x256xf32>, vector<4x256xf32> -> vector<4x256xf32>
    %90 = arith.addf %88, %89 : vector<4x256xf32>
    %91 = arith.mulf %90, %8 : vector<4x256xf32>
    %92 = math.tanh %91 : vector<4x256xf32>
    %93 = vector.extract_strided_slice %92 {offsets = [0, 0], sizes = [4, 64], strides = [1, 1]} : vector<4x256xf32> to vector<4x64xf32>
    %cst_32 = arith.constant 5.000000e-01 : f32
    %94 = vector.broadcast %cst_32 : f32 to vector<4x64xf32>
    %95 = arith.mulf %94, %93 : vector<4x64xf32>
    %cst_33 = arith.constant 5.000000e-01 : f32
    %96 = vector.broadcast %cst_33 : f32 to vector<4x64xf32>
    %97 = arith.addf %95, %96 : vector<4x64xf32>
    %98 = vector.extract_strided_slice %92 {offsets = [0, 64], sizes = [4, 64], strides = [1, 1]} : vector<4x256xf32> to vector<4x64xf32>
    %cst_34 = arith.constant 5.000000e-01 : f32
    %99 = vector.broadcast %cst_34 : f32 to vector<4x64xf32>
    %100 = arith.mulf %99, %98 : vector<4x64xf32>
    %cst_35 = arith.constant 5.000000e-01 : f32
    %101 = vector.broadcast %cst_35 : f32 to vector<4x64xf32>
    %102 = arith.addf %100, %101 : vector<4x64xf32>
    %103 = vector.extract_strided_slice %92 {offsets = [0, 128], sizes = [4, 64], strides = [1, 1]} : vector<4x256xf32> to vector<4x64xf32>
    %104 = vector.extract_strided_slice %92 {offsets = [0, 192], sizes = [4, 64], strides = [1, 1]} : vector<4x256xf32> to vector<4x64xf32>
    %cst_36 = arith.constant 5.000000e-01 : f32
    %105 = vector.broadcast %cst_36 : f32 to vector<4x64xf32>
    %106 = arith.mulf %105, %104 : vector<4x64xf32>
    %cst_37 = arith.constant 5.000000e-01 : f32
    %107 = vector.broadcast %cst_37 : f32 to vector<4x64xf32>
    %108 = arith.addf %106, %107 : vector<4x64xf32>
    %109 = arith.mulf %102, %80 : vector<4x64xf32>
    %110 = arith.mulf %97, %103 : vector<4x64xf32>
    %111 = arith.addf %109, %110 : vector<4x64xf32>
    %112 = math.tanh %111 : vector<4x64xf32>
    %113 = arith.mulf %108, %112 : vector<4x64xf32>
    %114 = vector.extract_strided_slice %113 {offsets = [0, 0], sizes = [2, 32], strides = [1, 1]} : vector<4x64xf32> to vector<2x32xf32>
    %c16 = arith.constant 16 : index
    %c0_38 = arith.constant 0 : index
    %115 = vector.load %arg12[%c16, %c0_38] : memref<64x64xf32, #tpu.memory_space<vmem>>, vector<2x32xf32>
    tpu.vector_store %arg12[%c16, %c0_38], %114 {strides = array<i32>} : memref<64x64xf32, #tpu.memory_space<vmem>>, vector<2x32xf32>,
    %116 = vector.extract_strided_slice %113 {offsets = [2, 32], sizes = [2, 32], strides = [1, 1]} : vector<4x64xf32> to vector<2x32xf32>
    %c40 = arith.constant 40 : index
    %c32_39 = arith.constant 32 : index
    %117 = vector.load %arg12[%c40, %c32_39] : memref<64x64xf32, #tpu.memory_space<vmem>>, vector<2x32xf32>
    tpu.vector_store %arg12[%c40, %c32_39], %116 {strides = array<i32>} : memref<64x64xf32, #tpu.memory_space<vmem>>, vector<2x32xf32>,
    %118 = vector.extract_strided_slice %20 {offsets = [24, 0], sizes = [4, 256], strides = [1, 1]} : vector<64x256xf32> to vector<4x256xf32>
    %119 = arith.addf %118, %21 : vector<4x256xf32>
    %cst_40 = arith.constant dense<0.000000e+00> : vector<4x256xf32>
    %120 = tpu.matmul %113, %22, %cst_40 {dimension_numbers = #tpu.dot_dimension_numbers<[1], [0], [0], [1], [0, 0, 1, 1], [], []>} : vector<4x64xf32>, vector<64x256xf32>, vector<4x256xf32> -> vector<4x256xf32>
    %121 = arith.addf %119, %120 : vector<4x256xf32>
    %122 = arith.mulf %121, %8 : vector<4x256xf32>
    %123 = math.tanh %122 : vector<4x256xf32>
    %124 = vector.extract_strided_slice %123 {offsets = [0, 0], sizes = [4, 64], strides = [1, 1]} : vector<4x256xf32> to vector<4x64xf32>
    %cst_41 = arith.constant 5.000000e-01 : f32
    %125 = vector.broadcast %cst_41 : f32 to vector<4x64xf32>
    %126 = arith.mulf %125, %124 : vector<4x64xf32>
    %cst_42 = arith.constant 5.000000e-01 : f32
    %127 = vector.broadcast %cst_42 : f32 to vector<4x64xf32>
    %128 = arith.addf %126, %127 : vector<4x64xf32>
    %129 = vector.extract_strided_slice %123 {offsets = [0, 64], sizes = [4, 64], strides = [1, 1]} : vector<4x256xf32> to vector<4x64xf32>
    %cst_43 = arith.constant 5.000000e-01 : f32
    %130 = vector.broadcast %cst_43 : f32 to vector<4x64xf32>
    %131 = arith.mulf %130, %129 : vector<4x64xf32>
    %cst_44 = arith.constant 5.000000e-01 : f32
    %132 = vector.broadcast %cst_44 : f32 to vector<4x64xf32>
    %133 = arith.addf %131, %132 : vector<4x64xf32>
    %134 = vector.extract_strided_slice %123 {offsets = [0, 128], sizes = [4, 64], strides = [1, 1]} : vector<4x256xf32> to vector<4x64xf32>
    %135 = vector.extract_strided_slice %123 {offsets = [0, 192], sizes = [4, 64], strides = [1, 1]} : vector<4x256xf32> to vector<4x64xf32>
    %cst_45 = arith.constant 5.000000e-01 : f32
    %136 = vector.broadcast %cst_45 : f32 to vector<4x64xf32>
    %137 = arith.mulf %136, %135 : vector<4x64xf32>
    %cst_46 = arith.constant 5.000000e-01 : f32
    %138 = vector.broadcast %cst_46 : f32 to vector<4x64xf32>
    %139 = arith.addf %137, %138 : vector<4x64xf32>
    %140 = arith.mulf %133, %111 : vector<4x64xf32>
    %141 = arith.mulf %128, %134 : vector<4x64xf32>
    %142 = arith.addf %140, %141 : vector<4x64xf32>
    %143 = math.tanh %142 : vector<4x64xf32>
    %144 = arith.mulf %139, %143 : vector<4x64xf32>
    %145 = vector.extract_strided_slice %144 {offsets = [0, 0], sizes = [2, 32], strides = [1, 1]} : vector<4x64xf32> to vector<2x32xf32>
    %c24 = arith.constant 24 : index
    %c0_47 = arith.constant 0 : index
    %146 = vector.load %arg12[%c24, %c0_47] : memref<64x64xf32, #tpu.memory_space<vmem>>, vector<2x32xf32>
    tpu.vector_store %arg12[%c24, %c0_47], %145 {strides = array<i32>} : memref<64x64xf32, #tpu.memory_space<vmem>>, vector<2x32xf32>,
    %147 = vector.extract_strided_slice %144 {offsets = [2, 32], sizes = [2, 32], strides = [1, 1]} : vector<4x64xf32> to vector<2x32xf32>
    %c32_48 = arith.constant 32 : index
    %c32_49 = arith.constant 32 : index
    %148 = vector.load %arg12[%c32_48, %c32_49] : memref<64x64xf32, #tpu.memory_space<vmem>>, vector<2x32xf32>
    tpu.vector_store %arg12[%c32_48, %c32_49], %147 {strides = array<i32>} : memref<64x64xf32, #tpu.memory_space<vmem>>, vector<2x32xf32>,
    %149 = vector.extract_strided_slice %20 {offsets = [32, 0], sizes = [4, 256], strides = [1, 1]} : vector<64x256xf32> to vector<4x256xf32>
    %150 = arith.addf %149, %21 : vector<4x256xf32>
    %cst_50 = arith.constant dense<0.000000e+00> : vector<4x256xf32>
    %151 = tpu.matmul %144, %22, %cst_50 {dimension_numbers = #tpu.dot_dimension_numbers<[1], [0], [0], [1], [0, 0, 1, 1], [], []>} : vector<4x64xf32>, vector<64x256xf32>, vector<4x256xf32> -> vector<4x256xf32>
    %152 = arith.addf %150, %151 : vector<4x256xf32>
    %153 = arith.mulf %152, %8 : vector<4x256xf32>
    %154 = math.tanh %153 : vector<4x256xf32>
    %155 = vector.extract_strided_slice %154 {offsets = [0, 0], sizes = [4, 64], strides = [1, 1]} : vector<4x256xf32> to vector<4x64xf32>
    %cst_51 = arith.constant 5.000000e-01 : f32
    %156 = vector.broadcast %cst_51 : f32 to vector<4x64xf32>
    %157 = arith.mulf %156, %155 : vector<4x64xf32>
    %cst_52 = arith.constant 5.000000e-01 : f32
    %158 = vector.broadcast %cst_52 : f32 to vector<4x64xf32>
    %159 = arith.addf %157, %158 : vector<4x64xf32>
    %160 = vector.extract_strided_slice %154 {offsets = [0, 64], sizes = [4, 64], strides = [1, 1]} : vector<4x256xf32> to vector<4x64xf32>
    %cst_53 = arith.constant 5.000000e-01 : f32
    %161 = vector.broadcast %cst_53 : f32 to vector<4x64xf32>
    %162 = arith.mulf %161, %160 : vector<4x64xf32>
    %cst_54 = arith.constant 5.000000e-01 : f32
    %163 = vector.broadcast %cst_54 : f32 to vector<4x64xf32>
    %164 = arith.addf %162, %163 : vector<4x64xf32>
    %165 = vector.extract_strided_slice %154 {offsets = [0, 128], sizes = [4, 64], strides = [1, 1]} : vector<4x256xf32> to vector<4x64xf32>
    %166 = vector.extract_strided_slice %154 {offsets = [0, 192], sizes = [4, 64], strides = [1, 1]} : vector<4x256xf32> to vector<4x64xf32>
    %cst_55 = arith.constant 5.000000e-01 : f32
    %167 = vector.broadcast %cst_55 : f32 to vector<4x64xf32>
    %168 = arith.mulf %167, %166 : vector<4x64xf32>
    %cst_56 = arith.constant 5.000000e-01 : f32
    %169 = vector.broadcast %cst_56 : f32 to vector<4x64xf32>
    %170 = arith.addf %168, %169 : vector<4x64xf32>
    %171 = arith.mulf %164, %142 : vector<4x64xf32>
    %172 = arith.mulf %159, %165 : vector<4x64xf32>
    %173 = arith.addf %171, %172 : vector<4x64xf32>
    %174 = math.tanh %173 : vector<4x64xf32>
    %175 = arith.mulf %170, %174 : vector<4x64xf32>
    %176 = vector.extract_strided_slice %175 {offsets = [0, 0], sizes = [2, 32], strides = [1, 1]} : vector<4x64xf32> to vector<2x32xf32>
    %c32_57 = arith.constant 32 : index
    %c0_58 = arith.constant 0 : index
    %177 = vector.load %arg12[%c32_57, %c0_58] : memref<64x64xf32, #tpu.memory_space<vmem>>, vector<2x32xf32>
    tpu.vector_store %arg12[%c32_57, %c0_58], %176 {strides = array<i32>} : memref<64x64xf32, #tpu.memory_space<vmem>>, vector<2x32xf32>,
    %178 = vector.extract_strided_slice %175 {offsets = [2, 32], sizes = [2, 32], strides = [1, 1]} : vector<4x64xf32> to vector<2x32xf32>
    %c24_59 = arith.constant 24 : index
    %c32_60 = arith.constant 32 : index
    %179 = vector.load %arg12[%c24_59, %c32_60] : memref<64x64xf32, #tpu.memory_space<vmem>>, vector<2x32xf32>
    tpu.vector_store %arg12[%c24_59, %c32_60], %178 {strides = array<i32>} : memref<64x64xf32, #tpu.memory_space<vmem>>, vector<2x32xf32>,
    %180 = vector.extract_strided_slice %20 {offsets = [40, 0], sizes = [4, 256], strides = [1, 1]} : vector<64x256xf32> to vector<4x256xf32>
    %181 = arith.addf %180, %21 : vector<4x256xf32>
    %cst_61 = arith.constant dense<0.000000e+00> : vector<4x256xf32>
    %182 = tpu.matmul %175, %22, %cst_61 {dimension_numbers = #tpu.dot_dimension_numbers<[1], [0], [0], [1], [0, 0, 1, 1], [], []>} : vector<4x64xf32>, vector<64x256xf32>, vector<4x256xf32> -> vector<4x256xf32>
    %183 = arith.addf %181, %182 : vector<4x256xf32>
    %184 = arith.mulf %183, %8 : vector<4x256xf32>
    %185 = math.tanh %184 : vector<4x256xf32>
    %186 = vector.extract_strided_slice %185 {offsets = [0, 0], sizes = [4, 64], strides = [1, 1]} : vector<4x256xf32> to vector<4x64xf32>
    %cst_62 = arith.constant 5.000000e-01 : f32
    %187 = vector.broadcast %cst_62 : f32 to vector<4x64xf32>
    %188 = arith.mulf %187, %186 : vector<4x64xf32>
    %cst_63 = arith.constant 5.000000e-01 : f32
    %189 = vector.broadcast %cst_63 : f32 to vector<4x64xf32>
    %190 = arith.addf %188, %189 : vector<4x64xf32>
    %191 = vector.extract_strided_slice %185 {offsets = [0, 64], sizes = [4, 64], strides = [1, 1]} : vector<4x256xf32> to vector<4x64xf32>
    %cst_64 = arith.constant 5.000000e-01 : f32
    %192 = vector.broadcast %cst_64 : f32 to vector<4x64xf32>
    %193 = arith.mulf %192, %191 : vector<4x64xf32>
    %cst_65 = arith.constant 5.000000e-01 : f32
    %194 = vector.broadcast %cst_65 : f32 to vector<4x64xf32>
    %195 = arith.addf %193, %194 : vector<4x64xf32>
    %196 = vector.extract_strided_slice %185 {offsets = [0, 128], sizes = [4, 64], strides = [1, 1]} : vector<4x256xf32> to vector<4x64xf32>
    %197 = vector.extract_strided_slice %185 {offsets = [0, 192], sizes = [4, 64], strides = [1, 1]} : vector<4x256xf32> to vector<4x64xf32>
    %cst_66 = arith.constant 5.000000e-01 : f32
    %198 = vector.broadcast %cst_66 : f32 to vector<4x64xf32>
    %199 = arith.mulf %198, %197 : vector<4x64xf32>
    %cst_67 = arith.constant 5.000000e-01 : f32
    %200 = vector.broadcast %cst_67 : f32 to vector<4x64xf32>
    %201 = arith.addf %199, %200 : vector<4x64xf32>
    %202 = arith.mulf %195, %173 : vector<4x64xf32>
    %203 = arith.mulf %190, %196 : vector<4x64xf32>
    %204 = arith.addf %202, %203 : vector<4x64xf32>
    %205 = math.tanh %204 : vector<4x64xf32>
    %206 = arith.mulf %201, %205 : vector<4x64xf32>
    %207 = vector.extract_strided_slice %206 {offsets = [0, 0], sizes = [2, 32], strides = [1, 1]} : vector<4x64xf32> to vector<2x32xf32>
    %c40_68 = arith.constant 40 : index
    %c0_69 = arith.constant 0 : index
    %208 = vector.load %arg12[%c40_68, %c0_69] : memref<64x64xf32, #tpu.memory_space<vmem>>, vector<2x32xf32>
    tpu.vector_store %arg12[%c40_68, %c0_69], %207 {strides = array<i32>} : memref<64x64xf32, #tpu.memory_space<vmem>>, vector<2x32xf32>,
    %209 = vector.extract_strided_slice %206 {offsets = [2, 32], sizes = [2, 32], strides = [1, 1]} : vector<4x64xf32> to vector<2x32xf32>
    %c16_70 = arith.constant 16 : index
    %c32_71 = arith.constant 32 : index
    %210 = vector.load %arg12[%c16_70, %c32_71] : memref<64x64xf32, #tpu.memory_space<vmem>>, vector<2x32xf32>
    tpu.vector_store %arg12[%c16_70, %c32_71], %209 {strides = array<i32>} : memref<64x64xf32, #tpu.memory_space<vmem>>, vector<2x32xf32>,
    %211 = vector.extract_strided_slice %20 {offsets = [48, 0], sizes = [4, 256], strides = [1, 1]} : vector<64x256xf32> to vector<4x256xf32>
    %212 = arith.addf %211, %21 : vector<4x256xf32>
    %cst_72 = arith.constant dense<0.000000e+00> : vector<4x256xf32>
    %213 = tpu.matmul %206, %22, %cst_72 {dimension_numbers = #tpu.dot_dimension_numbers<[1], [0], [0], [1], [0, 0, 1, 1], [], []>} : vector<4x64xf32>, vector<64x256xf32>, vector<4x256xf32> -> vector<4x256xf32>
    %214 = arith.addf %212, %213 : vector<4x256xf32>
    %215 = arith.mulf %214, %8 : vector<4x256xf32>
    %216 = math.tanh %215 : vector<4x256xf32>
    %217 = vector.extract_strided_slice %216 {offsets = [0, 0], sizes = [4, 64], strides = [1, 1]} : vector<4x256xf32> to vector<4x64xf32>
    %cst_73 = arith.constant 5.000000e-01 : f32
    %218 = vector.broadcast %cst_73 : f32 to vector<4x64xf32>
    %219 = arith.mulf %218, %217 : vector<4x64xf32>
    %cst_74 = arith.constant 5.000000e-01 : f32
    %220 = vector.broadcast %cst_74 : f32 to vector<4x64xf32>
    %221 = arith.addf %219, %220 : vector<4x64xf32>
    %222 = vector.extract_strided_slice %216 {offsets = [0, 64], sizes = [4, 64], strides = [1, 1]} : vector<4x256xf32> to vector<4x64xf32>
    %cst_75 = arith.constant 5.000000e-01 : f32
    %223 = vector.broadcast %cst_75 : f32 to vector<4x64xf32>
    %224 = arith.mulf %223, %222 : vector<4x64xf32>
    %cst_76 = arith.constant 5.000000e-01 : f32
    %225 = vector.broadcast %cst_76 : f32 to vector<4x64xf32>
    %226 = arith.addf %224, %225 : vector<4x64xf32>
    %227 = vector.extract_strided_slice %216 {offsets = [0, 128], sizes = [4, 64], strides = [1, 1]} : vector<4x256xf32> to vector<4x64xf32>
    %228 = vector.extract_strided_slice %216 {offsets = [0, 192], sizes = [4, 64], strides = [1, 1]} : vector<4x256xf32> to vector<4x64xf32>
    %cst_77 = arith.constant 5.000000e-01 : f32
    %229 = vector.broadcast %cst_77 : f32 to vector<4x64xf32>
    %230 = arith.mulf %229, %228 : vector<4x64xf32>
    %cst_78 = arith.constant 5.000000e-01 : f32
    %231 = vector.broadcast %cst_78 : f32 to vector<4x64xf32>
    %232 = arith.addf %230, %231 : vector<4x64xf32>
    %233 = arith.mulf %226, %204 : vector<4x64xf32>
    %234 = arith.mulf %221, %227 : vector<4x64xf32>
    %235 = arith.addf %233, %234 : vector<4x64xf32>
    %236 = math.tanh %235 : vector<4x64xf32>
    %237 = arith.mulf %232, %236 : vector<4x64xf32>
    %238 = vector.extract_strided_slice %237 {offsets = [0, 0], sizes = [2, 32], strides = [1, 1]} : vector<4x64xf32> to vector<2x32xf32>
    %c48_79 = arith.constant 48 : index
    %c0_80 = arith.constant 0 : index
    %239 = vector.load %arg12[%c48_79, %c0_80] : memref<64x64xf32, #tpu.memory_space<vmem>>, vector<2x32xf32>
    tpu.vector_store %arg12[%c48_79, %c0_80], %238 {strides = array<i32>} : memref<64x64xf32, #tpu.memory_space<vmem>>, vector<2x32xf32>,
    %240 = vector.extract_strided_slice %237 {offsets = [2, 32], sizes = [2, 32], strides = [1, 1]} : vector<4x64xf32> to vector<2x32xf32>
    %c8_81 = arith.constant 8 : index
    %c32_82 = arith.constant 32 : index
    %241 = vector.load %arg12[%c8_81, %c32_82] : memref<64x64xf32, #tpu.memory_space<vmem>>, vector<2x32xf32>
    tpu.vector_store %arg12[%c8_81, %c32_82], %240 {strides = array<i32>} : memref<64x64xf32, #tpu.memory_space<vmem>>, vector<2x32xf32>,
    %242 = vector.extract_strided_slice %20 {offsets = [56, 0], sizes = [4, 256], strides = [1, 1]} : vector<64x256xf32> to vector<4x256xf32>
    %243 = arith.addf %242, %21 : vector<4x256xf32>
    %cst_83 = arith.constant dense<0.000000e+00> : vector<4x256xf32>
    %244 = tpu.matmul %237, %22, %cst_83 {dimension_numbers = #tpu.dot_dimension_numbers<[1], [0], [0], [1], [0, 0, 1, 1], [], []>} : vector<4x64xf32>, vector<64x256xf32>, vector<4x256xf32> -> vector<4x256xf32>
    %245 = arith.addf %243, %244 : vector<4x256xf32>
    %246 = arith.mulf %245, %8 : vector<4x256xf32>
    %247 = math.tanh %246 : vector<4x256xf32>
    %248 = vector.extract_strided_slice %247 {offsets = [0, 0], sizes = [4, 64], strides = [1, 1]} : vector<4x256xf32> to vector<4x64xf32>
    %cst_84 = arith.constant 5.000000e-01 : f32
    %249 = vector.broadcast %cst_84 : f32 to vector<4x64xf32>
    %250 = arith.mulf %249, %248 : vector<4x64xf32>
    %cst_85 = arith.constant 5.000000e-01 : f32
    %251 = vector.broadcast %cst_85 : f32 to vector<4x64xf32>
    %252 = arith.addf %250, %251 : vector<4x64xf32>
    %253 = vector.extract_strided_slice %247 {offsets = [0, 64], sizes = [4, 64], strides = [1, 1]} : vector<4x256xf32> to vector<4x64xf32>
    %cst_86 = arith.constant 5.000000e-01 : f32
    %254 = vector.broadcast %cst_86 : f32 to vector<4x64xf32>
    %255 = arith.mulf %254, %253 : vector<4x64xf32>
    %cst_87 = arith.constant 5.000000e-01 : f32
    %256 = vector.broadcast %cst_87 : f32 to vector<4x64xf32>
    %257 = arith.addf %255, %256 : vector<4x64xf32>
    %258 = vector.extract_strided_slice %247 {offsets = [0, 128], sizes = [4, 64], strides = [1, 1]} : vector<4x256xf32> to vector<4x64xf32>
    %259 = vector.extract_strided_slice %247 {offsets = [0, 192], sizes = [4, 64], strides = [1, 1]} : vector<4x256xf32> to vector<4x64xf32>
    %cst_88 = arith.constant 5.000000e-01 : f32
    %260 = vector.broadcast %cst_88 : f32 to vector<4x64xf32>
    %261 = arith.mulf %260, %259 : vector<4x64xf32>
    %cst_89 = arith.constant 5.000000e-01 : f32
    %262 = vector.broadcast %cst_89 : f32 to vector<4x64xf32>
    %263 = arith.addf %261, %262 : vector<4x64xf32>
    %264 = arith.mulf %257, %235 : vector<4x64xf32>
    %265 = arith.mulf %252, %258 : vector<4x64xf32>
    %266 = arith.addf %264, %265 : vector<4x64xf32>
    %267 = math.tanh %266 : vector<4x64xf32>
    %268 = arith.mulf %263, %267 : vector<4x64xf32>
    %269 = vector.extract_strided_slice %268 {offsets = [0, 0], sizes = [2, 32], strides = [1, 1]} : vector<4x64xf32> to vector<2x32xf32>
    %c56_90 = arith.constant 56 : index
    %c0_91 = arith.constant 0 : index
    %270 = vector.load %arg12[%c56_90, %c0_91] : memref<64x64xf32, #tpu.memory_space<vmem>>, vector<2x32xf32>
    tpu.vector_store %arg12[%c56_90, %c0_91], %269 {strides = array<i32>} : memref<64x64xf32, #tpu.memory_space<vmem>>, vector<2x32xf32>,
    %271 = vector.extract_strided_slice %268 {offsets = [2, 32], sizes = [2, 32], strides = [1, 1]} : vector<4x64xf32> to vector<2x32xf32>
    %c0_92 = arith.constant 0 : index
    %c32_93 = arith.constant 32 : index
    %272 = vector.load %arg12[%c0_92, %c32_93] : memref<64x64xf32, #tpu.memory_space<vmem>>, vector<2x32xf32>
    tpu.vector_store %arg12[%c0_92, %c32_93], %271 {strides = array<i32>} : memref<64x64xf32, #tpu.memory_space<vmem>>, vector<2x32xf32>,
    %c0_94 = arith.constant 0 : index
    %c0_95 = arith.constant 0 : index
    %273 = vector.load %arg12[%c0_94, %c0_95] : memref<64x64xf32, #tpu.memory_space<vmem>>, vector<64x64xf32>
    %c0_96 = arith.constant 0 : index
    %c0_97 = arith.constant 0 : index
    %274 = vector.load %arg4[%c0_96, %c0_97] : memref<64x128xf32, #tpu.memory_space<vmem>>, vector<64x128xf32>
    %c0_98 = arith.constant 0 : index
    %c0_99 = arith.constant 0 : index
    %275 = vector.load %arg6[%c0_98, %c0_99] : memref<32x128xf32, #tpu.memory_space<vmem>>, vector<32x128xf32>
    %cst_100 = arith.constant dense<0.000000e+00> : vector<64x128xf32>
    %276 = tpu.matmul %273, %274, %cst_100 {dimension_numbers = #tpu.dot_dimension_numbers<[1], [0], [0], [1], [0, 0, 1, 1], [], []>} : vector<64x64xf32>, vector<64x128xf32>, vector<64x128xf32> -> vector<64x128xf32>
    %c0_101 = arith.constant 0 : index
    %c0_102 = arith.constant 0 : index
    %277 = vector.load %arg5[%c0_101, %c0_102] : memref<1x128xf32, #tpu.memory_space<vmem>>, vector<1x128xf32>
    %278 = vector.broadcast %277 : vector<1x128xf32> to vector<64x128xf32>
    %279 = arith.addf %276, %278 : vector<64x128xf32>
    %cst_103 = arith.constant 0.000000e+00 : f32
    %280 = vector.broadcast %cst_103 : f32 to vector<2x32xf32>
    %cst_104 = arith.constant 0.000000e+00 : f32
    %281 = vector.broadcast %cst_104 : f32 to vector<2x32xf32>
    %282 = vector.extract_strided_slice %279 {offsets = [0, 0], sizes = [2, 128], strides = [1, 1]} : vector<64x128xf32> to vector<2x128xf32>
    %cst_105 = arith.constant dense<0.000000e+00> : vector<2x128xf32>
    %283 = tpu.matmul %280, %275, %cst_105 {dimension_numbers = #tpu.dot_dimension_numbers<[1], [0], [0], [1], [0, 0, 1, 1], [], []>} : vector<2x32xf32>, vector<32x128xf32>, vector<2x128xf32> -> vector<2x128xf32>
    %284 = arith.addf %282, %283 : vector<2x128xf32>
    %285 = arith.mulf %284, %17 : vector<2x128xf32>
    %286 = math.tanh %285 : vector<2x128xf32>
    %287 = vector.extract_strided_slice %286 {offsets = [0, 0], sizes = [2, 32], strides = [1, 1]} : vector<2x128xf32> to vector<2x32xf32>
    %cst_106 = arith.constant 5.000000e-01 : f32
    %288 = vector.broadcast %cst_106 : f32 to vector<2x32xf32>
    %289 = arith.mulf %288, %287 : vector<2x32xf32>
    %cst_107 = arith.constant 5.000000e-01 : f32
    %290 = vector.broadcast %cst_107 : f32 to vector<2x32xf32>
    %291 = arith.addf %289, %290 : vector<2x32xf32>
    %292 = vector.extract_strided_slice %286 {offsets = [0, 32], sizes = [2, 32], strides = [1, 1]} : vector<2x128xf32> to vector<2x32xf32>
    %cst_108 = arith.constant 5.000000e-01 : f32
    %293 = vector.broadcast %cst_108 : f32 to vector<2x32xf32>
    %294 = arith.mulf %293, %292 : vector<2x32xf32>
    %cst_109 = arith.constant 5.000000e-01 : f32
    %295 = vector.broadcast %cst_109 : f32 to vector<2x32xf32>
    %296 = arith.addf %294, %295 : vector<2x32xf32>
    %297 = vector.extract_strided_slice %286 {offsets = [0, 64], sizes = [2, 32], strides = [1, 1]} : vector<2x128xf32> to vector<2x32xf32>
    %298 = vector.extract_strided_slice %286 {offsets = [0, 96], sizes = [2, 32], strides = [1, 1]} : vector<2x128xf32> to vector<2x32xf32>
    %cst_110 = arith.constant 5.000000e-01 : f32
    %299 = vector.broadcast %cst_110 : f32 to vector<2x32xf32>
    %300 = arith.mulf %299, %298 : vector<2x32xf32>
    %cst_111 = arith.constant 5.000000e-01 : f32
    %301 = vector.broadcast %cst_111 : f32 to vector<2x32xf32>
    %302 = arith.addf %300, %301 : vector<2x32xf32>
    %303 = arith.mulf %296, %281 : vector<2x32xf32>
    %304 = arith.mulf %291, %297 : vector<2x32xf32>
    %305 = arith.addf %303, %304 : vector<2x32xf32>
    %306 = math.tanh %305 : vector<2x32xf32>
    %307 = arith.mulf %302, %306 : vector<2x32xf32>
    %308 = vector.extract_strided_slice %279 {offsets = [8, 0], sizes = [2, 128], strides = [1, 1]} : vector<64x128xf32> to vector<2x128xf32>
    %cst_112 = arith.constant dense<0.000000e+00> : vector<2x128xf32>
    %309 = tpu.matmul %307, %275, %cst_112 {dimension_numbers = #tpu.dot_dimension_numbers<[1], [0], [0], [1], [0, 0, 1, 1], [], []>} : vector<2x32xf32>, vector<32x128xf32>, vector<2x128xf32> -> vector<2x128xf32>
    %310 = arith.addf %308, %309 : vector<2x128xf32>
    %311 = arith.mulf %310, %17 : vector<2x128xf32>
    %312 = math.tanh %311 : vector<2x128xf32>
    %313 = vector.extract_strided_slice %312 {offsets = [0, 0], sizes = [2, 32], strides = [1, 1]} : vector<2x128xf32> to vector<2x32xf32>
    %cst_113 = arith.constant 5.000000e-01 : f32
    %314 = vector.broadcast %cst_113 : f32 to vector<2x32xf32>
    %315 = arith.mulf %314, %313 : vector<2x32xf32>
    %cst_114 = arith.constant 5.000000e-01 : f32
    %316 = vector.broadcast %cst_114 : f32 to vector<2x32xf32>
    %317 = arith.addf %315, %316 : vector<2x32xf32>
    %318 = vector.extract_strided_slice %312 {offsets = [0, 32], sizes = [2, 32], strides = [1, 1]} : vector<2x128xf32> to vector<2x32xf32>
    %cst_115 = arith.constant 5.000000e-01 : f32
    %319 = vector.broadcast %cst_115 : f32 to vector<2x32xf32>
    %320 = arith.mulf %319, %318 : vector<2x32xf32>
    %cst_116 = arith.constant 5.000000e-01 : f32
    %321 = vector.broadcast %cst_116 : f32 to vector<2x32xf32>
    %322 = arith.addf %320, %321 : vector<2x32xf32>
    %323 = vector.extract_strided_slice %312 {offsets = [0, 64], sizes = [2, 32], strides = [1, 1]} : vector<2x128xf32> to vector<2x32xf32>
    %324 = vector.extract_strided_slice %312 {offsets = [0, 96], sizes = [2, 32], strides = [1, 1]} : vector<2x128xf32> to vector<2x32xf32>
    %cst_117 = arith.constant 5.000000e-01 : f32
    %325 = vector.broadcast %cst_117 : f32 to vector<2x32xf32>
    %326 = arith.mulf %325, %324 : vector<2x32xf32>
    %cst_118 = arith.constant 5.000000e-01 : f32
    %327 = vector.broadcast %cst_118 : f32 to vector<2x32xf32>
    %328 = arith.addf %326, %327 : vector<2x32xf32>
    %329 = arith.mulf %322, %305 : vector<2x32xf32>
    %330 = arith.mulf %317, %323 : vector<2x32xf32>
    %331 = arith.addf %329, %330 : vector<2x32xf32>
    %332 = math.tanh %331 : vector<2x32xf32>
    %333 = arith.mulf %328, %332 : vector<2x32xf32>
    %334 = vector.extract_strided_slice %279 {offsets = [16, 0], sizes = [2, 128], strides = [1, 1]} : vector<64x128xf32> to vector<2x128xf32>
    %cst_119 = arith.constant dense<0.000000e+00> : vector<2x128xf32>
    %335 = tpu.matmul %333, %275, %cst_119 {dimension_numbers = #tpu.dot_dimension_numbers<[1], [0], [0], [1], [0, 0, 1, 1], [], []>} : vector<2x32xf32>, vector<32x128xf32>, vector<2x128xf32> -> vector<2x128xf32>
    %336 = arith.addf %334, %335 : vector<2x128xf32>
    %337 = arith.mulf %336, %17 : vector<2x128xf32>
    %338 = math.tanh %337 : vector<2x128xf32>
    %339 = vector.extract_strided_slice %338 {offsets = [0, 0], sizes = [2, 32], strides = [1, 1]} : vector<2x128xf32> to vector<2x32xf32>
    %cst_120 = arith.constant 5.000000e-01 : f32
    %340 = vector.broadcast %cst_120 : f32 to vector<2x32xf32>
    %341 = arith.mulf %340, %339 : vector<2x32xf32>
    %cst_121 = arith.constant 5.000000e-01 : f32
    %342 = vector.broadcast %cst_121 : f32 to vector<2x32xf32>
    %343 = arith.addf %341, %342 : vector<2x32xf32>
    %344 = vector.extract_strided_slice %338 {offsets = [0, 32], sizes = [2, 32], strides = [1, 1]} : vector<2x128xf32> to vector<2x32xf32>
    %cst_122 = arith.constant 5.000000e-01 : f32
    %345 = vector.broadcast %cst_122 : f32 to vector<2x32xf32>
    %346 = arith.mulf %345, %344 : vector<2x32xf32>
    %cst_123 = arith.constant 5.000000e-01 : f32
    %347 = vector.broadcast %cst_123 : f32 to vector<2x32xf32>
    %348 = arith.addf %346, %347 : vector<2x32xf32>
    %349 = vector.extract_strided_slice %338 {offsets = [0, 64], sizes = [2, 32], strides = [1, 1]} : vector<2x128xf32> to vector<2x32xf32>
    %350 = vector.extract_strided_slice %338 {offsets = [0, 96], sizes = [2, 32], strides = [1, 1]} : vector<2x128xf32> to vector<2x32xf32>
    %cst_124 = arith.constant 5.000000e-01 : f32
    %351 = vector.broadcast %cst_124 : f32 to vector<2x32xf32>
    %352 = arith.mulf %351, %350 : vector<2x32xf32>
    %cst_125 = arith.constant 5.000000e-01 : f32
    %353 = vector.broadcast %cst_125 : f32 to vector<2x32xf32>
    %354 = arith.addf %352, %353 : vector<2x32xf32>
    %355 = arith.mulf %348, %331 : vector<2x32xf32>
    %356 = arith.mulf %343, %349 : vector<2x32xf32>
    %357 = arith.addf %355, %356 : vector<2x32xf32>
    %358 = math.tanh %357 : vector<2x32xf32>
    %359 = arith.mulf %354, %358 : vector<2x32xf32>
    %360 = vector.extract_strided_slice %279 {offsets = [24, 0], sizes = [2, 128], strides = [1, 1]} : vector<64x128xf32> to vector<2x128xf32>
    %cst_126 = arith.constant dense<0.000000e+00> : vector<2x128xf32>
    %361 = tpu.matmul %359, %275, %cst_126 {dimension_numbers = #tpu.dot_dimension_numbers<[1], [0], [0], [1], [0, 0, 1, 1], [], []>} : vector<2x32xf32>, vector<32x128xf32>, vector<2x128xf32> -> vector<2x128xf32>
    %362 = arith.addf %360, %361 : vector<2x128xf32>
    %363 = arith.mulf %362, %17 : vector<2x128xf32>
    %364 = math.tanh %363 : vector<2x128xf32>
    %365 = vector.extract_strided_slice %364 {offsets = [0, 0], sizes = [2, 32], strides = [1, 1]} : vector<2x128xf32> to vector<2x32xf32>
    %cst_127 = arith.constant 5.000000e-01 : f32
    %366 = vector.broadcast %cst_127 : f32 to vector<2x32xf32>
    %367 = arith.mulf %366, %365 : vector<2x32xf32>
    %cst_128 = arith.constant 5.000000e-01 : f32
    %368 = vector.broadcast %cst_128 : f32 to vector<2x32xf32>
    %369 = arith.addf %367, %368 : vector<2x32xf32>
    %370 = vector.extract_strided_slice %364 {offsets = [0, 32], sizes = [2, 32], strides = [1, 1]} : vector<2x128xf32> to vector<2x32xf32>
    %cst_129 = arith.constant 5.000000e-01 : f32
    %371 = vector.broadcast %cst_129 : f32 to vector<2x32xf32>
    %372 = arith.mulf %371, %370 : vector<2x32xf32>
    %cst_130 = arith.constant 5.000000e-01 : f32
    %373 = vector.broadcast %cst_130 : f32 to vector<2x32xf32>
    %374 = arith.addf %372, %373 : vector<2x32xf32>
    %375 = vector.extract_strided_slice %364 {offsets = [0, 64], sizes = [2, 32], strides = [1, 1]} : vector<2x128xf32> to vector<2x32xf32>
    %376 = vector.extract_strided_slice %364 {offsets = [0, 96], sizes = [2, 32], strides = [1, 1]} : vector<2x128xf32> to vector<2x32xf32>
    %cst_131 = arith.constant 5.000000e-01 : f32
    %377 = vector.broadcast %cst_131 : f32 to vector<2x32xf32>
    %378 = arith.mulf %377, %376 : vector<2x32xf32>
    %cst_132 = arith.constant 5.000000e-01 : f32
    %379 = vector.broadcast %cst_132 : f32 to vector<2x32xf32>
    %380 = arith.addf %378, %379 : vector<2x32xf32>
    %381 = arith.mulf %374, %357 : vector<2x32xf32>
    %382 = arith.mulf %369, %375 : vector<2x32xf32>
    %383 = arith.addf %381, %382 : vector<2x32xf32>
    %384 = math.tanh %383 : vector<2x32xf32>
    %385 = arith.mulf %380, %384 : vector<2x32xf32>
    %386 = vector.extract_strided_slice %279 {offsets = [32, 0], sizes = [2, 128], strides = [1, 1]} : vector<64x128xf32> to vector<2x128xf32>
    %cst_133 = arith.constant dense<0.000000e+00> : vector<2x128xf32>
    %387 = tpu.matmul %385, %275, %cst_133 {dimension_numbers = #tpu.dot_dimension_numbers<[1], [0], [0], [1], [0, 0, 1, 1], [], []>} : vector<2x32xf32>, vector<32x128xf32>, vector<2x128xf32> -> vector<2x128xf32>
    %388 = arith.addf %386, %387 : vector<2x128xf32>
    %389 = arith.mulf %388, %17 : vector<2x128xf32>
    %390 = math.tanh %389 : vector<2x128xf32>
    %391 = vector.extract_strided_slice %390 {offsets = [0, 0], sizes = [2, 32], strides = [1, 1]} : vector<2x128xf32> to vector<2x32xf32>
    %cst_134 = arith.constant 5.000000e-01 : f32
    %392 = vector.broadcast %cst_134 : f32 to vector<2x32xf32>
    %393 = arith.mulf %392, %391 : vector<2x32xf32>
    %cst_135 = arith.constant 5.000000e-01 : f32
    %394 = vector.broadcast %cst_135 : f32 to vector<2x32xf32>
    %395 = arith.addf %393, %394 : vector<2x32xf32>
    %396 = vector.extract_strided_slice %390 {offsets = [0, 32], sizes = [2, 32], strides = [1, 1]} : vector<2x128xf32> to vector<2x32xf32>
    %cst_136 = arith.constant 5.000000e-01 : f32
    %397 = vector.broadcast %cst_136 : f32 to vector<2x32xf32>
    %398 = arith.mulf %397, %396 : vector<2x32xf32>
    %cst_137 = arith.constant 5.000000e-01 : f32
    %399 = vector.broadcast %cst_137 : f32 to vector<2x32xf32>
    %400 = arith.addf %398, %399 : vector<2x32xf32>
    %401 = vector.extract_strided_slice %390 {offsets = [0, 64], sizes = [2, 32], strides = [1, 1]} : vector<2x128xf32> to vector<2x32xf32>
    %402 = vector.extract_strided_slice %390 {offsets = [0, 96], sizes = [2, 32], strides = [1, 1]} : vector<2x128xf32> to vector<2x32xf32>
    %cst_138 = arith.constant 5.000000e-01 : f32
    %403 = vector.broadcast %cst_138 : f32 to vector<2x32xf32>
    %404 = arith.mulf %403, %402 : vector<2x32xf32>
    %cst_139 = arith.constant 5.000000e-01 : f32
    %405 = vector.broadcast %cst_139 : f32 to vector<2x32xf32>
    %406 = arith.addf %404, %405 : vector<2x32xf32>
    %407 = arith.mulf %400, %383 : vector<2x32xf32>
    %408 = arith.mulf %395, %401 : vector<2x32xf32>
    %409 = arith.addf %407, %408 : vector<2x32xf32>
    %410 = math.tanh %409 : vector<2x32xf32>
    %411 = arith.mulf %406, %410 : vector<2x32xf32>
    %412 = vector.extract_strided_slice %279 {offsets = [40, 0], sizes = [2, 128], strides = [1, 1]} : vector<64x128xf32> to vector<2x128xf32>
    %cst_140 = arith.constant dense<0.000000e+00> : vector<2x128xf32>
    %413 = tpu.matmul %411, %275, %cst_140 {dimension_numbers = #tpu.dot_dimension_numbers<[1], [0], [0], [1], [0, 0, 1, 1], [], []>} : vector<2x32xf32>, vector<32x128xf32>, vector<2x128xf32> -> vector<2x128xf32>
    %414 = arith.addf %412, %413 : vector<2x128xf32>
    %415 = arith.mulf %414, %17 : vector<2x128xf32>
    %416 = math.tanh %415 : vector<2x128xf32>
    %417 = vector.extract_strided_slice %416 {offsets = [0, 0], sizes = [2, 32], strides = [1, 1]} : vector<2x128xf32> to vector<2x32xf32>
    %cst_141 = arith.constant 5.000000e-01 : f32
    %418 = vector.broadcast %cst_141 : f32 to vector<2x32xf32>
    %419 = arith.mulf %418, %417 : vector<2x32xf32>
    %cst_142 = arith.constant 5.000000e-01 : f32
    %420 = vector.broadcast %cst_142 : f32 to vector<2x32xf32>
    %421 = arith.addf %419, %420 : vector<2x32xf32>
    %422 = vector.extract_strided_slice %416 {offsets = [0, 32], sizes = [2, 32], strides = [1, 1]} : vector<2x128xf32> to vector<2x32xf32>
    %cst_143 = arith.constant 5.000000e-01 : f32
    %423 = vector.broadcast %cst_143 : f32 to vector<2x32xf32>
    %424 = arith.mulf %423, %422 : vector<2x32xf32>
    %cst_144 = arith.constant 5.000000e-01 : f32
    %425 = vector.broadcast %cst_144 : f32 to vector<2x32xf32>
    %426 = arith.addf %424, %425 : vector<2x32xf32>
    %427 = vector.extract_strided_slice %416 {offsets = [0, 64], sizes = [2, 32], strides = [1, 1]} : vector<2x128xf32> to vector<2x32xf32>
    %428 = vector.extract_strided_slice %416 {offsets = [0, 96], sizes = [2, 32], strides = [1, 1]} : vector<2x128xf32> to vector<2x32xf32>
    %cst_145 = arith.constant 5.000000e-01 : f32
    %429 = vector.broadcast %cst_145 : f32 to vector<2x32xf32>
    %430 = arith.mulf %429, %428 : vector<2x32xf32>
    %cst_146 = arith.constant 5.000000e-01 : f32
    %431 = vector.broadcast %cst_146 : f32 to vector<2x32xf32>
    %432 = arith.addf %430, %431 : vector<2x32xf32>
    %433 = arith.mulf %426, %409 : vector<2x32xf32>
    %434 = arith.mulf %421, %427 : vector<2x32xf32>
    %435 = arith.addf %433, %434 : vector<2x32xf32>
    %436 = math.tanh %435 : vector<2x32xf32>
    %437 = arith.mulf %432, %436 : vector<2x32xf32>
    %438 = vector.extract_strided_slice %279 {offsets = [48, 0], sizes = [2, 128], strides = [1, 1]} : vector<64x128xf32> to vector<2x128xf32>
    %cst_147 = arith.constant dense<0.000000e+00> : vector<2x128xf32>
    %439 = tpu.matmul %437, %275, %cst_147 {dimension_numbers = #tpu.dot_dimension_numbers<[1], [0], [0], [1], [0, 0, 1, 1], [], []>} : vector<2x32xf32>, vector<32x128xf32>, vector<2x128xf32> -> vector<2x128xf32>
    %440 = arith.addf %438, %439 : vector<2x128xf32>
    %441 = arith.mulf %440, %17 : vector<2x128xf32>
    %442 = math.tanh %441 : vector<2x128xf32>
    %443 = vector.extract_strided_slice %442 {offsets = [0, 0], sizes = [2, 32], strides = [1, 1]} : vector<2x128xf32> to vector<2x32xf32>
    %cst_148 = arith.constant 5.000000e-01 : f32
    %444 = vector.broadcast %cst_148 : f32 to vector<2x32xf32>
    %445 = arith.mulf %444, %443 : vector<2x32xf32>
    %cst_149 = arith.constant 5.000000e-01 : f32
    %446 = vector.broadcast %cst_149 : f32 to vector<2x32xf32>
    %447 = arith.addf %445, %446 : vector<2x32xf32>
    %448 = vector.extract_strided_slice %442 {offsets = [0, 32], sizes = [2, 32], strides = [1, 1]} : vector<2x128xf32> to vector<2x32xf32>
    %cst_150 = arith.constant 5.000000e-01 : f32
    %449 = vector.broadcast %cst_150 : f32 to vector<2x32xf32>
    %450 = arith.mulf %449, %448 : vector<2x32xf32>
    %cst_151 = arith.constant 5.000000e-01 : f32
    %451 = vector.broadcast %cst_151 : f32 to vector<2x32xf32>
    %452 = arith.addf %450, %451 : vector<2x32xf32>
    %453 = vector.extract_strided_slice %442 {offsets = [0, 64], sizes = [2, 32], strides = [1, 1]} : vector<2x128xf32> to vector<2x32xf32>
    %454 = vector.extract_strided_slice %442 {offsets = [0, 96], sizes = [2, 32], strides = [1, 1]} : vector<2x128xf32> to vector<2x32xf32>
    %cst_152 = arith.constant 5.000000e-01 : f32
    %455 = vector.broadcast %cst_152 : f32 to vector<2x32xf32>
    %456 = arith.mulf %455, %454 : vector<2x32xf32>
    %cst_153 = arith.constant 5.000000e-01 : f32
    %457 = vector.broadcast %cst_153 : f32 to vector<2x32xf32>
    %458 = arith.addf %456, %457 : vector<2x32xf32>
    %459 = arith.mulf %452, %435 : vector<2x32xf32>
    %460 = arith.mulf %447, %453 : vector<2x32xf32>
    %461 = arith.addf %459, %460 : vector<2x32xf32>
    %462 = math.tanh %461 : vector<2x32xf32>
    %463 = arith.mulf %458, %462 : vector<2x32xf32>
    %464 = vector.extract_strided_slice %279 {offsets = [56, 0], sizes = [2, 128], strides = [1, 1]} : vector<64x128xf32> to vector<2x128xf32>
    %cst_154 = arith.constant dense<0.000000e+00> : vector<2x128xf32>
    %465 = tpu.matmul %463, %275, %cst_154 {dimension_numbers = #tpu.dot_dimension_numbers<[1], [0], [0], [1], [0, 0, 1, 1], [], []>} : vector<2x32xf32>, vector<32x128xf32>, vector<2x128xf32> -> vector<2x128xf32>
    %466 = arith.addf %464, %465 : vector<2x128xf32>
    %467 = arith.mulf %466, %17 : vector<2x128xf32>
    %468 = math.tanh %467 : vector<2x128xf32>
    %469 = vector.extract_strided_slice %468 {offsets = [0, 0], sizes = [2, 32], strides = [1, 1]} : vector<2x128xf32> to vector<2x32xf32>
    %cst_155 = arith.constant 5.000000e-01 : f32
    %470 = vector.broadcast %cst_155 : f32 to vector<2x32xf32>
    %471 = arith.mulf %470, %469 : vector<2x32xf32>
    %cst_156 = arith.constant 5.000000e-01 : f32
    %472 = vector.broadcast %cst_156 : f32 to vector<2x32xf32>
    %473 = arith.addf %471, %472 : vector<2x32xf32>
    %474 = vector.extract_strided_slice %468 {offsets = [0, 32], sizes = [2, 32], strides = [1, 1]} : vector<2x128xf32> to vector<2x32xf32>
    %cst_157 = arith.constant 5.000000e-01 : f32
    %475 = vector.broadcast %cst_157 : f32 to vector<2x32xf32>
    %476 = arith.mulf %475, %474 : vector<2x32xf32>
    %cst_158 = arith.constant 5.000000e-01 : f32
    %477 = vector.broadcast %cst_158 : f32 to vector<2x32xf32>
    %478 = arith.addf %476, %477 : vector<2x32xf32>
    %479 = vector.extract_strided_slice %468 {offsets = [0, 64], sizes = [2, 32], strides = [1, 1]} : vector<2x128xf32> to vector<2x32xf32>
    %480 = vector.extract_strided_slice %468 {offsets = [0, 96], sizes = [2, 32], strides = [1, 1]} : vector<2x128xf32> to vector<2x32xf32>
    %cst_159 = arith.constant 5.000000e-01 : f32
    %481 = vector.broadcast %cst_159 : f32 to vector<2x32xf32>
    %482 = arith.mulf %481, %480 : vector<2x32xf32>
    %cst_160 = arith.constant 5.000000e-01 : f32
    %483 = vector.broadcast %cst_160 : f32 to vector<2x32xf32>
    %484 = arith.addf %482, %483 : vector<2x32xf32>
    %485 = arith.mulf %478, %461 : vector<2x32xf32>
    %486 = arith.mulf %473, %479 : vector<2x32xf32>
    %487 = arith.addf %485, %486 : vector<2x32xf32>
    %488 = math.tanh %487 : vector<2x32xf32>
    %489 = arith.mulf %484, %488 : vector<2x32xf32>
    %490 = vector.extract_strided_slice %273 {offsets = [56, 0], sizes = [2, 64], strides = [1, 1]} : vector<64x64xf32> to vector<2x64xf32>
    %c0_161 = arith.constant 0 : index
    %c0_162 = arith.constant 0 : index
    %491 = vector.load %arg7[%c0_161, %c0_162] : memref<64x128xf32, #tpu.memory_space<vmem>>, vector<64x128xf32>
    %cst_163 = arith.constant dense<0.000000e+00> : vector<2x128xf32>
    %492 = tpu.matmul %490, %491, %cst_163 {dimension_numbers = #tpu.dot_dimension_numbers<[1], [0], [0], [1], [0, 0, 1, 1], [], []>} : vector<2x64xf32>, vector<64x128xf32>, vector<2x128xf32> -> vector<2x128xf32>
    %c0_164 = arith.constant 0 : index
    %c0_165 = arith.constant 0 : index
    %493 = vector.load %arg8[%c0_164, %c0_165] : memref<1x128xf32, #tpu.memory_space<vmem>>, vector<1x128xf32>
    %494 = vector.broadcast %493 : vector<1x128xf32> to vector<2x128xf32>
    %495 = arith.addf %492, %494 : vector<2x128xf32>
    %cst_166 = arith.constant 0.000000e+00 : f32
    %496 = vector.broadcast %cst_166 : f32 to vector<2x32xf32>
    %497 = arith.mulf %495, %17 : vector<2x128xf32>
    %498 = math.tanh %497 : vector<2x128xf32>
    %499 = vector.extract_strided_slice %498 {offsets = [0, 0], sizes = [2, 32], strides = [1, 1]} : vector<2x128xf32> to vector<2x32xf32>
    %cst_167 = arith.constant 5.000000e-01 : f32
    %500 = vector.broadcast %cst_167 : f32 to vector<2x32xf32>
    %501 = arith.mulf %500, %499 : vector<2x32xf32>
    %cst_168 = arith.constant 5.000000e-01 : f32
    %502 = vector.broadcast %cst_168 : f32 to vector<2x32xf32>
    %503 = arith.addf %501, %502 : vector<2x32xf32>
    %504 = vector.extract_strided_slice %498 {offsets = [0, 32], sizes = [2, 32], strides = [1, 1]} : vector<2x128xf32> to vector<2x32xf32>
    %cst_169 = arith.constant 5.000000e-01 : f32
    %505 = vector.broadcast %cst_169 : f32 to vector<2x32xf32>
    %506 = arith.mulf %505, %504 : vector<2x32xf32>
    %cst_170 = arith.constant 5.000000e-01 : f32
    %507 = vector.broadcast %cst_170 : f32 to vector<2x32xf32>
    %508 = arith.addf %506, %507 : vector<2x32xf32>
    %509 = vector.extract_strided_slice %498 {offsets = [0, 64], sizes = [2, 32], strides = [1, 1]} : vector<2x128xf32> to vector<2x32xf32>
    %510 = vector.extract_strided_slice %498 {offsets = [0, 96], sizes = [2, 32], strides = [1, 1]} : vector<2x128xf32> to vector<2x32xf32>
    %cst_171 = arith.constant 5.000000e-01 : f32
    %511 = vector.broadcast %cst_171 : f32 to vector<2x32xf32>
    %512 = arith.mulf %511, %510 : vector<2x32xf32>
    %cst_172 = arith.constant 5.000000e-01 : f32
    %513 = vector.broadcast %cst_172 : f32 to vector<2x32xf32>
    %514 = arith.addf %512, %513 : vector<2x32xf32>
    %515 = arith.mulf %508, %496 : vector<2x32xf32>
    %516 = arith.mulf %503, %509 : vector<2x32xf32>
    %517 = arith.addf %515, %516 : vector<2x32xf32>
    %518 = math.tanh %517 : vector<2x32xf32>
    %519 = arith.mulf %514, %518 : vector<2x32xf32>
    %520 = tpu.concatenate %489, %519 in 1 : vector<2x32xf32>, vector<2x32xf32> -> vector<2x64xf32>
    %c0_173 = arith.constant 0 : index
    %c0_174 = arith.constant 0 : index
    %521 = vector.load %arg9[%c0_173, %c0_174] : memref<64x5xf32, #tpu.memory_space<vmem>>, vector<64x5xf32>
    %cst_175 = arith.constant dense<0.000000e+00> : vector<2x5xf32>
    %522 = tpu.matmul %520, %521, %cst_175 {dimension_numbers = #tpu.dot_dimension_numbers<[1], [0], [0], [1], [0, 0, 1, 1], [], []>} : vector<2x64xf32>, vector<64x5xf32>, vector<2x5xf32> -> vector<2x5xf32>
    %c0_176 = arith.constant 0 : index
    %c0_177 = arith.constant 0 : index
    %523 = vector.load %arg10[%c0_176, %c0_177] : memref<1x5xf32, #tpu.memory_space<vmem>>, vector<1x5xf32>
    %524 = vector.broadcast %523 : vector<1x5xf32> to vector<2x5xf32>
    %525 = arith.addf %522, %524 : vector<2x5xf32>
    %c0_178 = arith.constant 0 : index
    %c0_179 = arith.constant 0 : index
    %526 = vector.load %arg11[%c0_178, %c0_179] : memref<2x5xf32, #tpu.memory_space<vmem>>, vector<2x5xf32>
    tpu.vector_store %arg11[%c0_178, %c0_179], %525 {strides = array<i32>} : memref<2x5xf32, #tpu.memory_space<vmem>>, vector<2x5xf32>,
    return
  }
}

</mosaic_0001>

<llo_original>
// kernel: tpu_custom_call.1
$region0: #{tpu_custom_call.1}
  #allocation0 [shape = 'u32[]', space=smem, size = 0x4, offset = 0x4, fixed_abs, tag = 'smem constant byte address 0x4 - core index']
  #allocation1 [shape = 'u32[144,128]{1,0:T(1,128)}', space=vmem, size = 0x12000, scoped, tag = 'internal scratch']
  #allocation2 [shape = 'f32[64,64]{1,0:T(8,128)}', space=vmem, size = 0x8000, scoped, tag = 'scratch operand']
  %s0 = inlined_call_operand.vmem [shape: f32[64,32], index: 0, kind: input, shape index: {}]
  %s1 = inlined_call_operand.hbm [shape: f32[32,256], index: 1, kind: input, shape index: {}]
  %s2 = inlined_call_operand.hbm [shape: f32[4,256], index: 2, kind: input, shape index: {}]
  %s3 = inlined_call_operand.vmem [shape: f32[64,256], index: 3, kind: input, shape index: {}]
  %s4 = inlined_call_operand.hbm [shape: f32[64,128], index: 4, kind: input, shape index: {}]
  %s5 = inlined_call_operand.vmem [shape: f32[1,128], index: 5, kind: input, shape index: {}]
  %s6 = inlined_call_operand.hbm [shape: f32[32,128], index: 6, kind: input, shape index: {}]
  %s7 = inlined_call_operand.vmem [shape: f32[64,128], index: 7, kind: input, shape index: {}]
  %s8 = inlined_call_operand.vmem [shape: f32[1,128], index: 8, kind: input, shape index: {}]
  %s9 = inlined_call_operand.vmem [shape: f32[64,5], index: 9, kind: input, shape index: {}]
  %s10 = inlined_call_operand.vmem [shape: f32[1,5], index: 10, kind: input, shape index: {}]
  %s11 = inlined_call_operand.hbm [shape: f32[2,5], index: 11, kind: output, shape index: {}]
  %s12 = sld [smem:[#allocation0]]
  $region70: #{tpu_custom_call.1} parent=0
    _
  %s14 = ssub.s32 1, %s12
  %s15 = scalar_select 0, %s14, %s12
  $region1: #{tpu_custom_call.1} parent=0
    #allocation3 [shape = 'u8[32768]{0}', space=vmem, size = 0x8000, scoped, tag = 'input window, operand 1, single buffered']
    #allocation4 [shape = 's32[1]{0}', space=sflag, size = 0x4, scoped, tag = 'scoped memory for tpu_custom_call.1']
    #allocation5 [shape = 's32[1]{0}', space=sflag, size = 0x4, scoped, tag = 'scoped memory for tpu_custom_call.1']
    #allocation6 [shape = 'u8[4096]{0}', space=vmem, size = 0x1000, scoped, tag = 'input window, operand 2, single buffered']
    #allocation7 [shape = 's32[1]{0}', space=sflag, size = 0x4, scoped, tag = 'scoped memory for tpu_custom_call.1']
    #allocation8 [shape = 'u8[32768]{0}', space=vmem, size = 0x8000, scoped, tag = 'input window, operand 4, single buffered']
    #allocation9 [shape = 'u8[16384]{0}', space=vmem, size = 0x4000, scoped, tag = 'input window, operand 6, single buffered']
    #allocation10 [shape = 's32[1]{0}', space=sflag, size = 0x4, scoped, tag = 'scoped memory for tpu_custom_call.1']
    #allocation11 [shape = 'u8[1024]{0}', space=vmem, size = 0x400, scoped, tag = 'output window, operand 0, single buffered']
    %16 = vsyncpa [#allocation4], 0
    %17 = vsyncpa [#allocation7], 0
    %18 = vsyncpa [#allocation10], 0
    %19 = vsyncpa [#allocation5], 0
    // Predicated region
    $region2: #{tpu_custom_call.1} parent=1 // pred_check
      _
    $region3: #{tpu_custom_call.1} parent=1 // pred_check_branch
      %21 = sbr.rel (0) target = $region5
    $region4: #{tpu_custom_call.1} parent=1 // pred_region
      _
    $region5: #{tpu_custom_call.1} parent=1 // pred_fallthru
      _
    // Predicated region
    $region6: #{tpu_custom_call.1} parent=1 // pred_check
      _
    $region7: #{tpu_custom_call.1} parent=1 // pred_check_branch
      %23 = sbr.rel (0) target = $region9
    $region8: #{tpu_custom_call.1} parent=1 // pred_region
      %s25 = ssub.s32 1024, 1024
      %26 = vsyncadd [#allocation4], %s25
      %s27 = sshll.u32 [#allocation3], 4
      %s28 = int_to_ptr.vmem [resolvable:$true] %s27
      %33 = dma.hbm_to_vmem [thread:$0]  %s1, 1024, %s28, [#allocation4], 256, 256, 16
    $region9: #{tpu_custom_call.1} parent=1 // pred_fallthru
      _
    // Predicated region
    $region10: #{tpu_custom_call.1} parent=1 // pred_check
      _
    $region11: #{tpu_custom_call.1} parent=1 // pred_check_branch
      %35 = sbr.rel (0) target = $region13
    $region12: #{tpu_custom_call.1} parent=1 // pred_region
      %s37 = ssub.s32 128, 128
      %38 = vsyncadd [#allocation7], %s37
      %s40 = sshll.u32 [#allocation6], 4
      %s41 = int_to_ptr.vmem [resolvable:$true] %s40
      %43 = dma.hbm_to_vmem [thread:$0]  %s2, 128, %s41, [#allocation7]
    $region13: #{tpu_custom_call.1} parent=1 // pred_fallthru
      _
    // Predicated region
    $region14: #{tpu_custom_call.1} parent=1 // pred_check
      _
    $region15: #{tpu_custom_call.1} parent=1 // pred_check_branch
      %45 = sbr.rel (0) target = $region17
    $region16: #{tpu_custom_call.1} parent=1 // pred_region
      _
    $region17: #{tpu_custom_call.1} parent=1 // pred_fallthru
      _
    // Predicated region
    $region18: #{tpu_custom_call.1} parent=1 // pred_check
      _
    $region19: #{tpu_custom_call.1} parent=1 // pred_check_branch
      %47 = sbr.rel (0) target = $region21
    $region20: #{tpu_custom_call.1} parent=1 // pred_region
      %s49 = ssub.s32 1024, 1024
      %50 = vsyncadd [#allocation7], %s49
      %s51 = sshll.u32 [#allocation8], 4
      %s52 = int_to_ptr.vmem [resolvable:$true] %s51
      %57 = dma.hbm_to_vmem [thread:$0]  %s4, 1024, %s52, [#allocation7], 128, 128, 8
    $region21: #{tpu_custom_call.1} parent=1 // pred_fallthru
      _
    // Predicated region
    $region22: #{tpu_custom_call.1} parent=1 // pred_check
      _
    $region23: #{tpu_custom_call.1} parent=1 // pred_check_branch
      %59 = sbr.rel (0) target = $region25
    $region24: #{tpu_custom_call.1} parent=1 // pred_region
      _
    $region25: #{tpu_custom_call.1} parent=1 // pred_fallthru
      _
    // Predicated region
    $region26: #{tpu_custom_call.1} parent=1 // pred_check
      _
    $region27: #{tpu_custom_call.1} parent=1 // pred_check_branch
      %61 = sbr.rel (0) target = $region29
    $region28: #{tpu_custom_call.1} parent=1 // pred_region
      %s63 = ssub.s32 512, 512
      %64 = vsyncadd [#allocation10], %s63
      %s65 = sshll.u32 [#allocation9], 4
      %s66 = int_to_ptr.vmem [resolvable:$true] %s65
      %71 = dma.hbm_to_vmem [thread:$0]  %s6, 512, %s66, [#allocation10], 128, 128, 8
    $region29: #{tpu_custom_call.1} parent=1 // pred_fallthru
      _
    // Predicated region
    $region30: #{tpu_custom_call.1} parent=1 // pred_check
      _
    $region31: #{tpu_custom_call.1} parent=1 // pred_check_branch
      %73 = sbr.rel (0) target = $region33
    $region32: #{tpu_custom_call.1} parent=1 // pred_region
      _
    $region33: #{tpu_custom_call.1} parent=1 // pred_fallthru
      _
    // Predicated region
    $region34: #{tpu_custom_call.1} parent=1 // pred_check
      _
    $region35: #{tpu_custom_call.1} parent=1 // pred_check_branch
      %75 = sbr.rel (0) target = $region37
    $region36: #{tpu_custom_call.1} parent=1 // pred_region
      _
    $region37: #{tpu_custom_call.1} parent=1 // pred_fallthru
      _
    // Predicated region
    $region38: #{tpu_custom_call.1} parent=1 // pred_check
      _
    $region39: #{tpu_custom_call.1} parent=1 // pred_check_branch
      %77 = sbr.rel (0) target = $region41
    $region40: #{tpu_custom_call.1} parent=1 // pred_region
      _
    $region41: #{tpu_custom_call.1} parent=1 // pred_fallthru
      _
    // Predicated region
    $region42: #{tpu_custom_call.1} parent=1 // pred_check
      _
    $region43: #{tpu_custom_call.1} parent=1 // pred_check_branch
      %79 = sbr.rel (0) target = $region45
    $region44: #{tpu_custom_call.1} parent=1 // pred_region
      _
    $region45: #{tpu_custom_call.1} parent=1 // pred_fallthru
      _
    // Predicated region
    $region46: #{tpu_custom_call.1} parent=1 // pred_check
      _
    $region47: #{tpu_custom_call.1} parent=1 // pred_check_branch
      %81 = sbr.rel (0) target = $region49
    $region48: #{tpu_custom_call.1} parent=1 // pred_region
      %82 = dma.done [#allocation4], 1024
    $region49: #{tpu_custom_call.1} parent=1 // pred_fallthru
      _
    // Predicated region
    $region50: #{tpu_custom_call.1} parent=1 // pred_check
      _
    $region51: #{tpu_custom_call.1} parent=1 // pred_check_branch
      %84 = sbr.rel (0) target = $region53
    $region52: #{tpu_custom_call.1} parent=1 // pred_region
      %85 = dma.done [#allocation7], 128
    $region53: #{tpu_custom_call.1} parent=1 // pred_fallthru
      _
    // Predicated region
    $region54: #{tpu_custom_call.1} parent=1 // pred_check
      _
    $region55: #{tpu_custom_call.1} parent=1 // pred_check_branch
      %87 = sbr.rel (0) target = $region57
    $region56: #{tpu_custom_call.1} parent=1 // pred_region
      %88 = dma.done [#allocation7], 1024
    $region57: #{tpu_custom_call.1} parent=1 // pred_fallthru
      _
    // Predicated region
    $region58: #{tpu_custom_call.1} parent=1 // pred_check
      _
    $region59: #{tpu_custom_call.1} parent=1 // pred_check_branch
      %90 = sbr.rel (0) target = $region61
    $region60: #{tpu_custom_call.1} parent=1 // pred_region
      %91 = dma.done [#allocation10], 512
    $region61: #{tpu_custom_call.1} parent=1 // pred_fallthru
      _
    %v92 = vlaneseq
    %v93 = vand.u32 %v92, 127
    %v94 = vadd.s32 %v93, 128
    %vm95 = vcmp.ge.s32.totalorder %v93, 128
    %vm96 = vcmp.ge.s32.totalorder %v94, 128
    %vm97 = vcmp.lt.s32.totalorder %v93, 192
    %vm98 = vcmp.lt.s32.totalorder %v94, 192
    %vm99 = vmand %vm95, %vm97
    %vm100 = vmand %vm96, %vm98
    %v101 = vsel %vm99, 1.0, 0.5
    %v102 = vsel %vm100, 1.0, 0.5
    %vm103 = vcmp.ge.s32.totalorder %v93, 64
    %vm104 = vcmp.lt.s32.totalorder %v93, 96
    %vm105 = vmand %vm103, %vm104
    %v106 = vsel %vm105, 1.0, 0.5
    %v107 = vld [vmem:[%s0] sm:$0xff]
    %v108 = vld [vmem:[%s0 + $0x8] sm:$0xff]
    %v109 = vld [vmem:[%s0 + $0x10] sm:$0xff]
    %v110 = vld [vmem:[%s0 + $0x18] sm:$0xff]
    %v111 = vld [vmem:[%s0 + $0x20] sm:$0xff]
    %v112 = vld [vmem:[%s0 + $0x28] sm:$0xff]
    %v113 = vld [vmem:[%s0 + $0x30] sm:$0xff]
    %v114 = vld [vmem:[%s0 + $0x38] sm:$0xff]
    %v115 = vld [vmem:[#allocation3] sm:$0xff]
    %v116 = vld [vmem:[#allocation3 + $0x8] sm:$0xff]
    %v117 = vld [vmem:[#allocation3 + $0x10] sm:$0xff]
    %v118 = vld [vmem:[#allocation3 + $0x18] sm:$0xff]
    %v119 = vld [vmem:[#allocation3 + $0x20] sm:$0xff]
    %v120 = vld [vmem:[#allocation3 + $0x28] sm:$0xff]
    %v121 = vld [vmem:[#allocation3 + $0x30] sm:$0xff]
    %v122 = vld [vmem:[#allocation3 + $0x38] sm:$0xff]
    %vm123 = vcmask 261120
    %v125 = vsel %vm123, %v107, 0
    %v128 = vsel %vm123, %v108, 0
    %v131 = vsel %vm123, %v109, 0
    %v134 = vsel %vm123, %v110, 0
    %v137 = vsel %vm123, %v111, 0
    %v140 = vsel %vm123, %v112, 0
    %v143 = vsel %vm123, %v113, 0
    %v146 = vsel %vm123, %v114, 0
    %148 = vmatprep.subr.mxu0 %v116
    %149 = vmatpush1.msra.mxu0 %v115
    %150 = vmatprep.subr.mxu0 %v118
    %151 = vmatpush1.msra.mxu0 %v117
    %152 = vmatprep.subr.mxu0 %v120
    %153 = vmatpush1.msra.mxu0 %v119
    %154 = vmatprep.subr.mxu0 %v122
    %155 = vmatpush1.msra.mxu0 %v121
    %156 = vmatprep.subr.mxu0 0.0
    %157 = vmatpush1.msra.mxu0 0.0
    %158 = vmatprep.subr.mxu0 0.0
    %159 = vmatpush1.msra.mxu0 0.0
    %160 = vmatprep.subr.mxu0 0.0
    %161 = vmatpush1.msra.mxu0 0.0
    %162 = vmatprep.subr.mxu0 0.0
    %163 = vmatpush1.msra.mxu0 0.0
    %164 = vmatprep.subr.mxu0 0.0
    %165 = vmatpush1.msra.mxu0 0.0
    %166 = vmatprep.subr.mxu0 0.0
    %167 = vmatpush1.msra.mxu0 0.0
    %168 = vmatprep.subr.mxu0 0.0
    %169 = vmatpush1.msra.mxu0 0.0
    %170 = vmatprep.subr.mxu0 0.0
    %171 = vmatpush1.msra.mxu0 0.0
    %172 = vmatprep.subr.mxu0 0.0
    %173 = vmatpush1.msra.mxu0 0.0
    %174 = vmatprep.subr.mxu0 0.0
    %175 = vmatpush1.msra.mxu0 0.0
    %176 = vmatprep.subr.mxu0 0.0
    %177 = vmatpush1.msra.mxu0 0.0
    %178 = vmatprep.subr.mxu0 0.0
    %179 = vmatpush1.msra.mxu0 0.0
    %180 = vmatprep.subr.mxu0 0.0
    %181 = vmatpush1.msra.mxu0 0.0
    %182 = vmatprep.subr.mxu0 0.0
    %183 = vmatpush1.msra.mxu0 0.0
    %184 = vmatprep.subr.mxu0 0.0
    %185 = vmatpush1.msra.mxu0 0.0
    %186 = vmatprep.subr.mxu0 0.0
    %187 = vmatpush1.msra.mxu0 0.0
    %188 = vmatprep.subr.mxu0 0.0
    %189 = vmatpush1.msra.mxu0 0.0
    %190 = vmatprep.subr.mxu0 0.0
    %191 = vmatpush1.msra.mxu0 0.0
    %192 = vmatprep.subr.mxu0 0.0
    %193 = vmatpush1.msra.mxu0 0.0
    %194 = vmatprep.subr.mxu0 0.0
    %195 = vmatpush1.msra.mxu0 0.0
    %196 = vmatprep.subr.mxu0 0.0
    %197 = vmatpush1.msra.mxu0 0.0
    %198 = vmatprep.subr.mxu0 0.0
    %199 = vmatpush1.msra.mxu0 0.0
    %200 = vmatprep.subr.mxu0 0.0
    %201 = vmatpush1.msra.mxu0 0.0
    %202 = vmatprep.subr.mxu0 0.0
    %203 = vmatpush1.msra.mxu0 0.0
    %204 = vmatprep.subr.mxu0 0.0
    %205 = vmatpush1.msra.mxu0 0.0
    %206 = vmatprep.subr.mxu0 0.0
    %207 = vmatpush1.msra.mxu0 0.0
    %208 = vmatprep.subr.mxu0 0.0
    %209 = vmatpush1.msra.mxu0 0.0
    %210 = vmatprep.subr.mxu0 0.0
    %211 = vmatpush1.msra.mxu0 0.0
    %212 = vmatprep.mubr.f32.mxu0 0.0
    %213 = vmatmul.mubr.f32.gmra.mrb[0].mxu0 %v125
    %v214 = vpop.f32.mrb[0].mxu0
    %v215 = vadd.f32 0.0, %v214
    %v216 = vpop.f32.mrb[0].mxu0
    %v217 = vadd.f32 0.0, %v216
    %218 = vmatprep.mubr.f32.mxu0 0.0
    %219 = vmatmul.mubr.f32.gmra.mrb[0].mxu0 %v128
    %v220 = vpop.f32.mrb[0].mxu0
    %v221 = vadd.f32 0.0, %v220
    %v222 = vpop.f32.mrb[0].mxu0
    %v223 = vadd.f32 0.0, %v222
    %224 = vmatprep.mubr.f32.mxu0 0.0
    %225 = vmatmul.mubr.f32.gmra.mrb[0].mxu0 %v131
    %v226 = vpop.f32.mrb[0].mxu0
    %v227 = vadd.f32 0.0, %v226
    %v228 = vpop.f32.mrb[0].mxu0
    %v229 = vadd.f32 0.0, %v228
    %230 = vmatprep.mubr.f32.mxu0 0.0
    %231 = vmatmul.mubr.f32.gmra.mrb[0].mxu0 %v134
    %v232 = vpop.f32.mrb[0].mxu0
    %v233 = vadd.f32 0.0, %v232
    %v234 = vpop.f32.mrb[0].mxu0
    %v235 = vadd.f32 0.0, %v234
    %236 = vmatprep.mubr.f32.mxu0 0.0
    %237 = vmatmul.mubr.f32.gmra.mrb[0].mxu0 %v137
    %v238 = vpop.f32.mrb[0].mxu0
    %v239 = vadd.f32 0.0, %v238
    %v240 = vpop.f32.mrb[0].mxu0
    %v241 = vadd.f32 0.0, %v240
    %242 = vmatprep.mubr.f32.mxu0 0.0
    %243 = vmatmul.mubr.f32.gmra.mrb[0].mxu0 %v140
    %v244 = vpop.f32.mrb[0].mxu0
    %v245 = vadd.f32 0.0, %v244
    %v246 = vpop.f32.mrb[0].mxu0
    %v247 = vadd.f32 0.0, %v246
    %248 = vmatprep.mubr.f32.mxu0 0.0
    %249 = vmatmul.mubr.f32.gmra.mrb[0].mxu0 %v143
    %v250 = vpop.f32.mrb[0].mxu0
    %v251 = vadd.f32 0.0, %v250
    %v252 = vpop.f32.mrb[0].mxu0
    %v253 = vadd.f32 0.0, %v252
    %254 = vmatprep.mubr.f32.mxu0 0.0
    %255 = vmatmul.mubr.f32.gmra.mrb[0].mxu0 %v146
    %v256 = vpop.f32.mrb[0].mxu0
    %v257 = vadd.f32 0.0, %v256
    %v258 = vpop.f32.mrb[0].mxu0
    %v259 = vadd.f32 0.0, %v258
    %260 = vdwg.mxu0
    %v261 = vld [vmem:[#allocation6] sm:$0xff]
    %v262 = vld [vmem:[%s3] sm:$0xff]
    %v263 = vld [vmem:[%s3 + $0x8] sm:$0xff]
    %v264 = vld [vmem:[%s3 + $0x10] sm:$0xff]
    %v265 = vld [vmem:[%s3 + $0x18] sm:$0xff]
    %v266 = vld [vmem:[%s3 + $0x20] sm:$0xff]
    %v267 = vld [vmem:[%s3 + $0x28] sm:$0xff]
    %v268 = vld [vmem:[%s3 + $0x30] sm:$0xff]
    %v269 = vld [vmem:[%s3 + $0x38] sm:$0xff]
    %v270 = vld [vmem:[%s3 + $0x40] sm:$0xff]
    %v271 = vld [vmem:[%s3 + $0x48] sm:$0xff]
    %v272 = vld [vmem:[%s3 + $0x50] sm:$0xff]
    %v273 = vld [vmem:[%s3 + $0x58] sm:$0xff]
    %v274 = vld [vmem:[%s3 + $0x60] sm:$0xff]
    %v275 = vld [vmem:[%s3 + $0x68] sm:$0xff]
    %v276 = vld [vmem:[%s3 + $0x70] sm:$0xff]
    %v277 = vld [vmem:[%s3 + $0x78] sm:$0xff]
    %v279 = vcombine.high %v261, %v261
    %v281 = vadd.f32 %v215, %v261
    %v282 = vadd.f32 %v217, %v279
    %vm283 = vcmask 523264
    %v285 = vsel %vm283, 0.0, 0
    %287 = vmatprep.subr.mxu0 %v263
    %288 = vmatpush1.msra.mxu0 %v262
    %289 = vmatprep.subr.mxu0 %v265
    %290 = vmatpush1.msra.mxu0 %v264
    %291 = vmatprep.subr.mxu0 %v267
    %292 = vmatpush1.msra.mxu0 %v266
    %293 = vmatprep.subr.mxu0 %v269
    %294 = vmatpush1.msra.mxu0 %v268
    %295 = vmatprep.subr.mxu0 %v271
    %296 = vmatpush1.msra.mxu0 %v270
    %297 = vmatprep.subr.mxu0 %v273
    %298 = vmatpush1.msra.mxu0 %v272
    %299 = vmatprep.subr.mxu0 %v275
    %300 = vmatpush1.msra.mxu0 %v274
    %301 = vmatprep.subr.mxu0 %v277
    %302 = vmatpush1.msra.mxu0 %v276
    %303 = vmatprep.subr.mxu0 0.0
    %304 = vmatpush1.msra.mxu0 0.0
    %305 = vmatprep.subr.mxu0 0.0
    %306 = vmatpush1.msra.mxu0 0.0
    %307 = vmatprep.subr.mxu0 0.0
    %308 = vmatpush1.msra.mxu0 0.0
    %309 = vmatprep.subr.mxu0 0.0
    %310 = vmatpush1.msra.mxu0 0.0
    %311 = vmatprep.subr.mxu0 0.0
    %312 = vmatpush1.msra.mxu0 0.0
    %313 = vmatprep.subr.mxu0 0.0
    %314 = vmatpush1.msra.mxu0 0.0
    %315 = vmatprep.subr.mxu0 0.0
    %316 = vmatpush1.msra.mxu0 0.0
    %317 = vmatprep.subr.mxu0 0.0
    %318 = vmatpush1.msra.mxu0 0.0
    %319 = vmatprep.subr.mxu0 0.0
    %320 = vmatpush1.msra.mxu0 0.0
    %321 = vmatprep.subr.mxu0 0.0
    %322 = vmatpush1.msra.mxu0 0.0
    %323 = vmatprep.subr.mxu0 0.0
    %324 = vmatpush1.msra.mxu0 0.0
    %325 = vmatprep.subr.mxu0 0.0
    %326 = vmatpush1.msra.mxu0 0.0
    %327 = vmatprep.subr.mxu0 0.0
    %328 = vmatpush1.msra.mxu0 0.0
    %329 = vmatprep.subr.mxu0 0.0
    %330 = vmatpush1.msra.mxu0 0.0
    %331 = vmatprep.subr.mxu0 0.0
    %332 = vmatpush1.msra.mxu0 0.0
    %333 = vmatprep.subr.mxu0 0.0
    %334 = vmatpush1.msra.mxu0 0.0
    %335 = vmatprep.subr.mxu0 0.0
    %336 = vmatpush1.msra.mxu0 0.0
    %337 = vmatprep.subr.mxu0 0.0
    %338 = vmatpush1.msra.mxu0 0.0
    %339 = vmatprep.subr.mxu0 0.0
    %340 = vmatpush1.msra.mxu0 0.0
    %341 = vmatprep.subr.mxu0 0.0
    %342 = vmatpush1.msra.mxu0 0.0
    %343 = vmatprep.subr.mxu0 0.0
    %344 = vmatpush1.msra.mxu0 0.0
    %345 = vmatprep.subr.mxu0 0.0
    %346 = vmatpush1.msra.mxu0 0.0
    %347 = vmatprep.subr.mxu0 0.0
    %348 = vmatpush1.msra.mxu0 0.0
    %349 = vmatprep.subr.mxu0 0.0
    %350 = vmatpush1.msra.mxu0 0.0
    %351 = vmatprep.mubr.f32.mxu0 0.0
    %352 = vmatmul.mubr.f32.gmra.mrb[0].mxu0 %v285
    %v353 = vpop.f32.mrb[0].mxu0
    %v354 = vadd.f32 0.0, %v353
    %v355 = vpop.f32.mrb[0].mxu0
    %v356 = vadd.f32 0.0, %v355
    %357 = vdwg.mxu0
    %v358 = vadd.f32 %v281, %v354
    %v359 = vadd.f32 %v282, %v356
    %v360 = vmul.f32 %v358, %v101
    %v361 = vmul.f32 %v359, %v102
    %v362 = vtanh.pop %v360
    %v363 = vtanh.pop %v361
    %v364 = vmul.f32 %v362, 0.5
    %v365 = vadd.f32 %v364, 0.5
    %v366 = vmul.f32 %v363, 0.5
    %v367 = vadd.f32 %v366, 0.5
    %v368 = vmul.f32 %v365, 0.0
    %v369 = vmul.f32 %v365, %v363
    %371 = vrot.lane.b32.xlu0 %v369, 64
    %v372 = vpop.permute.xlu0 %371
    %v374 = vadd.f32 %v368, %v372
    %v375 = vtanh.pop %v374
    %v376 = vmul.f32 %v367, %v375
    %378 = vrot.lane.b32.xlu0 %v376, 64
    %v379 = vpop.permute.xlu0 %378
    %vm381 = vcmask 254976
    %382 = vst.msk [vmem:[#allocation2] sm:$0x3] %vm381, %v379
    %vm383 = vcmask 519426
    %384 = vst.msk [vmem:[#allocation2 + $0x36] sm:$0xc] %vm383, %v379
    %v385 = vadd.f32 %v221, %v261
    %v386 = vadd.f32 %v223, %v279
    %v387 = vsel %vm283, %v379, 0
    %389 = vmatprep.subr.mxu0 %v263
    %390 = vmatpush1.msra.mxu0 %v262
    %391 = vmatprep.subr.mxu0 %v265
    %392 = vmatpush1.msra.mxu0 %v264
    %393 = vmatprep.subr.mxu0 %v267
    %394 = vmatpush1.msra.mxu0 %v266
    %395 = vmatprep.subr.mxu0 %v269
    %396 = vmatpush1.msra.mxu0 %v268
    %397 = vmatprep.subr.mxu0 %v271
    %398 = vmatpush1.msra.mxu0 %v270
    %399 = vmatprep.subr.mxu0 %v273
    %400 = vmatpush1.msra.mxu0 %v272
    %401 = vmatprep.subr.mxu0 %v275
    %402 = vmatpush1.msra.mxu0 %v274
    %403 = vmatprep.subr.mxu0 %v277
    %404 = vmatpush1.msra.mxu0 %v276
    %405 = vmatprep.subr.mxu0 0.0
    %406 = vmatpush1.msra.mxu0 0.0
    %407 = vmatprep.subr.mxu0 0.0
    %408 = vmatpush1.msra.mxu0 0.0
    %409 = vmatprep.subr.mxu0 0.0
    %410 = vmatpush1.msra.mxu0 0.0
    %411 = vmatprep.subr.mxu0 0.0
    %412 = vmatpush1.msra.mxu0 0.0
    %413 = vmatprep.subr.mxu0 0.0
    %414 = vmatpush1.msra.mxu0 0.0
    %415 = vmatprep.subr.mxu0 0.0
    %416 = vmatpush1.msra.mxu0 0.0
    %417 = vmatprep.subr.mxu0 0.0
    %418 = vmatpush1.msra.mxu0 0.0
    %419 = vmatprep.subr.mxu0 0.0
    %420 = vmatpush1.msra.mxu0 0.0
    %421 = vmatprep.subr.mxu0 0.0
    %422 = vmatpush1.msra.mxu0 0.0
    %423 = vmatprep.subr.mxu0 0.0
    %424 = vmatpush1.msra.mxu0 0.0
    %425 = vmatprep.subr.mxu0 0.0
    %426 = vmatpush1.msra.mxu0 0.0
    %427 = vmatprep.subr.mxu0 0.0
    %428 = vmatpush1.msra.mxu0 0.0
    %429 = vmatprep.subr.mxu0 0.0
    %430 = vmatpush1.msra.mxu0 0.0
    %431 = vmatprep.subr.mxu0 0.0
    %432 = vmatpush1.msra.mxu0 0.0
    %433 = vmatprep.subr.mxu0 0.0
    %434 = vmatpush1.msra.mxu0 0.0
    %435 = vmatprep.subr.mxu0 0.0
    %436 = vmatpush1.msra.mxu0 0.0
    %437 = vmatprep.subr.mxu0 0.0
    %438 = vmatpush1.msra.mxu0 0.0
    %439 = vmatprep.subr.mxu0 0.0
    %440 = vmatpush1.msra.mxu0 0.0
    %441 = vmatprep.subr.mxu0 0.0
    %442 = vmatpush1.msra.mxu0 0.0
    %443 = vmatprep.subr.mxu0 0.0
    %444 = vmatpush1.msra.mxu0 0.0
    %445 = vmatprep.subr.mxu0 0.0
    %446 = vmatpush1.msra.mxu0 0.0
    %447 = vmatprep.subr.mxu0 0.0
    %448 = vmatpush1.msra.mxu0 0.0
    %449 = vmatprep.subr.mxu0 0.0
    %450 = vmatpush1.msra.mxu0 0.0
    %451 = vmatprep.subr.mxu0 0.0
    %452 = vmatpush1.msra.mxu0 0.0
    %453 = vmatprep.mubr.f32.mxu0 0.0
    %454 = vmatmul.mubr.f32.gmra.mrb[0].mxu0 %v387
    %v455 = vpop.f32.mrb[0].mxu0
    %v456 = vadd.f32 0.0, %v455
    %v457 = vpop.f32.mrb[0].mxu0
    %v458 = vadd.f32 0.0, %v457
    %459 = vdwg.mxu0
    %v460 = vadd.f32 %v385, %v456
    %v461 = vadd.f32 %v386, %v458
    %v462 = vmul.f32 %v460, %v101
    %v463 = vmul.f32 %v461, %v102
    %v464 = vtanh.pop %v462
    %v465 = vtanh.pop %v463
    %v466 = vmul.f32 %v464, 0.5
    %v467 = vadd.f32 %v466, 0.5
    %v468 = vmul.f32 %v465, 0.5
    %v469 = vadd.f32 %v468, 0.5
    %v470 = vmul.f32 %v467, %v374
    %v471 = vmul.f32 %v467, %v465
    %473 = vrot.lane.b32.xlu0 %v471, 64
    %v474 = vpop.permute.xlu0 %473
    %v476 = vadd.f32 %v470, %v474
    %v477 = vtanh.pop %v476
    %v478 = vmul.f32 %v469, %v477
    %480 = vrot.lane.b32.xlu0 %v478, 64
    %v481 = vpop.permute.xlu0 %480
    %483 = vst.msk [vmem:[#allocation2 + $0x8] sm:$0x3] %vm381, %v481
    %484 = vst.msk [vmem:[#allocation2 + $0x2e] sm:$0xc] %vm383, %v481
    %v485 = vadd.f32 %v227, %v261
    %v486 = vadd.f32 %v229, %v279
    %v487 = vsel %vm283, %v481, 0
    %489 = vmatprep.subr.mxu0 %v263
    %490 = vmatpush1.msra.mxu0 %v262
    %491 = vmatprep.subr.mxu0 %v265
    %492 = vmatpush1.msra.mxu0 %v264
    %493 = vmatprep.subr.mxu0 %v267
    %494 = vmatpush1.msra.mxu0 %v266
    %495 = vmatprep.subr.mxu0 %v269
    %496 = vmatpush1.msra.mxu0 %v268
    %497 = vmatprep.subr.mxu0 %v271
    %498 = vmatpush1.msra.mxu0 %v270
    %499 = vmatprep.subr.mxu0 %v273
    %500 = vmatpush1.msra.mxu0 %v272
    %501 = vmatprep.subr.mxu0 %v275
    %502 = vmatpush1.msra.mxu0 %v274
    %503 = vmatprep.subr.mxu0 %v277
    %504 = vmatpush1.msra.mxu0 %v276
    %505 = vmatprep.subr.mxu0 0.0
    %506 = vmatpush1.msra.mxu0 0.0
    %507 = vmatprep.subr.mxu0 0.0
    %508 = vmatpush1.msra.mxu0 0.0
    %509 = vmatprep.subr.mxu0 0.0
    %510 = vmatpush1.msra.mxu0 0.0
    %511 = vmatprep.subr.mxu0 0.0
    %512 = vmatpush1.msra.mxu0 0.0
    %513 = vmatprep.subr.mxu0 0.0
    %514 = vmatpush1.msra.mxu0 0.0
    %515 = vmatprep.subr.mxu0 0.0
    %516 = vmatpush1.msra.mxu0 0.0
    %517 = vmatprep.subr.mxu0 0.0
    %518 = vmatpush1.msra.mxu0 0.0
    %519 = vmatprep.subr.mxu0 0.0
    %520 = vmatpush1.msra.mxu0 0.0
    %521 = vmatprep.subr.mxu0 0.0
    %522 = vmatpush1.msra.mxu0 0.0
    %523 = vmatprep.subr.mxu0 0.0
    %524 = vmatpush1.msra.mxu0 0.0
    %525 = vmatprep.subr.mxu0 0.0
    %526 = vmatpush1.msra.mxu0 0.0
    %527 = vmatprep.subr.mxu0 0.0
    %528 = vmatpush1.msra.mxu0 0.0
    %529 = vmatprep.subr.mxu0 0.0
    %530 = vmatpush1.msra.mxu0 0.0
    %531 = vmatprep.subr.mxu0 0.0
    %532 = vmatpush1.msra.mxu0 0.0
    %533 = vmatprep.subr.mxu0 0.0
    %534 = vmatpush1.msra.mxu0 0.0
    %535 = vmatprep.subr.mxu0 0.0
    %536 = vmatpush1.msra.mxu0 0.0
    %537 = vmatprep.subr.mxu0 0.0
    %538 = vmatpush1.msra.mxu0 0.0
    %539 = vmatprep.subr.mxu0 0.0
    %540 = vmatpush1.msra.mxu0 0.0
    %541 = vmatprep.subr.mxu0 0.0
    %542 = vmatpush1.msra.mxu0 0.0
    %543 = vmatprep.subr.mxu0 0.0
    %544 = vmatpush1.msra.mxu0 0.0
    %545 = vmatprep.subr.mxu0 0.0
    %546 = vmatpush1.msra.mxu0 0.0
    %547 = vmatprep.subr.mxu0 0.0
    %548 = vmatpush1.msra.mxu0 0.0
    %549 = vmatprep.subr.mxu0 0.0
    %550 = vmatpush1.msra.mxu0 0.0
    %551 = vmatprep.subr.mxu0 0.0
    %552 = vmatpush1.msra.mxu0 0.0
    %553 = vmatprep.mubr.f32.mxu0 0.0
    %554 = vmatmul.mubr.f32.gmra.mrb[0].mxu0 %v487
    %v555 = vpop.f32.mrb[0].mxu0
    %v556 = vadd.f32 0.0, %v555
    %v557 = vpop.f32.mrb[0].mxu0
    %v558 = vadd.f32 0.0, %v557
    %559 = vdwg.mxu0
    %v560 = vadd.f32 %v485, %v556
    %v561 = vadd.f32 %v486, %v558
    %v562 = vmul.f32 %v560, %v101
    %v563 = vmul.f32 %v561, %v102
    %v564 = vtanh.pop %v562
    %v565 = vtanh.pop %v563
    %v566 = vmul.f32 %v564, 0.5
    %v567 = vadd.f32 %v566, 0.5
    %v568 = vmul.f32 %v565, 0.5
    %v569 = vadd.f32 %v568, 0.5
    %v570 = vmul.f32 %v567, %v476
    %v571 = vmul.f32 %v567, %v565
    %573 = vrot.lane.b32.xlu0 %v571, 64
    %v574 = vpop.permute.xlu0 %573
    %v576 = vadd.f32 %v570, %v574
    %v577 = vtanh.pop %v576
    %v578 = vmul.f32 %v569, %v577
    %580 = vrot.lane.b32.xlu0 %v578, 64
    %v581 = vpop.permute.xlu0 %580
    %583 = vst.msk [vmem:[#allocation2 + $0x10] sm:$0x3] %vm381, %v581
    %584 = vst.msk [vmem:[#allocation2 + $0x26] sm:$0xc] %vm383, %v581
    %v585 = vadd.f32 %v233, %v261
    %v586 = vadd.f32 %v235, %v279
    %v587 = vsel %vm283, %v581, 0
    %589 = vmatprep.subr.mxu0 %v263
    %590 = vmatpush1.msra.mxu0 %v262
    %591 = vmatprep.subr.mxu0 %v265
    %592 = vmatpush1.msra.mxu0 %v264
    %593 = vmatprep.subr.mxu0 %v267
    %594 = vmatpush1.msra.mxu0 %v266
    %595 = vmatprep.subr.mxu0 %v269
    %596 = vmatpush1.msra.mxu0 %v268
    %597 = vmatprep.subr.mxu0 %v271
    %598 = vmatpush1.msra.mxu0 %v270
    %599 = vmatprep.subr.mxu0 %v273
    %600 = vmatpush1.msra.mxu0 %v272
    %601 = vmatprep.subr.mxu0 %v275
    %602 = vmatpush1.msra.mxu0 %v274
    %603 = vmatprep.subr.mxu0 %v277
    %604 = vmatpush1.msra.mxu0 %v276
    %605 = vmatprep.subr.mxu0 0.0
    %606 = vmatpush1.msra.mxu0 0.0
    %607 = vmatprep.subr.mxu0 0.0
    %608 = vmatpush1.msra.mxu0 0.0
    %609 = vmatprep.subr.mxu0 0.0
    %610 = vmatpush1.msra.mxu0 0.0
    %611 = vmatprep.subr.mxu0 0.0
    %612 = vmatpush1.msra.mxu0 0.0
    %613 = vmatprep.subr.mxu0 0.0
    %614 = vmatpush1.msra.mxu0 0.0
    %615 = vmatprep.subr.mxu0 0.0
    %616 = vmatpush1.msra.mxu0 0.0
    %617 = vmatprep.subr.mxu0 0.0
    %618 = vmatpush1.msra.mxu0 0.0
    %619 = vmatprep.subr.mxu0 0.0
    %620 = vmatpush1.msra.mxu0 0.0
    %621 = vmatprep.subr.mxu0 0.0
    %622 = vmatpush1.msra.mxu0 0.0
    %623 = vmatprep.subr.mxu0 0.0
    %624 = vmatpush1.msra.mxu0 0.0
    %625 = vmatprep.subr.mxu0 0.0
    %626 = vmatpush1.msra.mxu0 0.0
    %627 = vmatprep.subr.mxu0 0.0
    %628 = vmatpush1.msra.mxu0 0.0
    %629 = vmatprep.subr.mxu0 0.0
    %630 = vmatpush1.msra.mxu0 0.0
    %631 = vmatprep.subr.mxu0 0.0
    %632 = vmatpush1.msra.mxu0 0.0
    %633 = vmatprep.subr.mxu0 0.0
    %634 = vmatpush1.msra.mxu0 0.0
    %635 = vmatprep.subr.mxu0 0.0
    %636 = vmatpush1.msra.mxu0 0.0
    %637 = vmatprep.subr.mxu0 0.0
    %638 = vmatpush1.msra.mxu0 0.0
    %639 = vmatprep.subr.mxu0 0.0
    %640 = vmatpush1.msra.mxu0 0.0
    %641 = vmatprep.subr.mxu0 0.0
    %642 = vmatpush1.msra.mxu0 0.0
    %643 = vmatprep.subr.mxu0 0.0
    %644 = vmatpush1.msra.mxu0 0.0
    %645 = vmatprep.subr.mxu0 0.0
    %646 = vmatpush1.msra.mxu0 0.0
    %647 = vmatprep.subr.mxu0 0.0
    %648 = vmatpush1.msra.mxu0 0.0
    %649 = vmatprep.subr.mxu0 0.0
    %650 = vmatpush1.msra.mxu0 0.0
    %651 = vmatprep.subr.mxu0 0.0
    %652 = vmatpush1.msra.mxu0 0.0
    %653 = vmatprep.mubr.f32.mxu0 0.0
    %654 = vmatmul.mubr.f32.gmra.mrb[0].mxu0 %v587
    %v655 = vpop.f32.mrb[0].mxu0
    %v656 = vadd.f32 0.0, %v655
    %v657 = vpop.f32.mrb[0].mxu0
    %v658 = vadd.f32 0.0, %v657
    %659 = vdwg.mxu0
    %v660 = vadd.f32 %v585, %v656
    %v661 = vadd.f32 %v586, %v658
    %v662 = vmul.f32 %v660, %v101
    %v663 = vmul.f32 %v661, %v102
    %v664 = vtanh.pop %v662
    %v665 = vtanh.pop %v663
    %v666 = vmul.f32 %v664, 0.5
    %v667 = vadd.f32 %v666, 0.5
    %v668 = vmul.f32 %v665, 0.5
    %v669 = vadd.f32 %v668, 0.5
    %v670 = vmul.f32 %v667, %v576
    %v671 = vmul.f32 %v667, %v665
    %673 = vrot.lane.b32.xlu0 %v671, 64
    %v674 = vpop.permute.xlu0 %673
    %v676 = vadd.f32 %v670, %v674
    %v677 = vtanh.pop %v676
    %v678 = vmul.f32 %v669, %v677
    %680 = vrot.lane.b32.xlu0 %v678, 64
    %v681 = vpop.permute.xlu0 %680
    %683 = vst.msk [vmem:[#allocation2 + $0x18] sm:$0x3] %vm381, %v681
    %684 = vst.msk [vmem:[#allocation2 + $0x1e] sm:$0xc] %vm383, %v681
    %v685 = vadd.f32 %v239, %v261
    %v686 = vadd.f32 %v241, %v279
    %v687 = vsel %vm283, %v681, 0
    %689 = vmatprep.subr.mxu0 %v263
    %690 = vmatpush1.msra.mxu0 %v262
    %691 = vmatprep.subr.mxu0 %v265
    %692 = vmatpush1.msra.mxu0 %v264
    %693 = vmatprep.subr.mxu0 %v267
    %694 = vmatpush1.msra.mxu0 %v266
    %695 = vmatprep.subr.mxu0 %v269
    %696 = vmatpush1.msra.mxu0 %v268
    %697 = vmatprep.subr.mxu0 %v271
    %698 = vmatpush1.msra.mxu0 %v270
    %699 = vmatprep.subr.mxu0 %v273
    %700 = vmatpush1.msra.mxu0 %v272
    %701 = vmatprep.subr.mxu0 %v275
    %702 = vmatpush1.msra.mxu0 %v274
    %703 = vmatprep.subr.mxu0 %v277
    %704 = vmatpush1.msra.mxu0 %v276
    %705 = vmatprep.subr.mxu0 0.0
    %706 = vmatpush1.msra.mxu0 0.0
    %707 = vmatprep.subr.mxu0 0.0
    %708 = vmatpush1.msra.mxu0 0.0
    %709 = vmatprep.subr.mxu0 0.0
    %710 = vmatpush1.msra.mxu0 0.0
    %711 = vmatprep.subr.mxu0 0.0
    %712 = vmatpush1.msra.mxu0 0.0
    %713 = vmatprep.subr.mxu0 0.0
    %714 = vmatpush1.msra.mxu0 0.0
    %715 = vmatprep.subr.mxu0 0.0
    %716 = vmatpush1.msra.mxu0 0.0
    %717 = vmatprep.subr.mxu0 0.0
    %718 = vmatpush1.msra.mxu0 0.0
    %719 = vmatprep.subr.mxu0 0.0
    %720 = vmatpush1.msra.mxu0 0.0
    %721 = vmatprep.subr.mxu0 0.0
    %722 = vmatpush1.msra.mxu0 0.0
    %723 = vmatprep.subr.mxu0 0.0
    %724 = vmatpush1.msra.mxu0 0.0
    %725 = vmatprep.subr.mxu0 0.0
    %726 = vmatpush1.msra.mxu0 0.0
    %727 = vmatprep.subr.mxu0 0.0
    %728 = vmatpush1.msra.mxu0 0.0
    %729 = vmatprep.subr.mxu0 0.0
    %730 = vmatpush1.msra.mxu0 0.0
    %731 = vmatprep.subr.mxu0 0.0
    %732 = vmatpush1.msra.mxu0 0.0
    %733 = vmatprep.subr.mxu0 0.0
    %734 = vmatpush1.msra.mxu0 0.0
    %735 = vmatprep.subr.mxu0 0.0
    %736 = vmatpush1.msra.mxu0 0.0
    %737 = vmatprep.subr.mxu0 0.0
    %738 = vmatpush1.msra.mxu0 0.0
    %739 = vmatprep.subr.mxu0 0.0
    %740 = vmatpush1.msra.mxu0 0.0
    %741 = vmatprep.subr.mxu0 0.0
    %742 = vmatpush1.msra.mxu0 0.0
    %743 = vmatprep.subr.mxu0 0.0
    %744 = vmatpush1.msra.mxu0 0.0
    %745 = vmatprep.subr.mxu0 0.0
    %746 = vmatpush1.msra.mxu0 0.0
    %747 = vmatprep.subr.mxu0 0.0
    %748 = vmatpush1.msra.mxu0 0.0
    %749 = vmatprep.subr.mxu0 0.0
    %750 = vmatpush1.msra.mxu0 0.0
    %751 = vmatprep.subr.mxu0 0.0
    %752 = vmatpush1.msra.mxu0 0.0
    %753 = vmatprep.mubr.f32.mxu0 0.0
    %754 = vmatmul.mubr.f32.gmra.mrb[0].mxu0 %v687
    %v755 = vpop.f32.mrb[0].mxu0
    %v756 = vadd.f32 0.0, %v755
    %v757 = vpop.f32.mrb[0].mxu0
    %v758 = vadd.f32 0.0, %v757
    %759 = vdwg.mxu0
    %v760 = vadd.f32 %v685, %v756
    %v761 = vadd.f32 %v686, %v758
    %v762 = vmul.f32 %v760, %v101
    %v763 = vmul.f32 %v761, %v102
    %v764 = vtanh.pop %v762
    %v765 = vtanh.pop %v763
    %v766 = vmul.f32 %v764, 0.5
    %v767 = vadd.f32 %v766, 0.5
    %v768 = vmul.f32 %v765, 0.5
    %v769 = vadd.f32 %v768, 0.5
    %v770 = vmul.f32 %v767, %v676
    %v771 = vmul.f32 %v767, %v765
    %773 = vrot.lane.b32.xlu0 %v771, 64
    %v774 = vpop.permute.xlu0 %773
    %v776 = vadd.f32 %v770, %v774
    %v777 = vtanh.pop %v776
    %v778 = vmul.f32 %v769, %v777
    %780 = vrot.lane.b32.xlu0 %v778, 64
    %v781 = vpop.permute.xlu0 %780
    %783 = vst.msk [vmem:[#allocation2 + $0x20] sm:$0x3] %vm381, %v781
    %784 = vst.msk [vmem:[#allocation2 + $0x16] sm:$0xc] %vm383, %v781
    %v785 = vadd.f32 %v245, %v261
    %v786 = vadd.f32 %v247, %v279
    %v787 = vsel %vm283, %v781, 0
    %789 = vmatprep.subr.mxu0 %v263
    %790 = vmatpush1.msra.mxu0 %v262
    %791 = vmatprep.subr.mxu0 %v265
    %792 = vmatpush1.msra.mxu0 %v264
    %793 = vmatprep.subr.mxu0 %v267
    %794 = vmatpush1.msra.mxu0 %v266
    %795 = vmatprep.subr.mxu0 %v269
    %796 = vmatpush1.msra.mxu0 %v268
    %797 = vmatprep.subr.mxu0 %v271
    %798 = vmatpush1.msra.mxu0 %v270
    %799 = vmatprep.subr.mxu0 %v273
    %800 = vmatpush1.msra.mxu0 %v272
    %801 = vmatprep.subr.mxu0 %v275
    %802 = vmatpush1.msra.mxu0 %v274
    %803 = vmatprep.subr.mxu0 %v277
    %804 = vmatpush1.msra.mxu0 %v276
    %805 = vmatprep.subr.mxu0 0.0
    %806 = vmatpush1.msra.mxu0 0.0
    %807 = vmatprep.subr.mxu0 0.0
    %808 = vmatpush1.msra.mxu0 0.0
    %809 = vmatprep.subr.mxu0 0.0
    %810 = vmatpush1.msra.mxu0 0.0
    %811 = vmatprep.subr.mxu0 0.0
    %812 = vmatpush1.msra.mxu0 0.0
    %813 = vmatprep.subr.mxu0 0.0
    %814 = vmatpush1.msra.mxu0 0.0
    %815 = vmatprep.subr.mxu0 0.0
    %816 = vmatpush1.msra.mxu0 0.0
    %817 = vmatprep.subr.mxu0 0.0
    %818 = vmatpush1.msra.mxu0 0.0
    %819 = vmatprep.subr.mxu0 0.0
    %820 = vmatpush1.msra.mxu0 0.0
    %821 = vmatprep.subr.mxu0 0.0
    %822 = vmatpush1.msra.mxu0 0.0
    %823 = vmatprep.subr.mxu0 0.0
    %824 = vmatpush1.msra.mxu0 0.0
    %825 = vmatprep.subr.mxu0 0.0
    %826 = vmatpush1.msra.mxu0 0.0
    %827 = vmatprep.subr.mxu0 0.0
    %828 = vmatpush1.msra.mxu0 0.0
    %829 = vmatprep.subr.mxu0 0.0
    %830 = vmatpush1.msra.mxu0 0.0
    %831 = vmatprep.subr.mxu0 0.0
    %832 = vmatpush1.msra.mxu0 0.0
    %833 = vmatprep.subr.mxu0 0.0
    %834 = vmatpush1.msra.mxu0 0.0
    %835 = vmatprep.subr.mxu0 0.0
    %836 = vmatpush1.msra.mxu0 0.0
    %837 = vmatprep.subr.mxu0 0.0
    %838 = vmatpush1.msra.mxu0 0.0
    %839 = vmatprep.subr.mxu0 0.0
    %840 = vmatpush1.msra.mxu0 0.0
    %841 = vmatprep.subr.mxu0 0.0
    %842 = vmatpush1.msra.mxu0 0.0
    %843 = vmatprep.subr.mxu0 0.0
    %844 = vmatpush1.msra.mxu0 0.0
    %845 = vmatprep.subr.mxu0 0.0
    %846 = vmatpush1.msra.mxu0 0.0
    %847 = vmatprep.subr.mxu0 0.0
    %848 = vmatpush1.msra.mxu0 0.0
    %849 = vmatprep.subr.mxu0 0.0
    %850 = vmatpush1.msra.mxu0 0.0
    %851 = vmatprep.subr.mxu0 0.0
    %852 = vmatpush1.msra.mxu0 0.0
    %853 = vmatprep.mubr.f32.mxu0 0.0
    %854 = vmatmul.mubr.f32.gmra.mrb[0].mxu0 %v787
    %v855 = vpop.f32.mrb[0].mxu0
    %v856 = vadd.f32 0.0, %v855
    %v857 = vpop.f32.mrb[0].mxu0
    %v858 = vadd.f32 0.0, %v857
    %859 = vdwg.mxu0
    %v860 = vadd.f32 %v785, %v856
    %v861 = vadd.f32 %v786, %v858
    %v862 = vmul.f32 %v860, %v101
    %v863 = vmul.f32 %v861, %v102
    %v864 = vtanh.pop %v862
    %v865 = vtanh.pop %v863
    %v866 = vmul.f32 %v864, 0.5
    %v867 = vadd.f32 %v866, 0.5
    %v868 = vmul.f32 %v865, 0.5
    %v869 = vadd.f32 %v868, 0.5
    %v870 = vmul.f32 %v867, %v776
    %v871 = vmul.f32 %v867, %v865
    %873 = vrot.lane.b32.xlu0 %v871, 64
    %v874 = vpop.permute.xlu0 %873
    %v876 = vadd.f32 %v870, %v874
    %v877 = vtanh.pop %v876
    %v878 = vmul.f32 %v869, %v877
    %880 = vrot.lane.b32.xlu0 %v878, 64
    %v881 = vpop.permute.xlu0 %880
    %883 = vst.msk [vmem:[#allocation2 + $0x28] sm:$0x3] %vm381, %v881
    %884 = vst.msk [vmem:[#allocation2 + $0xe] sm:$0xc] %vm383, %v881
    %v885 = vadd.f32 %v251, %v261
    %v886 = vadd.f32 %v253, %v279
    %v887 = vsel %vm283, %v881, 0
    %889 = vmatprep.subr.mxu0 %v263
    %890 = vmatpush1.msra.mxu0 %v262
    %891 = vmatprep.subr.mxu0 %v265
    %892 = vmatpush1.msra.mxu0 %v264
    %893 = vmatprep.subr.mxu0 %v267
    %894 = vmatpush1.msra.mxu0 %v266
    %895 = vmatprep.subr.mxu0 %v269
    %896 = vmatpush1.msra.mxu0 %v268
    %897 = vmatprep.subr.mxu0 %v271
    %898 = vmatpush1.msra.mxu0 %v270
    %899 = vmatprep.subr.mxu0 %v273
    %900 = vmatpush1.msra.mxu0 %v272
    %901 = vmatprep.subr.mxu0 %v275
    %902 = vmatpush1.msra.mxu0 %v274
    %903 = vmatprep.subr.mxu0 %v277
    %904 = vmatpush1.msra.mxu0 %v276
    %905 = vmatprep.subr.mxu0 0.0
    %906 = vmatpush1.msra.mxu0 0.0
    %907 = vmatprep.subr.mxu0 0.0
    %908 = vmatpush1.msra.mxu0 0.0
    %909 = vmatprep.subr.mxu0 0.0
    %910 = vmatpush1.msra.mxu0 0.0
    %911 = vmatprep.subr.mxu0 0.0
    %912 = vmatpush1.msra.mxu0 0.0
    %913 = vmatprep.subr.mxu0 0.0
    %914 = vmatpush1.msra.mxu0 0.0
    %915 = vmatprep.subr.mxu0 0.0
    %916 = vmatpush1.msra.mxu0 0.0
    %917 = vmatprep.subr.mxu0 0.0
    %918 = vmatpush1.msra.mxu0 0.0
    %919 = vmatprep.subr.mxu0 0.0
    %920 = vmatpush1.msra.mxu0 0.0
    %921 = vmatprep.subr.mxu0 0.0
    %922 = vmatpush1.msra.mxu0 0.0
    %923 = vmatprep.subr.mxu0 0.0
    %924 = vmatpush1.msra.mxu0 0.0
    %925 = vmatprep.subr.mxu0 0.0
    %926 = vmatpush1.msra.mxu0 0.0
    %927 = vmatprep.subr.mxu0 0.0
    %928 = vmatpush1.msra.mxu0 0.0
    %929 = vmatprep.subr.mxu0 0.0
    %930 = vmatpush1.msra.mxu0 0.0
    %931 = vmatprep.subr.mxu0 0.0
    %932 = vmatpush1.msra.mxu0 0.0
    %933 = vmatprep.subr.mxu0 0.0
    %934 = vmatpush1.msra.mxu0 0.0
    %935 = vmatprep.subr.mxu0 0.0
    %936 = vmatpush1.msra.mxu0 0.0
    %937 = vmatprep.subr.mxu0 0.0
    %938 = vmatpush1.msra.mxu0 0.0
    %939 = vmatprep.subr.mxu0 0.0
    %940 = vmatpush1.msra.mxu0 0.0
    %941 = vmatprep.subr.mxu0 0.0
    %942 = vmatpush1.msra.mxu0 0.0
    %943 = vmatprep.subr.mxu0 0.0
    %944 = vmatpush1.msra.mxu0 0.0
    %945 = vmatprep.subr.mxu0 0.0
    %946 = vmatpush1.msra.mxu0 0.0
    %947 = vmatprep.subr.mxu0 0.0
    %948 = vmatpush1.msra.mxu0 0.0
    %949 = vmatprep.subr.mxu0 0.0
    %950 = vmatpush1.msra.mxu0 0.0
    %951 = vmatprep.subr.mxu0 0.0
    %952 = vmatpush1.msra.mxu0 0.0
    %953 = vmatprep.mubr.f32.mxu0 0.0
    %954 = vmatmul.mubr.f32.gmra.mrb[0].mxu0 %v887
    %v955 = vpop.f32.mrb[0].mxu0
    %v956 = vadd.f32 0.0, %v955
    %v957 = vpop.f32.mrb[0].mxu0
    %v958 = vadd.f32 0.0, %v957
    %959 = vdwg.mxu0
    %v960 = vadd.f32 %v885, %v956
    %v961 = vadd.f32 %v886, %v958
    %v962 = vmul.f32 %v960, %v101
    %v963 = vmul.f32 %v961, %v102
    %v964 = vtanh.pop %v962
    %v965 = vtanh.pop %v963
    %v966 = vmul.f32 %v964, 0.5
    %v967 = vadd.f32 %v966, 0.5
    %v968 = vmul.f32 %v965, 0.5
    %v969 = vadd.f32 %v968, 0.5
    %v970 = vmul.f32 %v967, %v876
    %v971 = vmul.f32 %v967, %v965
    %973 = vrot.lane.b32.xlu0 %v971, 64
    %v974 = vpop.permute.xlu0 %973
    %v976 = vadd.f32 %v970, %v974
    %v977 = vtanh.pop %v976
    %v978 = vmul.f32 %v969, %v977
    %980 = vrot.lane.b32.xlu0 %v978, 64
    %v981 = vpop.permute.xlu0 %980
    %983 = vst.msk [vmem:[#allocation2 + $0x30] sm:$0x3] %vm381, %v981
    %984 = vst.msk [vmem:[#allocation2 + $0x6] sm:$0xc] %vm383, %v981
    %v985 = vadd.f32 %v257, %v261
    %v986 = vadd.f32 %v259, %v279
    %v987 = vsel %vm283, %v981, 0
    %989 = vmatprep.subr.mxu0 %v263
    %990 = vmatpush1.msra.mxu0 %v262
    %991 = vmatprep.subr.mxu0 %v265
    %992 = vmatpush1.msra.mxu0 %v264
    %993 = vmatprep.subr.mxu0 %v267
    %994 = vmatpush1.msra.mxu0 %v266
    %995 = vmatprep.subr.mxu0 %v269
    %996 = vmatpush1.msra.mxu0 %v268
    %997 = vmatprep.subr.mxu0 %v271
    %998 = vmatpush1.msra.mxu0 %v270
    %999 = vmatprep.subr.mxu0 %v273
    %1000 = vmatpush1.msra.mxu0 %v272
    %1001 = vmatprep.subr.mxu0 %v275
    %1002 = vmatpush1.msra.mxu0 %v274
    %1003 = vmatprep.subr.mxu0 %v277
    %1004 = vmatpush1.msra.mxu0 %v276
    %1005 = vmatprep.subr.mxu0 0.0
    %1006 = vmatpush1.msra.mxu0 0.0
    %1007 = vmatprep.subr.mxu0 0.0
    %1008 = vmatpush1.msra.mxu0 0.0
    %1009 = vmatprep.subr.mxu0 0.0
    %1010 = vmatpush1.msra.mxu0 0.0
    %1011 = vmatprep.subr.mxu0 0.0
    %1012 = vmatpush1.msra.mxu0 0.0
    %1013 = vmatprep.subr.mxu0 0.0
    %1014 = vmatpush1.msra.mxu0 0.0
    %1015 = vmatprep.subr.mxu0 0.0
    %1016 = vmatpush1.msra.mxu0 0.0
    %1017 = vmatprep.subr.mxu0 0.0
    %1018 = vmatpush1.msra.mxu0 0.0
    %1019 = vmatprep.subr.mxu0 0.0
    %1020 = vmatpush1.msra.mxu0 0.0
    %1021 = vmatprep.subr.mxu0 0.0
    %1022 = vmatpush1.msra.mxu0 0.0
    %1023 = vmatprep.subr.mxu0 0.0
    %1024 = vmatpush1.msra.mxu0 0.0
    %1025 = vmatprep.subr.mxu0 0.0
    %1026 = vmatpush1.msra.mxu0 0.0
    %1027 = vmatprep.subr.mxu0 0.0
    %1028 = vmatpush1.msra.mxu0 0.0
    %1029 = vmatprep.subr.mxu0 0.0
    %1030 = vmatpush1.msra.mxu0 0.0
    %1031 = vmatprep.subr.mxu0 0.0
    %1032 = vmatpush1.msra.mxu0 0.0
    %1033 = vmatprep.subr.mxu0 0.0
    %1034 = vmatpush1.msra.mxu0 0.0
    %1035 = vmatprep.subr.mxu0 0.0
    %1036 = vmatpush1.msra.mxu0 0.0
    %1037 = vmatprep.subr.mxu0 0.0
    %1038 = vmatpush1.msra.mxu0 0.0
    %1039 = vmatprep.subr.mxu0 0.0
    %1040 = vmatpush1.msra.mxu0 0.0
    %1041 = vmatprep.subr.mxu0 0.0
    %1042 = vmatpush1.msra.mxu0 0.0
    %1043 = vmatprep.subr.mxu0 0.0
    %1044 = vmatpush1.msra.mxu0 0.0
    %1045 = vmatprep.subr.mxu0 0.0
    %1046 = vmatpush1.msra.mxu0 0.0
    %1047 = vmatprep.subr.mxu0 0.0
    %1048 = vmatpush1.msra.mxu0 0.0
    %1049 = vmatprep.subr.mxu0 0.0
    %1050 = vmatpush1.msra.mxu0 0.0
    %1051 = vmatprep.subr.mxu0 0.0
    %1052 = vmatpush1.msra.mxu0 0.0
    %1053 = vmatprep.mubr.f32.mxu0 0.0
    %1054 = vmatmul.mubr.f32.gmra.mrb[0].mxu0 %v987
    %v1055 = vpop.f32.mrb[0].mxu0
    %v1056 = vadd.f32 0.0, %v1055
    %v1057 = vpop.f32.mrb[0].mxu0
    %v1058 = vadd.f32 0.0, %v1057
    %1059 = vdwg.mxu0
    %v1060 = vadd.f32 %v985, %v1056
    %v1061 = vadd.f32 %v986, %v1058
    %v1062 = vmul.f32 %v1060, %v101
    %v1063 = vmul.f32 %v1061, %v102
    %v1064 = vtanh.pop %v1062
    %v1065 = vtanh.pop %v1063
    %v1066 = vmul.f32 %v1064, 0.5
    %v1067 = vadd.f32 %v1066, 0.5
    %v1068 = vmul.f32 %v1065, 0.5
    %v1069 = vadd.f32 %v1068, 0.5
    %v1070 = vmul.f32 %v1067, %v976
    %v1071 = vmul.f32 %v1067, %v1065
    %1073 = vrot.lane.b32.xlu0 %v1071, 64
    %v1074 = vpop.permute.xlu0 %1073
    %v1076 = vadd.f32 %v1070, %v1074
    %v1077 = vtanh.pop %v1076
    %v1078 = vmul.f32 %v1069, %v1077
    %1080 = vrot.lane.b32.xlu0 %v1078, 64
    %v1081 = vpop.permute.xlu0 %1080
    %1083 = vst.msk [vmem:[#allocation2 + $0x38] sm:$0x3] %vm381, %v1081
    %1084 = vst.msk [vmem:[#allocation2 - $0x2] sm:$0xc] %vm383, %v1081
    %v1085 = vld [vmem:[#allocation2] sm:$0xff]
    %v1086 = vld [vmem:[#allocation2 + $0x8] sm:$0xff]
    %v1087 = vld [vmem:[#allocation2 + $0x10] sm:$0xff]
    %v1088 = vld [vmem:[#allocation2 + $0x18] sm:$0xff]
    %v1089 = vld [vmem:[#allocation2 + $0x20] sm:$0xff]
    %v1090 = vld [vmem:[#allocation2 + $0x28] sm:$0xff]
    %v1091 = vld [vmem:[#allocation2 + $0x30] sm:$0xff]
    %v1092 = vld [vmem:[#allocation2 + $0x38] sm:$0xff]
    %v1093 = vld [vmem:[#allocation8] sm:$0xff]
    %v1094 = vld [vmem:[#allocation8 + $0x8] sm:$0xff]
    %v1095 = vld [vmem:[#allocation8 + $0x10] sm:$0xff]
    %v1096 = vld [vmem:[#allocation8 + $0x18] sm:$0xff]
    %v1097 = vld [vmem:[#allocation8 + $0x20] sm:$0xff]
    %v1098 = vld [vmem:[#allocation8 + $0x28] sm:$0xff]
    %v1099 = vld [vmem:[#allocation8 + $0x30] sm:$0xff]
    %v1100 = vld [vmem:[#allocation8 + $0x38] sm:$0xff]
    %v1101 = vld [vmem:[#allocation9] sm:$0xff]
    %v1102 = vld [vmem:[#allocation9 + $0x8] sm:$0xff]
    %v1103 = vld [vmem:[#allocation9 + $0x10] sm:$0xff]
    %v1104 = vld [vmem:[#allocation9 + $0x18] sm:$0xff]
    %v1105 = vld [vmem:[%s5] sm:$0x1]
    %v1107 = vlaneseq
    %v1108 = vshrl.u32 %v1107, 7
    %v1109 = vsub.s32 0, %v1108
    %v1110 = vrot.slane %v1105, %v1109
    %v1113 = vsel %vm283, %v1085, 0
    %v1116 = vsel %vm283, %v1086, 0
    %v1119 = vsel %vm283, %v1087, 0
    %v1122 = vsel %vm283, %v1088, 0
    %v1125 = vsel %vm283, %v1089, 0
    %v1128 = vsel %vm283, %v1090, 0
    %v1131 = vsel %vm283, %v1091, 0
    %v1134 = vsel %vm283, %v1092, 0
    %1136 = vmatprep.subr.mxu0 0.0
    %1137 = vmatpush1.msra.mxu0 %v1093
    %1138 = vmatprep.subr.mxu0 0.0
    %1139 = vmatpush1.msra.mxu0 %v1094
    %1140 = vmatprep.subr.mxu0 0.0
    %1141 = vmatpush1.msra.mxu0 %v1095
    %1142 = vmatprep.subr.mxu0 0.0
    %1143 = vmatpush1.msra.mxu0 %v1096
    %1144 = vmatprep.subr.mxu0 0.0
    %1145 = vmatpush1.msra.mxu0 %v1097
    %1146 = vmatprep.subr.mxu0 0.0
    %1147 = vmatpush1.msra.mxu0 %v1098
    %1148 = vmatprep.subr.mxu0 0.0
    %1149 = vmatpush1.msra.mxu0 %v1099
    %1150 = vmatprep.subr.mxu0 0.0
    %1151 = vmatpush1.msra.mxu0 %v1100
    %1152 = vmatprep.subr.mxu0 0.0
    %1153 = vmatpush1.msra.mxu0 0.0
    %1154 = vmatprep.subr.mxu0 0.0
    %1155 = vmatpush1.msra.mxu0 0.0
    %1156 = vmatprep.subr.mxu0 0.0
    %1157 = vmatpush1.msra.mxu0 0.0
    %1158 = vmatprep.subr.mxu0 0.0
    %1159 = vmatpush1.msra.mxu0 0.0
    %1160 = vmatprep.subr.mxu0 0.0
    %1161 = vmatpush1.msra.mxu0 0.0
    %1162 = vmatprep.subr.mxu0 0.0
    %1163 = vmatpush1.msra.mxu0 0.0
    %1164 = vmatprep.subr.mxu0 0.0
    %1165 = vmatpush1.msra.mxu0 0.0
    %1166 = vmatprep.subr.mxu0 0.0
    %1167 = vmatpush1.msra.mxu0 0.0
    %1168 = vmatprep.subr.mxu0 0.0
    %1169 = vmatpush1.msra.mxu0 0.0
    %1170 = vmatprep.subr.mxu0 0.0
    %1171 = vmatpush1.msra.mxu0 0.0
    %1172 = vmatprep.subr.mxu0 0.0
    %1173 = vmatpush1.msra.mxu0 0.0
    %1174 = vmatprep.subr.mxu0 0.0
    %1175 = vmatpush1.msra.mxu0 0.0
    %1176 = vmatprep.subr.mxu0 0.0
    %1177 = vmatpush1.msra.mxu0 0.0
    %1178 = vmatprep.subr.mxu0 0.0
    %1179 = vmatpush1.msra.mxu0 0.0
    %1180 = vmatprep.subr.mxu0 0.0
    %1181 = vmatpush1.msra.mxu0 0.0
    %1182 = vmatprep.subr.mxu0 0.0
    %1183 = vmatpush1.msra.mxu0 0.0
    %1184 = vmatprep.subr.mxu0 0.0
    %1185 = vmatpush1.msra.mxu0 0.0
    %1186 = vmatprep.subr.mxu0 0.0
    %1187 = vmatpush1.msra.mxu0 0.0
    %1188 = vmatprep.subr.mxu0 0.0
    %1189 = vmatpush1.msra.mxu0 0.0
    %1190 = vmatprep.subr.mxu0 0.0
    %1191 = vmatpush1.msra.mxu0 0.0
    %1192 = vmatprep.subr.mxu0 0.0
    %1193 = vmatpush1.msra.mxu0 0.0
    %1194 = vmatprep.subr.mxu0 0.0
    %1195 = vmatpush1.msra.mxu0 0.0
    %1196 = vmatprep.subr.mxu0 0.0
    %1197 = vmatpush1.msra.mxu0 0.0
    %1198 = vmatprep.subr.mxu0 0.0
    %1199 = vmatpush1.msra.mxu0 0.0
    %1200 = vmatprep.mubr.f32.mxu0 0.0
    %1201 = vmatmul.mubr.f32.gmra.mrb[0].mxu0 %v1113
    %v1202 = vpop.f32.mrb[0].mxu0
    %v1203 = vadd.f32 %v1110, %v1202
    %v1204 = vpop.f32.mrb[0].mxu0
    %1205 = vmatprep.mubr.f32.mxu0 0.0
    %1206 = vmatmul.mubr.f32.gmra.mrb[0].mxu0 %v1116
    %v1207 = vpop.f32.mrb[0].mxu0
    %v1208 = vadd.f32 %v1110, %v1207
    %v1209 = vpop.f32.mrb[0].mxu0
    %1210 = vmatprep.mubr.f32.mxu0 0.0
    %1211 = vmatmul.mubr.f32.gmra.mrb[0].mxu0 %v1119
    %v1212 = vpop.f32.mrb[0].mxu0
    %v1213 = vadd.f32 %v1110, %v1212
    %v1214 = vpop.f32.mrb[0].mxu0
    %1215 = vmatprep.mubr.f32.mxu0 0.0
    %1216 = vmatmul.mubr.f32.gmra.mrb[0].mxu0 %v1122
    %v1217 = vpop.f32.mrb[0].mxu0
    %v1218 = vadd.f32 %v1110, %v1217
    %v1219 = vpop.f32.mrb[0].mxu0
    %1220 = vmatprep.mubr.f32.mxu0 0.0
    %1221 = vmatmul.mubr.f32.gmra.mrb[0].mxu0 %v1125
    %v1222 = vpop.f32.mrb[0].mxu0
    %v1223 = vadd.f32 %v1110, %v1222
    %v1224 = vpop.f32.mrb[0].mxu0
    %1225 = vmatprep.mubr.f32.mxu0 0.0
    %1226 = vmatmul.mubr.f32.gmra.mrb[0].mxu0 %v1128
    %v1227 = vpop.f32.mrb[0].mxu0
    %v1228 = vadd.f32 %v1110, %v1227
    %v1229 = vpop.f32.mrb[0].mxu0
    %1230 = vmatprep.mubr.f32.mxu0 0.0
    %1231 = vmatmul.mubr.f32.gmra.mrb[0].mxu0 %v1131
    %v1232 = vpop.f32.mrb[0].mxu0
    %v1233 = vadd.f32 %v1110, %v1232
    %v1234 = vpop.f32.mrb[0].mxu0
    %1235 = vmatprep.mubr.f32.mxu0 0.0
    %1236 = vmatmul.mubr.f32.gmra.mrb[0].mxu0 %v1134
    %v1237 = vpop.f32.mrb[0].mxu0
    %v1238 = vadd.f32 %v1110, %v1237
    %v1239 = vpop.f32.mrb[0].mxu0
    %1240 = vdwg.mxu0
    %v1241 = vsel %vm123, 0.0, 0
    %1243 = vmatprep.subr.mxu0 0.0
    %1244 = vmatpush1.msra.mxu0 %v1101
    %1245 = vmatprep.subr.mxu0 0.0
    %1246 = vmatpush1.msra.mxu0 %v1102
    %1247 = vmatprep.subr.mxu0 0.0
    %1248 = vmatpush1.msra.mxu0 %v1103
    %1249 = vmatprep.subr.mxu0 0.0
    %1250 = vmatpush1.msra.mxu0 %v1104
    %1251 = vmatprep.subr.mxu0 0.0
    %1252 = vmatpush1.msra.mxu0 0.0
    %1253 = vmatprep.subr.mxu0 0.0
    %1254 = vmatpush1.msra.mxu0 0.0
    %1255 = vmatprep.subr.mxu0 0.0
    %1256 = vmatpush1.msra.mxu0 0.0
    %1257 = vmatprep.subr.mxu0 0.0
    %1258 = vmatpush1.msra.mxu0 0.0
    %1259 = vmatprep.subr.mxu0 0.0
    %1260 = vmatpush1.msra.mxu0 0.0
    %1261 = vmatprep.subr.mxu0 0.0
    %1262 = vmatpush1.msra.mxu0 0.0
    %1263 = vmatprep.subr.mxu0 0.0
    %1264 = vmatpush1.msra.mxu0 0.0
    %1265 = vmatprep.subr.mxu0 0.0
    %1266 = vmatpush1.msra.mxu0 0.0
    %1267 = vmatprep.subr.mxu0 0.0
    %1268 = vmatpush1.msra.mxu0 0.0
    %1269 = vmatprep.subr.mxu0 0.0
    %1270 = vmatpush1.msra.mxu0 0.0
    %1271 = vmatprep.subr.mxu0 0.0
    %1272 = vmatpush1.msra.mxu0 0.0
    %1273 = vmatprep.subr.mxu0 0.0
    %1274 = vmatpush1.msra.mxu0 0.0
    %1275 = vmatprep.subr.mxu0 0.0
    %1276 = vmatpush1.msra.mxu0 0.0
    %1277 = vmatprep.subr.mxu0 0.0
    %1278 = vmatpush1.msra.mxu0 0.0
    %1279 = vmatprep.subr.mxu0 0.0
    %1280 = vmatpush1.msra.mxu0 0.0
    %1281 = vmatprep.subr.mxu0 0.0
    %1282 = vmatpush1.msra.mxu0 0.0
    %1283 = vmatprep.subr.mxu0 0.0
    %1284 = vmatpush1.msra.mxu0 0.0
    %1285 = vmatprep.subr.mxu0 0.0
    %1286 = vmatpush1.msra.mxu0 0.0
    %1287 = vmatprep.subr.mxu0 0.0
    %1288 = vmatpush1.msra.mxu0 0.0
    %1289 = vmatprep.subr.mxu0 0.0
    %1290 = vmatpush1.msra.mxu0 0.0
    %1291 = vmatprep.subr.mxu0 0.0
    %1292 = vmatpush1.msra.mxu0 0.0
    %1293 = vmatprep.subr.mxu0 0.0
    %1294 = vmatpush1.msra.mxu0 0.0
    %1295 = vmatprep.subr.mxu0 0.0
    %1296 = vmatpush1.msra.mxu0 0.0
    %1297 = vmatprep.subr.mxu0 0.0
    %1298 = vmatpush1.msra.mxu0 0.0
    %1299 = vmatprep.subr.mxu0 0.0
    %1300 = vmatpush1.msra.mxu0 0.0
    %1301 = vmatprep.subr.mxu0 0.0
    %1302 = vmatpush1.msra.mxu0 0.0
    %1303 = vmatprep.subr.mxu0 0.0
    %1304 = vmatpush1.msra.mxu0 0.0
    %1305 = vmatprep.subr.mxu0 0.0
    %1306 = vmatpush1.msra.mxu0 0.0
    %1307 = vmatprep.mubr.f32.mxu0 0.0
    %1308 = vmatmul.mubr.f32.gmra.mrb[0].mxu0 %v1241
    %v1309 = vpop.f32.mrb[0].mxu0
    %v1310 = vadd.f32 0.0, %v1309
    %v1311 = vpop.f32.mrb[0].mxu0
    %1312 = vdwg.mxu0
    %v1313 = vadd.f32 %v1203, %v1310
    %v1314 = vmul.f32 %v1313, %v106
    %v1315 = vtanh.pop %v1314
    %v1316 = vmul.f32 %v1315, 0.5
    %v1317 = vadd.f32 %v1316, 0.5
    %v1318 = vmul.f32 %v1317, 0.0
    %1320 = vrot.lane.b32.xlu0 %v1315, 64
    %v1321 = vpop.permute.xlu0 %1320
    %v1323 = vmul.f32 %v1317, %v1321
    %1325 = vrot.lane.b32.xlu0 %v1323, 32
    %v1326 = vpop.permute.xlu0 %1325
    %v1328 = vadd.f32 %v1318, %v1326
    %v1329 = vtanh.pop %v1328
    %1331 = vrot.lane.b32.xlu0 %v1329, 64
    %v1332 = vpop.permute.xlu0 %1331
    %v1334 = vmul.f32 %v1317, %v1332
    %1336 = vrot.lane.b32.xlu0 %v1334, 32
    %v1337 = vpop.permute.xlu0 %1336
    %v1338 = vsel %vm123, %v1337, 0
    %1340 = vmatprep.subr.mxu0 0.0
    %1341 = vmatpush1.msra.mxu0 %v1101
    %1342 = vmatprep.subr.mxu0 0.0
    %1343 = vmatpush1.msra.mxu0 %v1102
    %1344 = vmatprep.subr.mxu0 0.0
    %1345 = vmatpush1.msra.mxu0 %v1103
    %1346 = vmatprep.subr.mxu0 0.0
    %1347 = vmatpush1.msra.mxu0 %v1104
    %1348 = vmatprep.subr.mxu0 0.0
    %1349 = vmatpush1.msra.mxu0 0.0
    %1350 = vmatprep.subr.mxu0 0.0
    %1351 = vmatpush1.msra.mxu0 0.0
    %1352 = vmatprep.subr.mxu0 0.0
    %1353 = vmatpush1.msra.mxu0 0.0
    %1354 = vmatprep.subr.mxu0 0.0
    %1355 = vmatpush1.msra.mxu0 0.0
    %1356 = vmatprep.subr.mxu0 0.0
    %1357 = vmatpush1.msra.mxu0 0.0
    %1358 = vmatprep.subr.mxu0 0.0
    %1359 = vmatpush1.msra.mxu0 0.0
    %1360 = vmatprep.subr.mxu0 0.0
    %1361 = vmatpush1.msra.mxu0 0.0
    %1362 = vmatprep.subr.mxu0 0.0
    %1363 = vmatpush1.msra.mxu0 0.0
    %1364 = vmatprep.subr.mxu0 0.0
    %1365 = vmatpush1.msra.mxu0 0.0
    %1366 = vmatprep.subr.mxu0 0.0
    %1367 = vmatpush1.msra.mxu0 0.0
    %1368 = vmatprep.subr.mxu0 0.0
    %1369 = vmatpush1.msra.mxu0 0.0
    %1370 = vmatprep.subr.mxu0 0.0
    %1371 = vmatpush1.msra.mxu0 0.0
    %1372 = vmatprep.subr.mxu0 0.0
    %1373 = vmatpush1.msra.mxu0 0.0
    %1374 = vmatprep.subr.mxu0 0.0
    %1375 = vmatpush1.msra.mxu0 0.0
    %1376 = vmatprep.subr.mxu0 0.0
    %1377 = vmatpush1.msra.mxu0 0.0
    %1378 = vmatprep.subr.mxu0 0.0
    %1379 = vmatpush1.msra.mxu0 0.0
    %1380 = vmatprep.subr.mxu0 0.0
    %1381 = vmatpush1.msra.mxu0 0.0
    %1382 = vmatprep.subr.mxu0 0.0
    %1383 = vmatpush1.msra.mxu0 0.0
    %1384 = vmatprep.subr.mxu0 0.0
    %1385 = vmatpush1.msra.mxu0 0.0
    %1386 = vmatprep.subr.mxu0 0.0
    %1387 = vmatpush1.msra.mxu0 0.0
    %1388 = vmatprep.subr.mxu0 0.0
    %1389 = vmatpush1.msra.mxu0 0.0
    %1390 = vmatprep.subr.mxu0 0.0
    %1391 = vmatpush1.msra.mxu0 0.0
    %1392 = vmatprep.subr.mxu0 0.0
    %1393 = vmatpush1.msra.mxu0 0.0
    %1394 = vmatprep.subr.mxu0 0.0
    %1395 = vmatpush1.msra.mxu0 0.0
    %1396 = vmatprep.subr.mxu0 0.0
    %1397 = vmatpush1.msra.mxu0 0.0
    %1398 = vmatprep.subr.mxu0 0.0
    %1399 = vmatpush1.msra.mxu0 0.0
    %1400 = vmatprep.subr.mxu0 0.0
    %1401 = vmatpush1.msra.mxu0 0.0
    %1402 = vmatprep.subr.mxu0 0.0
    %1403 = vmatpush1.msra.mxu0 0.0
    %1404 = vmatprep.mubr.f32.mxu0 0.0
    %1405 = vmatmul.mubr.f32.gmra.mrb[0].mxu0 %v1338
    %v1406 = vpop.f32.mrb[0].mxu0
    %v1407 = vadd.f32 0.0, %v1406
    %v1408 = vpop.f32.mrb[0].mxu0
    %1409 = vdwg.mxu0
    %v1410 = vadd.f32 %v1208, %v1407
    %v1411 = vmul.f32 %v1410, %v106
    %v1412 = vtanh.pop %v1411
    %v1413 = vmul.f32 %v1412, 0.5
    %v1414 = vadd.f32 %v1413, 0.5
    %v1415 = vmul.f32 %v1414, %v1328
    %1417 = vrot.lane.b32.xlu0 %v1412, 64
    %v1418 = vpop.permute.xlu0 %1417
    %v1420 = vmul.f32 %v1414, %v1418
    %1422 = vrot.lane.b32.xlu0 %v1420, 32
    %v1423 = vpop.permute.xlu0 %1422
    %v1425 = vadd.f32 %v1415, %v1423
    %v1426 = vtanh.pop %v1425
    %1428 = vrot.lane.b32.xlu0 %v1426, 64
    %v1429 = vpop.permute.xlu0 %1428
    %v1431 = vmul.f32 %v1414, %v1429
    %1433 = vrot.lane.b32.xlu0 %v1431, 32
    %v1434 = vpop.permute.xlu0 %1433
    %v1435 = vsel %vm123, %v1434, 0
    %1437 = vmatprep.subr.mxu0 0.0
    %1438 = vmatpush1.msra.mxu0 %v1101
    %1439 = vmatprep.subr.mxu0 0.0
    %1440 = vmatpush1.msra.mxu0 %v1102
    %1441 = vmatprep.subr.mxu0 0.0
    %1442 = vmatpush1.msra.mxu0 %v1103
    %1443 = vmatprep.subr.mxu0 0.0
    %1444 = vmatpush1.msra.mxu0 %v1104
    %1445 = vmatprep.subr.mxu0 0.0
    %1446 = vmatpush1.msra.mxu0 0.0
    %1447 = vmatprep.subr.mxu0 0.0
    %1448 = vmatpush1.msra.mxu0 0.0
    %1449 = vmatprep.subr.mxu0 0.0
    %1450 = vmatpush1.msra.mxu0 0.0
    %1451 = vmatprep.subr.mxu0 0.0
    %1452 = vmatpush1.msra.mxu0 0.0
    %1453 = vmatprep.subr.mxu0 0.0
    %1454 = vmatpush1.msra.mxu0 0.0
    %1455 = vmatprep.subr.mxu0 0.0
    %1456 = vmatpush1.msra.mxu0 0.0
    %1457 = vmatprep.subr.mxu0 0.0
    %1458 = vmatpush1.msra.mxu0 0.0
    %1459 = vmatprep.subr.mxu0 0.0
    %1460 = vmatpush1.msra.mxu0 0.0
    %1461 = vmatprep.subr.mxu0 0.0
    %1462 = vmatpush1.msra.mxu0 0.0
    %1463 = vmatprep.subr.mxu0 0.0
    %1464 = vmatpush1.msra.mxu0 0.0
    %1465 = vmatprep.subr.mxu0 0.0
    %1466 = vmatpush1.msra.mxu0 0.0
    %1467 = vmatprep.subr.mxu0 0.0
    %1468 = vmatpush1.msra.mxu0 0.0
    %1469 = vmatprep.subr.mxu0 0.0
    %1470 = vmatpush1.msra.mxu0 0.0
    %1471 = vmatprep.subr.mxu0 0.0
    %1472 = vmatpush1.msra.mxu0 0.0
    %1473 = vmatprep.subr.mxu0 0.0
    %1474 = vmatpush1.msra.mxu0 0.0
    %1475 = vmatprep.subr.mxu0 0.0
    %1476 = vmatpush1.msra.mxu0 0.0
    %1477 = vmatprep.subr.mxu0 0.0
    %1478 = vmatpush1.msra.mxu0 0.0
    %1479 = vmatprep.subr.mxu0 0.0
    %1480 = vmatpush1.msra.mxu0 0.0
    %1481 = vmatprep.subr.mxu0 0.0
    %1482 = vmatpush1.msra.mxu0 0.0
    %1483 = vmatprep.subr.mxu0 0.0
    %1484 = vmatpush1.msra.mxu0 0.0
    %1485 = vmatprep.subr.mxu0 0.0
    %1486 = vmatpush1.msra.mxu0 0.0
    %1487 = vmatprep.subr.mxu0 0.0
    %1488 = vmatpush1.msra.mxu0 0.0
    %1489 = vmatprep.subr.mxu0 0.0
    %1490 = vmatpush1.msra.mxu0 0.0
    %1491 = vmatprep.subr.mxu0 0.0
    %1492 = vmatpush1.msra.mxu0 0.0
    %1493 = vmatprep.subr.mxu0 0.0
    %1494 = vmatpush1.msra.mxu0 0.0
    %1495 = vmatprep.subr.mxu0 0.0
    %1496 = vmatpush1.msra.mxu0 0.0
    %1497 = vmatprep.subr.mxu0 0.0
    %1498 = vmatpush1.msra.mxu0 0.0
    %1499 = vmatprep.subr.mxu0 0.0
    %1500 = vmatpush1.msra.mxu0 0.0
    %1501 = vmatprep.mubr.f32.mxu0 0.0
    %1502 = vmatmul.mubr.f32.gmra.mrb[0].mxu0 %v1435
    %v1503 = vpop.f32.mrb[0].mxu0
    %v1504 = vadd.f32 0.0, %v1503
    %v1505 = vpop.f32.mrb[0].mxu0
    %1506 = vdwg.mxu0
    %v1507 = vadd.f32 %v1213, %v1504
    %v1508 = vmul.f32 %v1507, %v106
    %v1509 = vtanh.pop %v1508
    %v1510 = vmul.f32 %v1509, 0.5
    %v1511 = vadd.f32 %v1510, 0.5
    %v1512 = vmul.f32 %v1511, %v1425
    %1514 = vrot.lane.b32.xlu0 %v1509, 64
    %v1515 = vpop.permute.xlu0 %1514
    %v1517 = vmul.f32 %v1511, %v1515
    %1519 = vrot.lane.b32.xlu0 %v1517, 32
    %v1520 = vpop.permute.xlu0 %1519
    %v1522 = vadd.f32 %v1512, %v1520
    %v1523 = vtanh.pop %v1522
    %1525 = vrot.lane.b32.xlu0 %v1523, 64
    %v1526 = vpop.permute.xlu0 %1525
    %v1528 = vmul.f32 %v1511, %v1526
    %1530 = vrot.lane.b32.xlu0 %v1528, 32
    %v1531 = vpop.permute.xlu0 %1530
    %v1532 = vsel %vm123, %v1531, 0
    %1534 = vmatprep.subr.mxu0 0.0
    %1535 = vmatpush1.msra.mxu0 %v1101
    %1536 = vmatprep.subr.mxu0 0.0
    %1537 = vmatpush1.msra.mxu0 %v1102
    %1538 = vmatprep.subr.mxu0 0.0
    %1539 = vmatpush1.msra.mxu0 %v1103
    %1540 = vmatprep.subr.mxu0 0.0
    %1541 = vmatpush1.msra.mxu0 %v1104
    %1542 = vmatprep.subr.mxu0 0.0
    %1543 = vmatpush1.msra.mxu0 0.0
    %1544 = vmatprep.subr.mxu0 0.0
    %1545 = vmatpush1.msra.mxu0 0.0
    %1546 = vmatprep.subr.mxu0 0.0
    %1547 = vmatpush1.msra.mxu0 0.0
    %1548 = vmatprep.subr.mxu0 0.0
    %1549 = vmatpush1.msra.mxu0 0.0
    %1550 = vmatprep.subr.mxu0 0.0
    %1551 = vmatpush1.msra.mxu0 0.0
    %1552 = vmatprep.subr.mxu0 0.0
    %1553 = vmatpush1.msra.mxu0 0.0
    %1554 = vmatprep.subr.mxu0 0.0
    %1555 = vmatpush1.msra.mxu0 0.0
    %1556 = vmatprep.subr.mxu0 0.0
    %1557 = vmatpush1.msra.mxu0 0.0
    %1558 = vmatprep.subr.mxu0 0.0
    %1559 = vmatpush1.msra.mxu0 0.0
    %1560 = vmatprep.subr.mxu0 0.0
    %1561 = vmatpush1.msra.mxu0 0.0
    %1562 = vmatprep.subr.mxu0 0.0
    %1563 = vmatpush1.msra.mxu0 0.0
    %1564 = vmatprep.subr.mxu0 0.0
    %1565 = vmatpush1.msra.mxu0 0.0
    %1566 = vmatprep.subr.mxu0 0.0
    %1567 = vmatpush1.msra.mxu0 0.0
    %1568 = vmatprep.subr.mxu0 0.0
    %1569 = vmatpush1.msra.mxu0 0.0
    %1570 = vmatprep.subr.mxu0 0.0
    %1571 = vmatpush1.msra.mxu0 0.0
    %1572 = vmatprep.subr.mxu0 0.0
    %1573 = vmatpush1.msra.mxu0 0.0
    %1574 = vmatprep.subr.mxu0 0.0
    %1575 = vmatpush1.msra.mxu0 0.0
    %1576 = vmatprep.subr.mxu0 0.0
    %1577 = vmatpush1.msra.mxu0 0.0
    %1578 = vmatprep.subr.mxu0 0.0
    %1579 = vmatpush1.msra.mxu0 0.0
    %1580 = vmatprep.subr.mxu0 0.0
    %1581 = vmatpush1.msra.mxu0 0.0
    %1582 = vmatprep.subr.mxu0 0.0
    %1583 = vmatpush1.msra.mxu0 0.0
    %1584 = vmatprep.subr.mxu0 0.0
    %1585 = vmatpush1.msra.mxu0 0.0
    %1586 = vmatprep.subr.mxu0 0.0
    %1587 = vmatpush1.msra.mxu0 0.0
    %1588 = vmatprep.subr.mxu0 0.0
    %1589 = vmatpush1.msra.mxu0 0.0
    %1590 = vmatprep.subr.mxu0 0.0
    %1591 = vmatpush1.msra.mxu0 0.0
    %1592 = vmatprep.subr.mxu0 0.0
    %1593 = vmatpush1.msra.mxu0 0.0
    %1594 = vmatprep.subr.mxu0 0.0
    %1595 = vmatpush1.msra.mxu0 0.0
    %1596 = vmatprep.subr.mxu0 0.0
    %1597 = vmatpush1.msra.mxu0 0.0
    %1598 = vmatprep.mubr.f32.mxu0 0.0
    %1599 = vmatmul.mubr.f32.gmra.mrb[0].mxu0 %v1532
    %v1600 = vpop.f32.mrb[0].mxu0
    %v1601 = vadd.f32 0.0, %v1600
    %v1602 = vpop.f32.mrb[0].mxu0
    %1603 = vdwg.mxu0
    %v1604 = vadd.f32 %v1218, %v1601
    %v1605 = vmul.f32 %v1604, %v106
    %v1606 = vtanh.pop %v1605
    %v1607 = vmul.f32 %v1606, 0.5
    %v1608 = vadd.f32 %v1607, 0.5
    %v1609 = vmul.f32 %v1608, %v1522
    %1611 = vrot.lane.b32.xlu0 %v1606, 64
    %v1612 = vpop.permute.xlu0 %1611
    %v1614 = vmul.f32 %v1608, %v1612
    %1616 = vrot.lane.b32.xlu0 %v1614, 32
    %v1617 = vpop.permute.xlu0 %1616
    %v1619 = vadd.f32 %v1609, %v1617
    %v1620 = vtanh.pop %v1619
    %1622 = vrot.lane.b32.xlu0 %v1620, 64
    %v1623 = vpop.permute.xlu0 %1622
    %v1625 = vmul.f32 %v1608, %v1623
    %1627 = vrot.lane.b32.xlu0 %v1625, 32
    %v1628 = vpop.permute.xlu0 %1627
    %v1629 = vsel %vm123, %v1628, 0
    %1631 = vmatprep.subr.mxu0 0.0
    %1632 = vmatpush1.msra.mxu0 %v1101
    %1633 = vmatprep.subr.mxu0 0.0
    %1634 = vmatpush1.msra.mxu0 %v1102
    %1635 = vmatprep.subr.mxu0 0.0
    %1636 = vmatpush1.msra.mxu0 %v1103
    %1637 = vmatprep.subr.mxu0 0.0
    %1638 = vmatpush1.msra.mxu0 %v1104
    %1639 = vmatprep.subr.mxu0 0.0
    %1640 = vmatpush1.msra.mxu0 0.0
    %1641 = vmatprep.subr.mxu0 0.0
    %1642 = vmatpush1.msra.mxu0 0.0
    %1643 = vmatprep.subr.mxu0 0.0
    %1644 = vmatpush1.msra.mxu0 0.0
    %1645 = vmatprep.subr.mxu0 0.0
    %1646 = vmatpush1.msra.mxu0 0.0
    %1647 = vmatprep.subr.mxu0 0.0
    %1648 = vmatpush1.msra.mxu0 0.0
    %1649 = vmatprep.subr.mxu0 0.0
    %1650 = vmatpush1.msra.mxu0 0.0
    %1651 = vmatprep.subr.mxu0 0.0
    %1652 = vmatpush1.msra.mxu0 0.0
    %1653 = vmatprep.subr.mxu0 0.0
    %1654 = vmatpush1.msra.mxu0 0.0
    %1655 = vmatprep.subr.mxu0 0.0
    %1656 = vmatpush1.msra.mxu0 0.0
    %1657 = vmatprep.subr.mxu0 0.0
    %1658 = vmatpush1.msra.mxu0 0.0
    %1659 = vmatprep.subr.mxu0 0.0
    %1660 = vmatpush1.msra.mxu0 0.0
    %1661 = vmatprep.subr.mxu0 0.0
    %1662 = vmatpush1.msra.mxu0 0.0
    %1663 = vmatprep.subr.mxu0 0.0
    %1664 = vmatpush1.msra.mxu0 0.0
    %1665 = vmatprep.subr.mxu0 0.0
    %1666 = vmatpush1.msra.mxu0 0.0
    %1667 = vmatprep.subr.mxu0 0.0
    %1668 = vmatpush1.msra.mxu0 0.0
    %1669 = vmatprep.subr.mxu0 0.0
    %1670 = vmatpush1.msra.mxu0 0.0
    %1671 = vmatprep.subr.mxu0 0.0
    %1672 = vmatpush1.msra.mxu0 0.0
    %1673 = vmatprep.subr.mxu0 0.0
    %1674 = vmatpush1.msra.mxu0 0.0
    %1675 = vmatprep.subr.mxu0 0.0
    %1676 = vmatpush1.msra.mxu0 0.0
    %1677 = vmatprep.subr.mxu0 0.0
    %1678 = vmatpush1.msra.mxu0 0.0
    %1679 = vmatprep.subr.mxu0 0.0
    %1680 = vmatpush1.msra.mxu0 0.0
    %1681 = vmatprep.subr.mxu0 0.0
    %1682 = vmatpush1.msra.mxu0 0.0
    %1683 = vmatprep.subr.mxu0 0.0
    %1684 = vmatpush1.msra.mxu0 0.0
    %1685 = vmatprep.subr.mxu0 0.0
    %1686 = vmatpush1.msra.mxu0 0.0
    %1687 = vmatprep.subr.mxu0 0.0
    %1688 = vmatpush1.msra.mxu0 0.0
    %1689 = vmatprep.subr.mxu0 0.0
    %1690 = vmatpush1.msra.mxu0 0.0
    %1691 = vmatprep.subr.mxu0 0.0
    %1692 = vmatpush1.msra.mxu0 0.0
    %1693 = vmatprep.subr.mxu0 0.0
    %1694 = vmatpush1.msra.mxu0 0.0
    %1695 = vmatprep.mubr.f32.mxu0 0.0
    %1696 = vmatmul.mubr.f32.gmra.mrb[0].mxu0 %v1629
    %v1697 = vpop.f32.mrb[0].mxu0
    %v1698 = vadd.f32 0.0, %v1697
    %v1699 = vpop.f32.mrb[0].mxu0
    %1700 = vdwg.mxu0
    %v1701 = vadd.f32 %v1223, %v1698
    %v1702 = vmul.f32 %v1701, %v106
    %v1703 = vtanh.pop %v1702
    %v1704 = vmul.f32 %v1703, 0.5
    %v1705 = vadd.f32 %v1704, 0.5
    %v1706 = vmul.f32 %v1705, %v1619
    %1708 = vrot.lane.b32.xlu0 %v1703, 64
    %v1709 = vpop.permute.xlu0 %1708
    %v1711 = vmul.f32 %v1705, %v1709
    %1713 = vrot.lane.b32.xlu0 %v1711, 32
    %v1714 = vpop.permute.xlu0 %1713
    %v1716 = vadd.f32 %v1706, %v1714
    %v1717 = vtanh.pop %v1716
    %1719 = vrot.lane.b32.xlu0 %v1717, 64
    %v1720 = vpop.permute.xlu0 %1719
    %v1722 = vmul.f32 %v1705, %v1720
    %1724 = vrot.lane.b32.xlu0 %v1722, 32
    %v1725 = vpop.permute.xlu0 %1724
    %v1726 = vsel %vm123, %v1725, 0
    %1728 = vmatprep.subr.mxu0 0.0
    %1729 = vmatpush1.msra.mxu0 %v1101
    %1730 = vmatprep.subr.mxu0 0.0
    %1731 = vmatpush1.msra.mxu0 %v1102
    %1732 = vmatprep.subr.mxu0 0.0
    %1733 = vmatpush1.msra.mxu0 %v1103
    %1734 = vmatprep.subr.mxu0 0.0
    %1735 = vmatpush1.msra.mxu0 %v1104
    %1736 = vmatprep.subr.mxu0 0.0
    %1737 = vmatpush1.msra.mxu0 0.0
    %1738 = vmatprep.subr.mxu0 0.0
    %1739 = vmatpush1.msra.mxu0 0.0
    %1740 = vmatprep.subr.mxu0 0.0
    %1741 = vmatpush1.msra.mxu0 0.0
    %1742 = vmatprep.subr.mxu0 0.0
    %1743 = vmatpush1.msra.mxu0 0.0
    %1744 = vmatprep.subr.mxu0 0.0
    %1745 = vmatpush1.msra.mxu0 0.0
    %1746 = vmatprep.subr.mxu0 0.0
    %1747 = vmatpush1.msra.mxu0 0.0
    %1748 = vmatprep.subr.mxu0 0.0
    %1749 = vmatpush1.msra.mxu0 0.0
    %1750 = vmatprep.subr.mxu0 0.0
    %1751 = vmatpush1.msra.mxu0 0.0
    %1752 = vmatprep.subr.mxu0 0.0
    %1753 = vmatpush1.msra.mxu0 0.0
    %1754 = vmatprep.subr.mxu0 0.0
    %1755 = vmatpush1.msra.mxu0 0.0
    %1756 = vmatprep.subr.mxu0 0.0
    %1757 = vmatpush1.msra.mxu0 0.0
    %1758 = vmatprep.subr.mxu0 0.0
    %1759 = vmatpush1.msra.mxu0 0.0
    %1760 = vmatprep.subr.mxu0 0.0
    %1761 = vmatpush1.msra.mxu0 0.0
    %1762 = vmatprep.subr.mxu0 0.0
    %1763 = vmatpush1.msra.mxu0 0.0
    %1764 = vmatprep.subr.mxu0 0.0
    %1765 = vmatpush1.msra.mxu0 0.0
    %1766 = vmatprep.subr.mxu0 0.0
    %1767 = vmatpush1.msra.mxu0 0.0
    %1768 = vmatprep.subr.mxu0 0.0
    %1769 = vmatpush1.msra.mxu0 0.0
    %1770 = vmatprep.subr.mxu0 0.0
    %1771 = vmatpush1.msra.mxu0 0.0
    %1772 = vmatprep.subr.mxu0 0.0
    %1773 = vmatpush1.msra.mxu0 0.0
    %1774 = vmatprep.subr.mxu0 0.0
    %1775 = vmatpush1.msra.mxu0 0.0
    %1776 = vmatprep.subr.mxu0 0.0
    %1777 = vmatpush1.msra.mxu0 0.0
    %1778 = vmatprep.subr.mxu0 0.0
    %1779 = vmatpush1.msra.mxu0 0.0
    %1780 = vmatprep.subr.mxu0 0.0
    %1781 = vmatpush1.msra.mxu0 0.0
    %1782 = vmatprep.subr.mxu0 0.0
    %1783 = vmatpush1.msra.mxu0 0.0
    %1784 = vmatprep.subr.mxu0 0.0
    %1785 = vmatpush1.msra.mxu0 0.0
    %1786 = vmatprep.subr.mxu0 0.0
    %1787 = vmatpush1.msra.mxu0 0.0
    %1788 = vmatprep.subr.mxu0 0.0
    %1789 = vmatpush1.msra.mxu0 0.0
    %1790 = vmatprep.subr.mxu0 0.0
    %1791 = vmatpush1.msra.mxu0 0.0
    %1792 = vmatprep.mubr.f32.mxu0 0.0
    %1793 = vmatmul.mubr.f32.gmra.mrb[0].mxu0 %v1726
    %v1794 = vpop.f32.mrb[0].mxu0
    %v1795 = vadd.f32 0.0, %v1794
    %v1796 = vpop.f32.mrb[0].mxu0
    %1797 = vdwg.mxu0
    %v1798 = vadd.f32 %v1228, %v1795
    %v1799 = vmul.f32 %v1798, %v106
    %v1800 = vtanh.pop %v1799
    %v1801 = vmul.f32 %v1800, 0.5
    %v1802 = vadd.f32 %v1801, 0.5
    %v1803 = vmul.f32 %v1802, %v1716
    %1805 = vrot.lane.b32.xlu0 %v1800, 64
    %v1806 = vpop.permute.xlu0 %1805
    %v1808 = vmul.f32 %v1802, %v1806
    %1810 = vrot.lane.b32.xlu0 %v1808, 32
    %v1811 = vpop.permute.xlu0 %1810
    %v1813 = vadd.f32 %v1803, %v1811
    %v1814 = vtanh.pop %v1813
    %1816 = vrot.lane.b32.xlu0 %v1814, 64
    %v1817 = vpop.permute.xlu0 %1816
    %v1819 = vmul.f32 %v1802, %v1817
    %1821 = vrot.lane.b32.xlu0 %v1819, 32
    %v1822 = vpop.permute.xlu0 %1821
    %v1823 = vsel %vm123, %v1822, 0
    %1825 = vmatprep.subr.mxu0 0.0
    %1826 = vmatpush1.msra.mxu0 %v1101
    %1827 = vmatprep.subr.mxu0 0.0
    %1828 = vmatpush1.msra.mxu0 %v1102
    %1829 = vmatprep.subr.mxu0 0.0
    %1830 = vmatpush1.msra.mxu0 %v1103
    %1831 = vmatprep.subr.mxu0 0.0
    %1832 = vmatpush1.msra.mxu0 %v1104
    %1833 = vmatprep.subr.mxu0 0.0
    %1834 = vmatpush1.msra.mxu0 0.0
    %1835 = vmatprep.subr.mxu0 0.0
    %1836 = vmatpush1.msra.mxu0 0.0
    %1837 = vmatprep.subr.mxu0 0.0
    %1838 = vmatpush1.msra.mxu0 0.0
    %1839 = vmatprep.subr.mxu0 0.0
    %1840 = vmatpush1.msra.mxu0 0.0
    %1841 = vmatprep.subr.mxu0 0.0
    %1842 = vmatpush1.msra.mxu0 0.0
    %1843 = vmatprep.subr.mxu0 0.0
    %1844 = vmatpush1.msra.mxu0 0.0
    %1845 = vmatprep.subr.mxu0 0.0
    %1846 = vmatpush1.msra.mxu0 0.0
    %1847 = vmatprep.subr.mxu0 0.0
    %1848 = vmatpush1.msra.mxu0 0.0
    %1849 = vmatprep.subr.mxu0 0.0
    %1850 = vmatpush1.msra.mxu0 0.0
    %1851 = vmatprep.subr.mxu0 0.0
    %1852 = vmatpush1.msra.mxu0 0.0
    %1853 = vmatprep.subr.mxu0 0.0
    %1854 = vmatpush1.msra.mxu0 0.0
    %1855 = vmatprep.subr.mxu0 0.0
    %1856 = vmatpush1.msra.mxu0 0.0
    %1857 = vmatprep.subr.mxu0 0.0
    %1858 = vmatpush1.msra.mxu0 0.0
    %1859 = vmatprep.subr.mxu0 0.0
    %1860 = vmatpush1.msra.mxu0 0.0
    %1861 = vmatprep.subr.mxu0 0.0
    %1862 = vmatpush1.msra.mxu0 0.0
    %1863 = vmatprep.subr.mxu0 0.0
    %1864 = vmatpush1.msra.mxu0 0.0
    %1865 = vmatprep.subr.mxu0 0.0
    %1866 = vmatpush1.msra.mxu0 0.0
    %1867 = vmatprep.subr.mxu0 0.0
    %1868 = vmatpush1.msra.mxu0 0.0
    %1869 = vmatprep.subr.mxu0 0.0
    %1870 = vmatpush1.msra.mxu0 0.0
    %1871 = vmatprep.subr.mxu0 0.0
    %1872 = vmatpush1.msra.mxu0 0.0
    %1873 = vmatprep.subr.mxu0 0.0
    %1874 = vmatpush1.msra.mxu0 0.0
    %1875 = vmatprep.subr.mxu0 0.0
    %1876 = vmatpush1.msra.mxu0 0.0
    %1877 = vmatprep.subr.mxu0 0.0
    %1878 = vmatpush1.msra.mxu0 0.0
    %1879 = vmatprep.subr.mxu0 0.0
    %1880 = vmatpush1.msra.mxu0 0.0
    %1881 = vmatprep.subr.mxu0 0.0
    %1882 = vmatpush1.msra.mxu0 0.0
    %1883 = vmatprep.subr.mxu0 0.0
    %1884 = vmatpush1.msra.mxu0 0.0
    %1885 = vmatprep.subr.mxu0 0.0
    %1886 = vmatpush1.msra.mxu0 0.0
    %1887 = vmatprep.subr.mxu0 0.0
    %1888 = vmatpush1.msra.mxu0 0.0
    %1889 = vmatprep.mubr.f32.mxu0 0.0
    %1890 = vmatmul.mubr.f32.gmra.mrb[0].mxu0 %v1823
    %v1891 = vpop.f32.mrb[0].mxu0
    %v1892 = vadd.f32 0.0, %v1891
    %v1893 = vpop.f32.mrb[0].mxu0
    %1894 = vdwg.mxu0
    %v1895 = vadd.f32 %v1233, %v1892
    %v1896 = vmul.f32 %v1895, %v106
    %v1897 = vtanh.pop %v1896
    %v1898 = vmul.f32 %v1897, 0.5
    %v1899 = vadd.f32 %v1898, 0.5
    %v1900 = vmul.f32 %v1899, %v1813
    %1902 = vrot.lane.b32.xlu0 %v1897, 64
    %v1903 = vpop.permute.xlu0 %1902
    %v1905 = vmul.f32 %v1899, %v1903
    %1907 = vrot.lane.b32.xlu0 %v1905, 32
    %v1908 = vpop.permute.xlu0 %1907
    %v1910 = vadd.f32 %v1900, %v1908
    %v1911 = vtanh.pop %v1910
    %1913 = vrot.lane.b32.xlu0 %v1911, 64
    %v1914 = vpop.permute.xlu0 %1913
    %v1916 = vmul.f32 %v1899, %v1914
    %1918 = vrot.lane.b32.xlu0 %v1916, 32
    %v1919 = vpop.permute.xlu0 %1918
    %v1920 = vsel %vm123, %v1919, 0
    %1922 = vmatprep.subr.mxu0 0.0
    %1923 = vmatpush1.msra.mxu0 %v1101
    %1924 = vmatprep.subr.mxu0 0.0
    %1925 = vmatpush1.msra.mxu0 %v1102
    %1926 = vmatprep.subr.mxu0 0.0
    %1927 = vmatpush1.msra.mxu0 %v1103
    %1928 = vmatprep.subr.mxu0 0.0
    %1929 = vmatpush1.msra.mxu0 %v1104
    %1930 = vmatprep.subr.mxu0 0.0
    %1931 = vmatpush1.msra.mxu0 0.0
    %1932 = vmatprep.subr.mxu0 0.0
    %1933 = vmatpush1.msra.mxu0 0.0
    %1934 = vmatprep.subr.mxu0 0.0
    %1935 = vmatpush1.msra.mxu0 0.0
    %1936 = vmatprep.subr.mxu0 0.0
    %1937 = vmatpush1.msra.mxu0 0.0
    %1938 = vmatprep.subr.mxu0 0.0
    %1939 = vmatpush1.msra.mxu0 0.0
    %1940 = vmatprep.subr.mxu0 0.0
    %1941 = vmatpush1.msra.mxu0 0.0
    %1942 = vmatprep.subr.mxu0 0.0
    %1943 = vmatpush1.msra.mxu0 0.0
    %1944 = vmatprep.subr.mxu0 0.0
    %1945 = vmatpush1.msra.mxu0 0.0
    %1946 = vmatprep.subr.mxu0 0.0
    %1947 = vmatpush1.msra.mxu0 0.0
    %1948 = vmatprep.subr.mxu0 0.0
    %1949 = vmatpush1.msra.mxu0 0.0
    %1950 = vmatprep.subr.mxu0 0.0
    %1951 = vmatpush1.msra.mxu0 0.0
    %1952 = vmatprep.subr.mxu0 0.0
    %1953 = vmatpush1.msra.mxu0 0.0
    %1954 = vmatprep.subr.mxu0 0.0
    %1955 = vmatpush1.msra.mxu0 0.0
    %1956 = vmatprep.subr.mxu0 0.0
    %1957 = vmatpush1.msra.mxu0 0.0
    %1958 = vmatprep.subr.mxu0 0.0
    %1959 = vmatpush1.msra.mxu0 0.0
    %1960 = vmatprep.subr.mxu0 0.0
    %1961 = vmatpush1.msra.mxu0 0.0
    %1962 = vmatprep.subr.mxu0 0.0
    %1963 = vmatpush1.msra.mxu0 0.0
    %1964 = vmatprep.subr.mxu0 0.0
    %1965 = vmatpush1.msra.mxu0 0.0
    %1966 = vmatprep.subr.mxu0 0.0
    %1967 = vmatpush1.msra.mxu0 0.0
    %1968 = vmatprep.subr.mxu0 0.0
    %1969 = vmatpush1.msra.mxu0 0.0
    %1970 = vmatprep.subr.mxu0 0.0
    %1971 = vmatpush1.msra.mxu0 0.0
    %1972 = vmatprep.subr.mxu0 0.0
    %1973 = vmatpush1.msra.mxu0 0.0
    %1974 = vmatprep.subr.mxu0 0.0
    %1975 = vmatpush1.msra.mxu0 0.0
    %1976 = vmatprep.subr.mxu0 0.0
    %1977 = vmatpush1.msra.mxu0 0.0
    %1978 = vmatprep.subr.mxu0 0.0
    %1979 = vmatpush1.msra.mxu0 0.0
    %1980 = vmatprep.subr.mxu0 0.0
    %1981 = vmatpush1.msra.mxu0 0.0
    %1982 = vmatprep.subr.mxu0 0.0
    %1983 = vmatpush1.msra.mxu0 0.0
    %1984 = vmatprep.subr.mxu0 0.0
    %1985 = vmatpush1.msra.mxu0 0.0
    %1986 = vmatprep.mubr.f32.mxu0 0.0
    %1987 = vmatmul.mubr.f32.gmra.mrb[0].mxu0 %v1920
    %v1988 = vpop.f32.mrb[0].mxu0
    %v1989 = vadd.f32 0.0, %v1988
    %v1990 = vpop.f32.mrb[0].mxu0
    %1991 = vdwg.mxu0
    %v1992 = vadd.f32 %v1238, %v1989
    %v1993 = vmul.f32 %v1992, %v106
    %v1994 = vtanh.pop %v1993
    %v1995 = vmul.f32 %v1994, 0.5
    %v1996 = vadd.f32 %v1995, 0.5
    %v1997 = vmul.f32 %v1996, %v1910
    %1999 = vrot.lane.b32.xlu0 %v1994, 64
    %v2000 = vpop.permute.xlu0 %1999
    %v2002 = vmul.f32 %v1996, %v2000
    %2004 = vrot.lane.b32.xlu0 %v2002, 32
    %v2005 = vpop.permute.xlu0 %2004
    %v2007 = vadd.f32 %v1997, %v2005
    %v2008 = vtanh.pop %v2007
    %2010 = vrot.lane.b32.xlu0 %v2008, 64
    %v2011 = vpop.permute.xlu0 %2010
    %v2013 = vmul.f32 %v1996, %v2011
    %v2014 = vld [vmem:[%s7] sm:$0xff]
    %v2015 = vld [vmem:[%s7 + $0x8] sm:$0xff]
    %v2016 = vld [vmem:[%s7 + $0x10] sm:$0xff]
    %v2017 = vld [vmem:[%s7 + $0x18] sm:$0xff]
    %v2018 = vld [vmem:[%s7 + $0x20] sm:$0xff]
    %v2019 = vld [vmem:[%s7 + $0x28] sm:$0xff]
    %v2020 = vld [vmem:[%s7 + $0x30] sm:$0xff]
    %v2021 = vld [vmem:[%s7 + $0x38] sm:$0xff]
    %v2022 = vld [vmem:[%s8] sm:$0x1]
    %v2024 = vlaneseq
    %v2025 = vshrl.u32 %v2024, 7
    %v2026 = vsub.s32 0, %v2025
    %v2027 = vrot.slane %v2022, %v2026
    %2029 = vmatprep.subr.mxu0 0.0
    %2030 = vmatpush1.msra.mxu0 %v2014
    %2031 = vmatprep.subr.mxu0 0.0
    %2032 = vmatpush1.msra.mxu0 %v2015
    %2033 = vmatprep.subr.mxu0 0.0
    %2034 = vmatpush1.msra.mxu0 %v2016
    %2035 = vmatprep.subr.mxu0 0.0
    %2036 = vmatpush1.msra.mxu0 %v2017
    %2037 = vmatprep.subr.mxu0 0.0
    %2038 = vmatpush1.msra.mxu0 %v2018
    %2039 = vmatprep.subr.mxu0 0.0
    %2040 = vmatpush1.msra.mxu0 %v2019
    %2041 = vmatprep.subr.mxu0 0.0
    %2042 = vmatpush1.msra.mxu0 %v2020
    %2043 = vmatprep.subr.mxu0 0.0
    %2044 = vmatpush1.msra.mxu0 %v2021
    %2045 = vmatprep.subr.mxu0 0.0
    %2046 = vmatpush1.msra.mxu0 0.0
    %2047 = vmatprep.subr.mxu0 0.0
    %2048 = vmatpush1.msra.mxu0 0.0
    %2049 = vmatprep.subr.mxu0 0.0
    %2050 = vmatpush1.msra.mxu0 0.0
    %2051 = vmatprep.subr.mxu0 0.0
    %2052 = vmatpush1.msra.mxu0 0.0
    %2053 = vmatprep.subr.mxu0 0.0
    %2054 = vmatpush1.msra.mxu0 0.0
    %2055 = vmatprep.subr.mxu0 0.0
    %2056 = vmatpush1.msra.mxu0 0.0
    %2057 = vmatprep.subr.mxu0 0.0
    %2058 = vmatpush1.msra.mxu0 0.0
    %2059 = vmatprep.subr.mxu0 0.0
    %2060 = vmatpush1.msra.mxu0 0.0
    %2061 = vmatprep.subr.mxu0 0.0
    %2062 = vmatpush1.msra.mxu0 0.0
    %2063 = vmatprep.subr.mxu0 0.0
    %2064 = vmatpush1.msra.mxu0 0.0
    %2065 = vmatprep.subr.mxu0 0.0
    %2066 = vmatpush1.msra.mxu0 0.0
    %2067 = vmatprep.subr.mxu0 0.0
    %2068 = vmatpush1.msra.mxu0 0.0
    %2069 = vmatprep.subr.mxu0 0.0
    %2070 = vmatpush1.msra.mxu0 0.0
    %2071 = vmatprep.subr.mxu0 0.0
    %2072 = vmatpush1.msra.mxu0 0.0
    %2073 = vmatprep.subr.mxu0 0.0
    %2074 = vmatpush1.msra.mxu0 0.0
    %2075 = vmatprep.subr.mxu0 0.0
    %2076 = vmatpush1.msra.mxu0 0.0
    %2077 = vmatprep.subr.mxu0 0.0
    %2078 = vmatpush1.msra.mxu0 0.0
    %2079 = vmatprep.subr.mxu0 0.0
    %2080 = vmatpush1.msra.mxu0 0.0
    %2081 = vmatprep.subr.mxu0 0.0
    %2082 = vmatpush1.msra.mxu0 0.0
    %2083 = vmatprep.subr.mxu0 0.0
    %2084 = vmatpush1.msra.mxu0 0.0
    %2085 = vmatprep.subr.mxu0 0.0
    %2086 = vmatpush1.msra.mxu0 0.0
    %2087 = vmatprep.subr.mxu0 0.0
    %2088 = vmatpush1.msra.mxu0 0.0
    %2089 = vmatprep.subr.mxu0 0.0
    %2090 = vmatpush1.msra.mxu0 0.0
    %2091 = vmatprep.subr.mxu0 0.0
    %2092 = vmatpush1.msra.mxu0 0.0
    %2093 = vmatprep.mubr.f32.mxu0 0.0
    %2094 = vmatmul.mubr.f32.gmra.mrb[0].mxu0 %v1134
    %v2095 = vpop.f32.mrb[0].mxu0
    %v2096 = vadd.f32 %v2027, %v2095
    %v2097 = vpop.f32.mrb[0].mxu0
    %2098 = vdwg.mxu0
    %v2099 = vmul.f32 %v2096, %v106
    %v2100 = vtanh.pop %v2099
    %v2101 = vmul.f32 %v2100, 0.5
    %v2102 = vadd.f32 %v2101, 0.5
    %v2103 = vmul.f32 %v2102, 0.0
    %2105 = vrot.lane.b32.xlu0 %v2100, 64
    %v2106 = vpop.permute.xlu0 %2105
    %v2108 = vmul.f32 %v2102, %v2106
    %2110 = vrot.lane.b32.xlu0 %v2108, 32
    %v2111 = vpop.permute.xlu0 %2110
    %v2113 = vadd.f32 %v2103, %v2111
    %v2114 = vtanh.pop %v2113
    %2116 = vrot.lane.b32.xlu0 %v2114, 64
    %v2117 = vpop.permute.xlu0 %2116
    %v2119 = vmul.f32 %v2102, %v2117
    %2121 = vrot.lane.b32.xlu0 %v2013, 32
    %v2122 = vpop.permute.xlu0 %2121
    %2125 = vrot.lane.b32.xlu0 %v2119, 64
    %v2126 = vpop.permute.xlu0 %2125
    %v2128 = vsel %vm123, %v2122, %v2126
    %v2129 = vld [vmem:[%s9] sm:$0xff]
    %v2130 = vld [vmem:[%s9 + $0x8] sm:$0xff]
    %v2131 = vld [vmem:[%s9 + $0x10] sm:$0xff]
    %v2132 = vld [vmem:[%s9 + $0x18] sm:$0xff]
    %v2133 = vld [vmem:[%s9 + $0x20] sm:$0xff]
    %v2134 = vld [vmem:[%s9 + $0x28] sm:$0xff]
    %v2135 = vld [vmem:[%s9 + $0x30] sm:$0xff]
    %v2136 = vld [vmem:[%s9 + $0x38] sm:$0xff]
    %v2137 = vld [vmem:[%s10] sm:$0x1]
    %v2139 = vlaneseq
    %v2140 = vshrl.u32 %v2139, 7
    %v2141 = vsub.s32 0, %v2140
    %v2142 = vrot.slane %v2137, %v2141
    %v2145 = vsel %vm283, %v2128, 0
    %2147 = vmatprep.subr.mxu0 0.0
    %2148 = vmatpush1.msra.mxu0 %v2129
    %2149 = vmatprep.subr.mxu0 0.0
    %2150 = vmatpush1.msra.mxu0 %v2130
    %2151 = vmatprep.subr.mxu0 0.0
    %2152 = vmatpush1.msra.mxu0 %v2131
    %2153 = vmatprep.subr.mxu0 0.0
    %2154 = vmatpush1.msra.mxu0 %v2132
    %2155 = vmatprep.subr.mxu0 0.0
    %2156 = vmatpush1.msra.mxu0 %v2133
    %2157 = vmatprep.subr.mxu0 0.0
    %2158 = vmatpush1.msra.mxu0 %v2134
    %2159 = vmatprep.subr.mxu0 0.0
    %2160 = vmatpush1.msra.mxu0 %v2135
    %2161 = vmatprep.subr.mxu0 0.0
    %2162 = vmatpush1.msra.mxu0 %v2136
    %2163 = vmatprep.subr.mxu0 0.0
    %2164 = vmatpush1.msra.mxu0 0.0
    %2165 = vmatprep.subr.mxu0 0.0
    %2166 = vmatpush1.msra.mxu0 0.0
    %2167 = vmatprep.subr.mxu0 0.0
    %2168 = vmatpush1.msra.mxu0 0.0
    %2169 = vmatprep.subr.mxu0 0.0
    %2170 = vmatpush1.msra.mxu0 0.0
    %2171 = vmatprep.subr.mxu0 0.0
    %2172 = vmatpush1.msra.mxu0 0.0
    %2173 = vmatprep.subr.mxu0 0.0
    %2174 = vmatpush1.msra.mxu0 0.0
    %2175 = vmatprep.subr.mxu0 0.0
    %2176 = vmatpush1.msra.mxu0 0.0
    %2177 = vmatprep.subr.mxu0 0.0
    %2178 = vmatpush1.msra.mxu0 0.0
    %2179 = vmatprep.subr.mxu0 0.0
    %2180 = vmatpush1.msra.mxu0 0.0
    %2181 = vmatprep.subr.mxu0 0.0
    %2182 = vmatpush1.msra.mxu0 0.0
    %2183 = vmatprep.subr.mxu0 0.0
    %2184 = vmatpush1.msra.mxu0 0.0
    %2185 = vmatprep.subr.mxu0 0.0
    %2186 = vmatpush1.msra.mxu0 0.0
    %2187 = vmatprep.subr.mxu0 0.0
    %2188 = vmatpush1.msra.mxu0 0.0
    %2189 = vmatprep.subr.mxu0 0.0
    %2190 = vmatpush1.msra.mxu0 0.0
    %2191 = vmatprep.subr.mxu0 0.0
    %2192 = vmatpush1.msra.mxu0 0.0
    %2193 = vmatprep.subr.mxu0 0.0
    %2194 = vmatpush1.msra.mxu0 0.0
    %2195 = vmatprep.subr.mxu0 0.0
    %2196 = vmatpush1.msra.mxu0 0.0
    %2197 = vmatprep.subr.mxu0 0.0
    %2198 = vmatpush1.msra.mxu0 0.0
    %2199 = vmatprep.subr.mxu0 0.0
    %2200 = vmatpush1.msra.mxu0 0.0
    %2201 = vmatprep.subr.mxu0 0.0
    %2202 = vmatpush1.msra.mxu0 0.0
    %2203 = vmatprep.subr.mxu0 0.0
    %2204 = vmatpush1.msra.mxu0 0.0
    %2205 = vmatprep.subr.mxu0 0.0
    %2206 = vmatpush1.msra.mxu0 0.0
    %2207 = vmatprep.subr.mxu0 0.0
    %2208 = vmatpush1.msra.mxu0 0.0
    %2209 = vmatprep.subr.mxu0 0.0
    %2210 = vmatpush1.msra.mxu0 0.0
    %2211 = vmatprep.mubr.f32.mxu0 0.0
    %2212 = vmatmul.mubr.f32.gmra.mrb[0].mxu0 %v2145
    %v2213 = vpop.f32.mrb[0].mxu0
    %v2214 = vadd.f32 %v2142, %v2213
    %v2215 = vpop.f32.mrb[0].mxu0
    %2216 = vdwg.mxu0
    %vm2217 = vcmask 33792
    %2218 = vst.msk [vmem:[#allocation11] sm:$0x3] %vm2217, %v2214
    // Predicated region
    $region62: #{tpu_custom_call.1} parent=1 // pred_check
      _
    $region63: #{tpu_custom_call.1} parent=1 // pred_check_branch
      %2220 = sbr.rel (0) target = $region65
    $region64: #{tpu_custom_call.1} parent=1 // pred_region
      %s2222 = ssub.s32 32, 32
      %2223 = vsyncadd [#allocation5], %s2222
      %s2225 = sshll.u32 [#allocation11], 4
      %s2226 = int_to_ptr.vmem [resolvable:$true] %s2225
      %2228 = dma.vmem_to_hbm [thread:$0]  %s2226, 32, %s11, [#allocation5]
    $region65: #{tpu_custom_call.1} parent=1 // pred_fallthru
      _
    // Predicated region
    $region66: #{tpu_custom_call.1} parent=1 // pred_check
      _
    $region67: #{tpu_custom_call.1} parent=1 // pred_check_branch
      %2230 = sbr.rel (0) target = $region69
    $region68: #{tpu_custom_call.1} parent=1 // pred_region
      %2231 = dma.done [#allocation5], 32
    $region69: #{tpu_custom_call.1} parent=1 // pred_fallthru
      _
    %2232 = vsyncpa [#allocation4], 1
    %2233 = vsyncpa [#allocation7], 1
    %2234 = vsyncpa [#allocation10], 1
    %2235 = vsyncpa [#allocation5], 1

</llo_original>
